<compile_context>
chip_gen: v5e
topology: v5e:2x2
jax: 0.10.0
libtpu: 0.0.40
codegen_flags: <defaults>
</compile_context>

<pallas_src>
import math
from functools import partial

import jax
import jax.numpy as jnp
import numpy as np
from jax import lax
from jax.experimental import pallas as pl
from jax.experimental.pallas import tpu as pltpu


# ----------------------------- kernel -------------------------------------- #

def _fused_mask_head_kernel(x_ref, wr_ref, br_ref, wc_ref, bc_ref, o_ref,
                            z_acc, ab_scr, *, k_tiles, n_tiles, batch, rank,
                            output_size, rows_per_tile):
    """Fused fc_reduce(+ReLU) -> [fc_a || fc_b] -> per-batch low-rank bmm.

    Single flattened two-phase grid:
      steps [0, k_tiles)               : phase 1 -- stream wr K-tiles over D,
                                         accumulate z[B, C] in f32 VMEM.
      steps [k_tiles, k_tiles+n_tiles) : phase 2 -- stream w_cat N-tiles over
                                         2*R*O, fill ab[B, 2R, O] in VMEM.
      last step                        : per-batch low-rank bmm -> mask[B,O,O].

    Refs per grid step:
      x_ref : [B, tk]    bf16   (k-th column slab of the flattened input)
      wr_ref: [tk, C]    bf16
      br_ref: [1, C]     f32    (constant across the grid)
      wc_ref: [C, tn]    bf16   (n-th column slab of fc_a(permuted) || fc_b)
      bc_ref: [1, tn]    f32
      o_ref : [B, O, O]         (resident; written once on the last step)
      z_acc : [B, C]     f32    VMEM scratch (fc_reduce accumulator, then z)
      ab_scr: [B, 2R, O] f32    VMEM scratch (a^T stacked on b)
    """
    i = pl.program_id(0)

    # ---------------- phase 1: z = relu(x @ wr + br), K-tiled over D -------- #
    @pl.when(i == 0)
    def _init():
        z_acc[...] = jnp.zeros_like(z_acc)

    @pl.when(i < k_tiles)
    def _accumulate():
        # Whole batch folded into M of one MXU matmul (no per-batch GEMVs).
        z_acc[...] += jnp.dot(x_ref[...], wr_ref[...],
                              preferred_element_type=jnp.float32)

    @pl.when(i == k_tiles - 1)
    def _finalize_z():
        z_acc[...] = jnp.maximum(z_acc[...] + br_ref[...], 0.0)

    # ---------- phase 2: ab = z @ [wa_t || wb] + bias, N-tiled over 2*R*O --- #
    @pl.when(i >= k_tiles)
    def _ab_tile():
        n = i - k_tiles
        # z re-rounded to bf16 (perf choice; matches reference_forward_matched).
        z_b = z_acc[...].astype(wc_ref.dtype)
        ab_t = jnp.dot(z_b, wc_ref[...],
                       preferred_element_type=jnp.float32) + bc_ref[...]
        # One bulk relayout per tile: [B, tn] -> [B, rows, O] (O lane-dense),
        # stored at an aligned sublane offset of the resident ab scratch.
        ab_t = ab_t.reshape(batch, rows_per_tile, output_size)
        row0 = pl.multiple_of(n * rows_per_tile, rows_per_tile)
        ab_scr[:, pl.ds(row0, rows_per_tile), :] = ab_t

    # --------------- final step: mask[b] = a[b] @ b[b] (low-rank bmm) ------- #
    @pl.when(i == k_tiles + n_tiles - 1)
    def _bmm():
        # ab_scr rows [0, R) hold a^T (rank on sublanes, O on lanes); rows
        # [R, 2R) hold b. mask[b] = a[b] @ b[b] = at_b^T @ bt_b.
        # B is small & static -> unrolled per-batch 2-D MXU dots.
        # TODO(synk): at production scale, check pl.lower_as_mlir that the
        # trans_a dot_general does not emit an explicit vxpose of at_b.
        for b in range(batch):
            at_b = ab_scr[b, :rank, :]        # [R, O]
            bt_b = ab_scr[b, rank:, :]        # [R, O]
            o_ref[b] = lax.dot_general(
                at_b, bt_b,
                dimension_numbers=(((0,), (0,)), ((), ())),
                preferred_element_type=jnp.float32).astype(o_ref.dtype)


# ----------------------- parameter preparation ----------------------------- #

def prepare_params(params, *, output_size, rank, compute_dtype=jnp.bfloat16):
    """One-time host-side param fusion (would be cached in real serving):
       * permute fc_a columns so z @ wa_t yields a^T ([R, O]) per batch,
       * concatenate fc_a / fc_b weights and biases,
       * cast the weight path to bf16 (biases stay f32)."""
    wr, br = params["wr"], params["br"]
    wa, ba = params["wa"], params["ba"]
    wb, bb = params["wb"], params["bb"]
    C = wr.shape[1]
    O, R = output_size, rank

    # wa_t[c, r*O + o] = wa[c, o*R + r]
    wa_t = wa.reshape(C, O, R).transpose(0, 2, 1).reshape(C, R * O)
    ba_t = ba.reshape(O, R).T.reshape(R * O)

    w_cat = jnp.concatenate([wa_t, wb], axis=1).astype(compute_dtype)  # [C, 2RO]
    b_cat = jnp.concatenate([ba_t, bb], axis=0).astype(jnp.float32).reshape(1, -1)

    return {
        "wr": wr.astype(compute_dtype),
        "br": br.astype(jnp.float32).reshape(1, -1),
        "w_cat": w_cat,
        "b_cat": b_cat,
    }


def _pick_tile(dim, quantum, max_tile):
    """Largest multiple of `quantum` that divides `dim` and is <= max_tile,
    falling back to the full dimension."""
    if dim <= max_tile:
        return dim
    t = (max_tile // quantum) * quantum
    while t >= quantum:
        if dim % t == 0:
            return t
        t -= quantum
    return dim


# ------------------------------- wrapper ------------------------------------ #

def mlp_mask_head_forward(x, params, *, output_size, rank,
                          compute_dtype=jnp.bfloat16, out_dtype=jnp.float32,
                          tile_d=None, tile_n=None):
    """x: [B, num_token, hidden_dim]  ->  mask: [B, output_size, output_size].

    The kernel is weight-bandwidth-bound, so wr is streamed as (tile_d, C)
    K-tiles and w_cat as (C, tile_n) N-tiles over one flattened two-phase grid;
    z, ab and the mask block stay resident in VMEM.
    """
    B, T, H = x.shape
    D = T * H
    O, R = output_size, rank
    RO2 = 2 * R * O

    prep = prepare_params(params, output_size=O, rank=R,
                          compute_dtype=compute_dtype)
    C = prep["wr"].shape[1]
    x_flat = x.reshape(B, D).astype(compute_dtype)   # glue: torch.flatten(1)

    # Tile selection (streamed bf16 weight tiles of a few MiB; sweep per chip).
    if tile_d is None:
        tile_d = _pick_tile(D, 128, 2048)
    if tile_n is None:
        tile_n = _pick_tile(RO2, 8 * O, 8192)
    assert D % tile_d == 0 and RO2 % tile_n == 0 and tile_n % O == 0
    k_tiles = D // tile_d
    n_tiles = RO2 // tile_n
    rows_per_tile = tile_n // O
    assert rows_per_tile % 8 == 0 or rows_per_tile == 2 * R

    kt = k_tiles
    grid = (k_tiles + n_tiles,)

    kernel = partial(_fused_mask_head_kernel, k_tiles=k_tiles, n_tiles=n_tiles,
                     batch=B, rank=R, output_size=O,
                     rows_per_tile=rows_per_tile)

    # Explicit VMEM budget (double-buffered streamed tiles + resident scratch).
    bpe = jnp.dtype(compute_dtype).itemsize
    vmem_est = (2 * B * tile_d * bpe            # x k-tiles
                + 2 * tile_d * C * bpe          # wr k-tiles
                + C * 4                         # br (single-buffered)
                + 2 * C * tile_n * bpe          # w_cat n-tiles
                + 2 * tile_n * 4                # bc n-tiles
                + B * C * 4                     # z accumulator
                + B * 2 * R * O * 4             # ab scratch
                + B * O * O * jnp.dtype(out_dtype).itemsize)   # resident mask
    vmem_limit = int(min(100 << 20, max(32 << 20, 2 * vmem_est + (4 << 20))))
    # TODO(synk): on v7x (64 MiB VMEM/TC) cap tile_d / tile_n so 2*vmem_est
    # stays under ~48 MiB, and add a second ("parallel") grid axis splitting
    # the 2*R*O N-tiles (not the batch) across the two TensorCores.

    def _build(single_buffer_const):
        br_kw = {"pipeline_mode": pl.Buffered(1)} if single_buffer_const else {}
        in_specs = [
            # x column slab follows the wr K-tile; clamps during phase 2.
            pl.BlockSpec((B, tile_d), lambda i: (0, jnp.minimum(i, kt - 1))),
            pl.BlockSpec((tile_d, C), lambda i: (jnp.minimum(i, kt - 1), 0)),
            # br: constant-index block -> single-buffered (no overlap benefit).
            pl.BlockSpec((1, C), lambda i: (0, 0), **br_kw),
            # w_cat / bc N-tiles; stay at tile 0 (prefetched) during phase 1.
            pl.BlockSpec((C, tile_n), lambda i: (0, jnp.maximum(i - kt, 0))),
            pl.BlockSpec((1, tile_n), lambda i: (0, jnp.maximum(i - kt, 0))),
        ]
        out_spec = pl.BlockSpec((B, O, O), lambda i: (0, 0, 0))
        return pl.pallas_call(
            kernel,
            out_shape=jax.ShapeDtypeStruct((B, O, O), out_dtype),
            grid=grid,
            in_specs=in_specs,
            out_specs=out_spec,
            scratch_shapes=[pltpu.VMEM((B, C), jnp.float32),
                            pltpu.VMEM((B, 2 * R, O), jnp.float32)],
            compiler_params=pltpu.CompilerParams(
                dimension_semantics=("arbitrary",),
                vmem_limit_bytes=vmem_limit),
        )

    args = (x_flat, prep["wr"], prep["br"], prep["w_cat"], prep["b_cat"])
    try:
        return _build(single_buffer_const=True)(*args)
    except Exception:
        # Fallback for JAX versions where pipeline_mode / Buffered(1) is not
        # accepted on pallas_call BlockSpecs; genuine kernel errors re-raise.
        return _build(single_buffer_const=False)(*args)


# ------------------------ parameter initialization -------------------------- #

def init_params(key, num_token, hidden_dim, bottleneck_dim, output_size, rank):
    """Synthetic init mirroring the module's _init_weights (kaiming_uniform for
    fc_reduce, xavier_uniform for fc_a / fc_b, zero bias). Weights stored
    transposed: [in_features, out_features]."""
    D = num_token * hidden_dim
    OR = output_size * rank
    k1, k2, k3 = jax.random.split(key, 3)

    bound_r = math.sqrt(6.0 / D)                       # kaiming_uniform (relu)
    wr = jax.random.uniform(k1, (D, bottleneck_dim), jnp.float32,
                            -bound_r, bound_r)
    bound_ab = math.sqrt(6.0 / (bottleneck_dim + OR))  # xavier_uniform
    wa = jax.random.uniform(k2, (bottleneck_dim, OR), jnp.float32,
                            -bound_ab, bound_ab)
    wb = jax.random.uniform(k3, (bottleneck_dim, OR), jnp.float32,
                            -bound_ab, bound_ab)
    return {
        "wr": wr, "br": jnp.zeros((bottleneck_dim,), jnp.float32),
        "wa": wa, "ba": jnp.zeros((OR,), jnp.float32),
        "wb": wb, "bb": jnp.zeros((OR,), jnp.float32),
    }


# ------------------------------ references ---------------------------------- #

def reference_forward(x, params, output_size, rank):
    """Pure-f32 JAX reference mirroring the PyTorch forward (no bf16 cast)."""
    B = x.shape[0]
    x_flat = x.reshape(B, -1)
    z = jax.nn.relu(x_flat @ params["wr"] + params["br"])
    a = (z @ params["wa"] + params["ba"]).reshape(B, output_size, rank)
    b = (z @ params["wb"] + params["bb"]).reshape(B, rank, output_size)
    return jnp.einsum("bor,brp->bop", a, b)


def reference_forward_matched(x, params, output_size, rank):
    """Reference with the same bf16-input / f32-accumulate numerics and the
    same fused/permuted weight layout as the kernel."""
    B = x.shape[0]
    prep = prepare_params(params, output_size=output_size, rank=rank)
    xb = x.reshape(B, -1).astype(jnp.bfloat16)
    z = jnp.maximum(jnp.dot(xb, prep["wr"],
                            preferred_element_type=jnp.float32)
                    + prep["br"], 0.0)
    ab = jnp.dot(z.astype(jnp.bfloat16), prep["w_cat"],
                 preferred_element_type=jnp.float32) + prep["b_cat"]
    ro = rank * output_size
    at = ab[:, :ro].reshape(B, rank, output_size)
    bt = ab[:, ro:].reshape(B, rank, output_size)
    return jnp.einsum("bri,brj->bij", at, bt,
                      preferred_element_type=jnp.float32)


# --------------------------------- main -------------------------------------- #

if __name__ == "__main__":
    # Small shapes consistent with the module signature
    # (x: [batch, num_token, hidden_dim]).
    B, num_token, hidden_dim = 2, 8, 32
    bottleneck_dim, output_size, rank = 128, 128, 16

    key = jax.random.PRNGKey(0)
    kx, kp = jax.random.split(key)
    x = jax.random.normal(kx, (B, num_token, hidden_dim), jnp.float32)
    params = init_params(kp, num_token, hidden_dim, bottleneck_dim,
                         output_size, rank)

    # Demo-scale tiles chosen to exercise multi-tile K (D) and N (2*R*O)
    # weight streaming: 2 K-tiles + 2 N-tiles -> 4 grid steps.
    mask = mlp_mask_head_forward(x, params, output_size=output_size, rank=rank,
                                 tile_d=128, tile_n=2048)
    mask = jax.block_until_ready(mask)
    assert mask.shape == (B, output_size, output_size)

    # Tight check vs. a reference with matched (bf16 in / f32 acc) numerics.
    # (5e-3 headroom: K-tiled f32 accumulation order + the bf16 re-round of z
    #  can differ from the monolithic reference by a couple of bf16 ulps.)
    ref_m = reference_forward_matched(x, params, output_size, rank)
    np.testing.assert_allclose(np.asarray(mask), np.asarray(ref_m),
                               rtol=5e-3, atol=5e-3)

    # Loose sanity check vs. the pure-f32 PyTorch-equivalent reference
    # (difference is only bf16 input/weight rounding).
    ref_f32 = reference_forward(x, params, output_size, rank)
    np.testing.assert_allclose(np.asarray(mask), np.asarray(ref_f32),
                               rtol=1e-1, atol=1e-1)

    print("KERNEL_OK")
</pallas_src>

<mosaic_0001>
module attributes {stable_mosaic.version = 11 : i64} {
  func.func @_fused_mask_head_kernel(%arg0: i32, %arg1: memref<2x128xbf16, #tpu.memory_space<vmem>>, %arg2: memref<128x128xbf16, #tpu.memory_space<vmem>>, %arg3: memref<1x128xf32, #tpu.memory_space<vmem>>, %arg4: memref<128x2048xbf16, #tpu.memory_space<vmem>>, %arg5: memref<1x2048xf32, #tpu.memory_space<vmem>>, %arg6: memref<2x128x128xf32, #tpu.memory_space<vmem>>, %arg7: memref<2x128xf32, #tpu.memory_space<vmem>>, %arg8: memref<2x32x128xf32, #tpu.memory_space<vmem>>) attributes {dimension_semantics = [#tpu.dimension_semantics<arbitrary>], iteration_bounds = array<i64: 4>, scalar_prefetch = 0 : i64, scratch_operands = 2 : i64, tpu.core_type = #tpu.core_type<tc>, window_params = [{transform_indices = @transform_0, window_bounds = array<i64: 2, 128>}, {transform_indices = @transform_1, window_bounds = array<i64: 128, 128>}, {pipeline_mode = #tpu.pipeline_mode<synchronous>, transform_indices = @transform_2, window_bounds = array<i64: 1, 128>}, {transform_indices = @transform_3, window_bounds = array<i64: 128, 2048>}, {transform_indices = @transform_4, window_bounds = array<i64: 1, 2048>}, {pipeline_mode = #tpu.pipeline_mode<synchronous>, transform_indices = @transform_5, window_bounds = array<i64: 2, 128, 128>}]} {
    %c0_i32 = arith.constant 0 : i32
    %0 = arith.cmpi eq, %arg0, %c0_i32 : i32
    %1 = arith.extui %0 : i1 to i32
    %c0_i32_0 = arith.constant 0 : i32
    %2 = arith.cmpi ne, %1, %c0_i32_0 : i32
    scf.if %2 {
      %cst = arith.constant 0.000000e+00 : f32
      %15 = vector.broadcast %cst : f32 to vector<2x128xf32>
      %c0 = arith.constant 0 : index
      %c0_6 = arith.constant 0 : index
      %16 = vector.load %arg7[%c0, %c0_6] : memref<2x128xf32, #tpu.memory_space<vmem>>, vector<2x128xf32>
      tpu.vector_store %arg7[%c0, %c0_6], %15 {strides = array<i32>} : memref<2x128xf32, #tpu.memory_space<vmem>>, vector<2x128xf32>,
    } else {
    }
    %c2_i32 = arith.constant 2 : i32
    %3 = arith.cmpi slt, %arg0, %c2_i32 : i32
    %4 = arith.extui %3 : i1 to i32
    %c0_i32_1 = arith.constant 0 : i32
    %5 = arith.cmpi ne, %4, %c0_i32_1 : i32
    scf.if %5 {
      %c0 = arith.constant 0 : index
      %c0_6 = arith.constant 0 : index
      %15 = vector.load %arg7[%c0, %c0_6] : memref<2x128xf32, #tpu.memory_space<vmem>>, vector<2x128xf32>
      %c0_7 = arith.constant 0 : index
      %c0_8 = arith.constant 0 : index
      %16 = vector.load %arg1[%c0_7, %c0_8] : memref<2x128xbf16, #tpu.memory_space<vmem>>, vector<2x128xbf16>
      %c0_9 = arith.constant 0 : index
      %c0_10 = arith.constant 0 : index
      %17 = vector.load %arg2[%c0_9, %c0_10] : memref<128x128xbf16, #tpu.memory_space<vmem>>, vector<128x128xbf16>
      %cst = arith.constant dense<0.000000e+00> : vector<2x128xf32>
      %18 = tpu.matmul %16, %17, %cst {dimension_numbers = #tpu.dot_dimension_numbers<[1], [0], [0], [1], [0, 0, 1, 1], [], []>} : vector<2x128xbf16>, vector<128x128xbf16>, vector<2x128xf32> -> vector<2x128xf32>
      %19 = arith.addf %15, %18 : vector<2x128xf32>
      %c0_11 = arith.constant 0 : index
      %c0_12 = arith.constant 0 : index
      %20 = vector.load %arg7[%c0_11, %c0_12] : memref<2x128xf32, #tpu.memory_space<vmem>>, vector<2x128xf32>
      tpu.vector_store %arg7[%c0_11, %c0_12], %19 {strides = array<i32>} : memref<2x128xf32, #tpu.memory_space<vmem>>, vector<2x128xf32>,
    } else {
    }
    %c1_i32 = arith.constant 1 : i32
    %6 = arith.cmpi eq, %arg0, %c1_i32 : i32
    %7 = arith.extui %6 : i1 to i32
    %c0_i32_2 = arith.constant 0 : i32
    %8 = arith.cmpi ne, %7, %c0_i32_2 : i32
    scf.if %8 {
      %c0 = arith.constant 0 : index
      %c0_6 = arith.constant 0 : index
      %15 = vector.load %arg7[%c0, %c0_6] : memref<2x128xf32, #tpu.memory_space<vmem>>, vector<2x128xf32>
      %c0_7 = arith.constant 0 : index
      %c0_8 = arith.constant 0 : index
      %16 = vector.load %arg3[%c0_7, %c0_8] : memref<1x128xf32, #tpu.memory_space<vmem>>, vector<1x128xf32>
      %17 = vector.broadcast %16 : vector<1x128xf32> to vector<2x128xf32>
      %18 = arith.addf %15, %17 : vector<2x128xf32>
      %cst = arith.constant 0.000000e+00 : f32
      %19 = vector.broadcast %cst : f32 to vector<2x128xf32>
      %20 = arith.maximumf %18, %19 : vector<2x128xf32>
      %c0_9 = arith.constant 0 : index
      %c0_10 = arith.constant 0 : index
      %21 = vector.load %arg7[%c0_9, %c0_10] : memref<2x128xf32, #tpu.memory_space<vmem>>, vector<2x128xf32>
      tpu.vector_store %arg7[%c0_9, %c0_10], %20 {strides = array<i32>} : memref<2x128xf32, #tpu.memory_space<vmem>>, vector<2x128xf32>,
    } else {
    }
    %c2_i32_3 = arith.constant 2 : i32
    %9 = arith.cmpi sge, %arg0, %c2_i32_3 : i32
    %10 = arith.extui %9 : i1 to i32
    %c0_i32_4 = arith.constant 0 : i32
    %11 = arith.cmpi ne, %10, %c0_i32_4 : i32
    scf.if %11 {
      %c2_i32_6 = arith.constant 2 : i32
      %15 = arith.subi %arg0, %c2_i32_6 : i32
      %c0 = arith.constant 0 : index
      %c0_7 = arith.constant 0 : index
      %16 = vector.load %arg7[%c0, %c0_7] : memref<2x128xf32, #tpu.memory_space<vmem>>, vector<2x128xf32>
      %17 = arith.truncf %16 : vector<2x128xf32> to vector<2x128xbf16>
      %c0_8 = arith.constant 0 : index
      %c0_9 = arith.constant 0 : index
      %18 = vector.load %arg4[%c0_8, %c0_9] : memref<128x2048xbf16, #tpu.memory_space<vmem>>, vector<128x2048xbf16>
      %cst = arith.constant dense<0.000000e+00> : vector<2x2048xf32>
      %19 = tpu.matmul %17, %18, %cst {dimension_numbers = #tpu.dot_dimension_numbers<[1], [0], [0], [1], [0, 0, 1, 1], [], []>} : vector<2x128xbf16>, vector<128x2048xbf16>, vector<2x2048xf32> -> vector<2x2048xf32>
      %c0_10 = arith.constant 0 : index
      %c0_11 = arith.constant 0 : index
      %20 = vector.load %arg5[%c0_10, %c0_11] : memref<1x2048xf32, #tpu.memory_space<vmem>>, vector<1x2048xf32>
      %21 = vector.broadcast %20 : vector<1x2048xf32> to vector<2x2048xf32>
      %22 = arith.addf %19, %21 : vector<2x2048xf32>
      %23 = vector.shape_cast %22 : vector<2x2048xf32> to vector<2x16x128xf32>
      %c16_i32 = arith.constant 16 : i32
      %24 = arith.muli %15, %c16_i32 : i32
      %25 = tpu.assume_multiple %24, 16 : i32
      %c0_12 = arith.constant 0 : index
      %26 = arith.index_cast %25 : i32 to index
      %c0_13 = arith.constant 0 : index
      %27 = vector.load %arg8[%c0_12, %26, %c0_13] : memref<2x32x128xf32, #tpu.memory_space<vmem>>, vector<2x16x128xf32>
      tpu.vector_store %arg8[%c0_12, %26, %c0_13], %23 {strides = array<i32>} : memref<2x32x128xf32, #tpu.memory_space<vmem>>, vector<2x16x128xf32>,
    } else {
    }
    %c3_i32 = arith.constant 3 : i32
    %12 = arith.cmpi eq, %arg0, %c3_i32 : i32
    %13 = arith.extui %12 : i1 to i32
    %c0_i32_5 = arith.constant 0 : i32
    %14 = arith.cmpi ne, %13, %c0_i32_5 : i32
    scf.if %14 {
      %c0 = arith.constant 0 : index
      %c0_6 = arith.constant 0 : index
      %c0_7 = arith.constant 0 : index
      %15 = vector.load %arg8[%c0, %c0_6, %c0_7] : memref<2x32x128xf32, #tpu.memory_space<vmem>>, vector<1x16x128xf32>
      %16 = vector.shape_cast %15 : vector<1x16x128xf32> to vector<16x128xf32>
      %c0_8 = arith.constant 0 : index
      %c16 = arith.constant 16 : index
      %c0_9 = arith.constant 0 : index
      %17 = vector.load %arg8[%c0_8, %c16, %c0_9] : memref<2x32x128xf32, #tpu.memory_space<vmem>>, vector<1x16x128xf32>
      %18 = vector.shape_cast %17 : vector<1x16x128xf32> to vector<16x128xf32>
      %cst = arith.constant dense<0.000000e+00> : vector<128x128xf32>
      %19 = tpu.matmul %16, %18, %cst {dimension_numbers = #tpu.dot_dimension_numbers<[0], [0], [1], [1], [0, 1, 1, 1], [], []>} : vector<16x128xf32>, vector<16x128xf32>, vector<128x128xf32> -> vector<128x128xf32>
      %c0_10 = arith.constant 0 : index
      %c0_11 = arith.constant 0 : index
      %c0_12 = arith.constant 0 : index
      %20 = vector.load %arg6[%c0_10, %c0_11, %c0_12] : memref<2x128x128xf32, #tpu.memory_space<vmem>>, vector<1x128x128xf32>
      %21 = vector.shape_cast %20 : vector<1x128x128xf32> to vector<128x128xf32>
      %22 = vector.shape_cast %19 : vector<128x128xf32> to vector<1x128x128xf32>
      tpu.vector_store %arg6[%c0_10, %c0_11, %c0_12], %22 {strides = array<i32>} : memref<2x128x128xf32, #tpu.memory_space<vmem>>, vector<1x128x128xf32>,
      %c1 = arith.constant 1 : index
      %c0_13 = arith.constant 0 : index
      %c0_14 = arith.constant 0 : index
      %23 = vector.load %arg8[%c1, %c0_13, %c0_14] : memref<2x32x128xf32, #tpu.memory_space<vmem>>, vector<1x16x128xf32>
      %24 = vector.shape_cast %23 : vector<1x16x128xf32> to vector<16x128xf32>
      %c1_15 = arith.constant 1 : index
      %c16_16 = arith.constant 16 : index
      %c0_17 = arith.constant 0 : index
      %25 = vector.load %arg8[%c1_15, %c16_16, %c0_17] : memref<2x32x128xf32, #tpu.memory_space<vmem>>, vector<1x16x128xf32>
      %26 = vector.shape_cast %25 : vector<1x16x128xf32> to vector<16x128xf32>
      %cst_18 = arith.constant dense<0.000000e+00> : vector<128x128xf32>
      %27 = tpu.matmul %24, %26, %cst_18 {dimension_numbers = #tpu.dot_dimension_numbers<[0], [0], [1], [1], [0, 1, 1, 1], [], []>} : vector<16x128xf32>, vector<16x128xf32>, vector<128x128xf32> -> vector<128x128xf32>
      %c1_19 = arith.constant 1 : index
      %c0_20 = arith.constant 0 : index
      %c0_21 = arith.constant 0 : index
      %28 = vector.load %arg6[%c1_19, %c0_20, %c0_21] : memref<2x128x128xf32, #tpu.memory_space<vmem>>, vector<1x128x128xf32>
      %29 = vector.shape_cast %28 : vector<1x128x128xf32> to vector<128x128xf32>
      %30 = vector.shape_cast %27 : vector<128x128xf32> to vector<1x128x128xf32>
      tpu.vector_store %arg6[%c1_19, %c0_20, %c0_21], %30 {strides = array<i32>} : memref<2x128x128xf32, #tpu.memory_space<vmem>>, vector<1x128x128xf32>,
    } else {
    }
    return
  }
  func.func @transform_0(%arg0: i32) -> (i32, i32) {
    %c1_i32 = arith.constant 1 : i32
    %0 = arith.minsi %arg0, %c1_i32 : i32
    %c0_i32 = arith.constant 0 : i32
    %c0_i32_0 = arith.constant 0 : i32
    return %c0_i32, %0 : i32, i32
  }
  func.func @transform_1(%arg0: i32) -> (i32, i32) {
    %c1_i32 = arith.constant 1 : i32
    %0 = arith.minsi %arg0, %c1_i32 : i32
    %c0_i32 = arith.constant 0 : i32
    %c0_i32_0 = arith.constant 0 : i32
    return %0, %c0_i32 : i32, i32
  }
  func.func @transform_2(%arg0: i32) -> (i32, i32) {
    %c0_i32 = arith.constant 0 : i32
    %c0_i32_0 = arith.constant 0 : i32
    %c0_i32_1 = arith.constant 0 : i32
    return %c0_i32, %c0_i32_0 : i32, i32
  }
  func.func @transform_3(%arg0: i32) -> (i32, i32) {
    %c2_i32 = arith.constant 2 : i32
    %0 = arith.subi %arg0, %c2_i32 : i32
    %c0_i32 = arith.constant 0 : i32
    %1 = arith.maxsi %0, %c0_i32 : i32
    %c0_i32_0 = arith.constant 0 : i32
    %c0_i32_1 = arith.constant 0 : i32
    return %c0_i32_0, %1 : i32, i32
  }
  func.func @transform_4(%arg0: i32) -> (i32, i32) {
    %c2_i32 = arith.constant 2 : i32
    %0 = arith.subi %arg0, %c2_i32 : i32
    %c0_i32 = arith.constant 0 : i32
    %1 = arith.maxsi %0, %c0_i32 : i32
    %c0_i32_0 = arith.constant 0 : i32
    %c0_i32_1 = arith.constant 0 : i32
    return %c0_i32_0, %1 : i32, i32
  }
  func.func @transform_5(%arg0: i32) -> (i32, i32, i32) {
    %c0_i32 = arith.constant 0 : i32
    %c0_i32_0 = arith.constant 0 : i32
    %c0_i32_1 = arith.constant 0 : i32
    %c0_i32_2 = arith.constant 0 : i32
    return %c0_i32, %c0_i32_0, %c0_i32_1 : i32, i32, i32
  }
}

module attributes {stable_mosaic.version = 11 : i64} {
  func.func @_fused_mask_head_kernel(%arg0: i32, %arg1: memref<2x128xbf16, #tpu.memory_space<vmem>>, %arg2: memref<128x128xbf16, #tpu.memory_space<vmem>>, %arg3: memref<1x128xf32, #tpu.memory_space<vmem>>, %arg4: memref<128x2048xbf16, #tpu.memory_space<vmem>>, %arg5: memref<1x2048xf32, #tpu.memory_space<vmem>>, %arg6: memref<2x128x128xf32, #tpu.memory_space<vmem>>, %arg7: memref<2x128xf32, #tpu.memory_space<vmem>>, %arg8: memref<2x32x128xf32, #tpu.memory_space<vmem>>) attributes {dimension_semantics = [#tpu.dimension_semantics<arbitrary>], iteration_bounds = array<i64: 4>, scalar_prefetch = 0 : i64, scratch_operands = 2 : i64, tpu.core_type = #tpu.core_type<tc>, window_params = [{transform_indices = @transform_0, window_bounds = array<i64: 2, 128>}, {transform_indices = @transform_1, window_bounds = array<i64: 128, 128>}, {pipeline_mode = #tpu.pipeline_mode<synchronous>, transform_indices = @transform_2, window_bounds = array<i64: 1, 128>}, {transform_indices = @transform_3, window_bounds = array<i64: 128, 2048>}, {transform_indices = @transform_4, window_bounds = array<i64: 1, 2048>}, {pipeline_mode = #tpu.pipeline_mode<synchronous>, transform_indices = @transform_5, window_bounds = array<i64: 2, 128, 128>}]} {
    %c0_i32 = arith.constant 0 : i32
    %0 = arith.cmpi eq, %arg0, %c0_i32 : i32
    %1 = arith.extui %0 : i1 to i32
    %c0_i32_0 = arith.constant 0 : i32
    %2 = arith.cmpi ne, %1, %c0_i32_0 : i32
    scf.if %2 {
      %cst = arith.constant 0.000000e+00 : f32
      %15 = vector.broadcast %cst : f32 to vector<2x128xf32>
      %c0 = arith.constant 0 : index
      %c0_6 = arith.constant 0 : index
      %16 = vector.load %arg7[%c0, %c0_6] : memref<2x128xf32, #tpu.memory_space<vmem>>, vector<2x128xf32>
      tpu.vector_store %arg7[%c0, %c0_6], %15 {strides = array<i32>} : memref<2x128xf32, #tpu.memory_space<vmem>>, vector<2x128xf32>,
    } else {
    }
    %c2_i32 = arith.constant 2 : i32
    %3 = arith.cmpi slt, %arg0, %c2_i32 : i32
    %4 = arith.extui %3 : i1 to i32
    %c0_i32_1 = arith.constant 0 : i32
    %5 = arith.cmpi ne, %4, %c0_i32_1 : i32
    scf.if %5 {
      %c0 = arith.constant 0 : index
      %c0_6 = arith.constant 0 : index
      %15 = vector.load %arg7[%c0, %c0_6] : memref<2x128xf32, #tpu.memory_space<vmem>>, vector<2x128xf32>
      %c0_7 = arith.constant 0 : index
      %c0_8 = arith.constant 0 : index
      %16 = vector.load %arg1[%c0_7, %c0_8] : memref<2x128xbf16, #tpu.memory_space<vmem>>, vector<2x128xbf16>
      %c0_9 = arith.constant 0 : index
      %c0_10 = arith.constant 0 : index
      %17 = vector.load %arg2[%c0_9, %c0_10] : memref<128x128xbf16, #tpu.memory_space<vmem>>, vector<128x128xbf16>
      %cst = arith.constant dense<0.000000e+00> : vector<2x128xf32>
      %18 = tpu.matmul %16, %17, %cst {dimension_numbers = #tpu.dot_dimension_numbers<[1], [0], [0], [1], [0, 0, 1, 1], [], []>} : vector<2x128xbf16>, vector<128x128xbf16>, vector<2x128xf32> -> vector<2x128xf32>
      %19 = arith.addf %15, %18 : vector<2x128xf32>
      %c0_11 = arith.constant 0 : index
      %c0_12 = arith.constant 0 : index
      %20 = vector.load %arg7[%c0_11, %c0_12] : memref<2x128xf32, #tpu.memory_space<vmem>>, vector<2x128xf32>
      tpu.vector_store %arg7[%c0_11, %c0_12], %19 {strides = array<i32>} : memref<2x128xf32, #tpu.memory_space<vmem>>, vector<2x128xf32>,
    } else {
    }
    %c1_i32 = arith.constant 1 : i32
    %6 = arith.cmpi eq, %arg0, %c1_i32 : i32
    %7 = arith.extui %6 : i1 to i32
    %c0_i32_2 = arith.constant 0 : i32
    %8 = arith.cmpi ne, %7, %c0_i32_2 : i32
    scf.if %8 {
      %c0 = arith.constant 0 : index
      %c0_6 = arith.constant 0 : index
      %15 = vector.load %arg7[%c0, %c0_6] : memref<2x128xf32, #tpu.memory_space<vmem>>, vector<2x128xf32>
      %c0_7 = arith.constant 0 : index
      %c0_8 = arith.constant 0 : index
      %16 = vector.load %arg3[%c0_7, %c0_8] : memref<1x128xf32, #tpu.memory_space<vmem>>, vector<1x128xf32>
      %17 = vector.broadcast %16 : vector<1x128xf32> to vector<2x128xf32>
      %18 = arith.addf %15, %17 : vector<2x128xf32>
      %cst = arith.constant 0.000000e+00 : f32
      %19 = vector.broadcast %cst : f32 to vector<2x128xf32>
      %20 = arith.maximumf %18, %19 : vector<2x128xf32>
      %c0_9 = arith.constant 0 : index
      %c0_10 = arith.constant 0 : index
      %21 = vector.load %arg7[%c0_9, %c0_10] : memref<2x128xf32, #tpu.memory_space<vmem>>, vector<2x128xf32>
      tpu.vector_store %arg7[%c0_9, %c0_10], %20 {strides = array<i32>} : memref<2x128xf32, #tpu.memory_space<vmem>>, vector<2x128xf32>,
    } else {
    }
    %c2_i32_3 = arith.constant 2 : i32
    %9 = arith.cmpi sge, %arg0, %c2_i32_3 : i32
    %10 = arith.extui %9 : i1 to i32
    %c0_i32_4 = arith.constant 0 : i32
    %11 = arith.cmpi ne, %10, %c0_i32_4 : i32
    scf.if %11 {
      %c2_i32_6 = arith.constant 2 : i32
      %15 = arith.subi %arg0, %c2_i32_6 : i32
      %c0 = arith.constant 0 : index
      %c0_7 = arith.constant 0 : index
      %16 = vector.load %arg7[%c0, %c0_7] : memref<2x128xf32, #tpu.memory_space<vmem>>, vector<2x128xf32>
      %17 = arith.truncf %16 : vector<2x128xf32> to vector<2x128xbf16>
      %c0_8 = arith.constant 0 : index
      %c0_9 = arith.constant 0 : index
      %18 = vector.load %arg4[%c0_8, %c0_9] : memref<128x2048xbf16, #tpu.memory_space<vmem>>, vector<128x2048xbf16>
      %cst = arith.constant dense<0.000000e+00> : vector<2x2048xf32>
      %19 = tpu.matmul %17, %18, %cst {dimension_numbers = #tpu.dot_dimension_numbers<[1], [0], [0], [1], [0, 0, 1, 1], [], []>} : vector<2x128xbf16>, vector<128x2048xbf16>, vector<2x2048xf32> -> vector<2x2048xf32>
      %c0_10 = arith.constant 0 : index
      %c0_11 = arith.constant 0 : index
      %20 = vector.load %arg5[%c0_10, %c0_11] : memref<1x2048xf32, #tpu.memory_space<vmem>>, vector<1x2048xf32>
      %21 = vector.broadcast %20 : vector<1x2048xf32> to vector<2x2048xf32>
      %22 = arith.addf %19, %21 : vector<2x2048xf32>
      %23 = vector.shape_cast %22 : vector<2x2048xf32> to vector<2x16x128xf32>
      %c16_i32 = arith.constant 16 : i32
      %24 = arith.muli %15, %c16_i32 : i32
      %25 = tpu.assume_multiple %24, 16 : i32
      %c0_12 = arith.constant 0 : index
      %26 = arith.index_cast %25 : i32 to index
      %c0_13 = arith.constant 0 : index
      %27 = vector.load %arg8[%c0_12, %26, %c0_13] : memref<2x32x128xf32, #tpu.memory_space<vmem>>, vector<2x16x128xf32>
      tpu.vector_store %arg8[%c0_12, %26, %c0_13], %23 {strides = array<i32>} : memref<2x32x128xf32, #tpu.memory_space<vmem>>, vector<2x16x128xf32>,
    } else {
    }
    %c3_i32 = arith.constant 3 : i32
    %12 = arith.cmpi eq, %arg0, %c3_i32 : i32
    %13 = arith.extui %12 : i1 to i32
    %c0_i32_5 = arith.constant 0 : i32
    %14 = arith.cmpi ne, %13, %c0_i32_5 : i32
    scf.if %14 {
      %c0 = arith.constant 0 : index
      %c0_6 = arith.constant 0 : index
      %c0_7 = arith.constant 0 : index
      %15 = vector.load %arg8[%c0, %c0_6, %c0_7] : memref<2x32x128xf32, #tpu.memory_space<vmem>>, vector<1x16x128xf32>
      %16 = vector.shape_cast %15 : vector<1x16x128xf32> to vector<16x128xf32>
      %c0_8 = arith.constant 0 : index
      %c16 = arith.constant 16 : index
      %c0_9 = arith.constant 0 : index
      %17 = vector.load %arg8[%c0_8, %c16, %c0_9] : memref<2x32x128xf32, #tpu.memory_space<vmem>>, vector<1x16x128xf32>
      %18 = vector.shape_cast %17 : vector<1x16x128xf32> to vector<16x128xf32>
      %cst = arith.constant dense<0.000000e+00> : vector<128x128xf32>
      %19 = tpu.matmul %16, %18, %cst {dimension_numbers = #tpu.dot_dimension_numbers<[0], [0], [1], [1], [0, 1, 1, 1], [], []>} : vector<16x128xf32>, vector<16x128xf32>, vector<128x128xf32> -> vector<128x128xf32>
      %c0_10 = arith.constant 0 : index
      %c0_11 = arith.constant 0 : index
      %c0_12 = arith.constant 0 : index
      %20 = vector.load %arg6[%c0_10, %c0_11, %c0_12] : memref<2x128x128xf32, #tpu.memory_space<vmem>>, vector<1x128x128xf32>
      %21 = vector.shape_cast %20 : vector<1x128x128xf32> to vector<128x128xf32>
      %22 = vector.shape_cast %19 : vector<128x128xf32> to vector<1x128x128xf32>
      tpu.vector_store %arg6[%c0_10, %c0_11, %c0_12], %22 {strides = array<i32>} : memref<2x128x128xf32, #tpu.memory_space<vmem>>, vector<1x128x128xf32>,
      %c1 = arith.constant 1 : index
      %c0_13 = arith.constant 0 : index
      %c0_14 = arith.constant 0 : index
      %23 = vector.load %arg8[%c1, %c0_13, %c0_14] : memref<2x32x128xf32, #tpu.memory_space<vmem>>, vector<1x16x128xf32>
      %24 = vector.shape_cast %23 : vector<1x16x128xf32> to vector<16x128xf32>
      %c1_15 = arith.constant 1 : index
      %c16_16 = arith.constant 16 : index
      %c0_17 = arith.constant 0 : index
      %25 = vector.load %arg8[%c1_15, %c16_16, %c0_17] : memref<2x32x128xf32, #tpu.memory_space<vmem>>, vector<1x16x128xf32>
      %26 = vector.shape_cast %25 : vector<1x16x128xf32> to vector<16x128xf32>
      %cst_18 = arith.constant dense<0.000000e+00> : vector<128x128xf32>
      %27 = tpu.matmul %24, %26, %cst_18 {dimension_numbers = #tpu.dot_dimension_numbers<[0], [0], [1], [1], [0, 1, 1, 1], [], []>} : vector<16x128xf32>, vector<16x128xf32>, vector<128x128xf32> -> vector<128x128xf32>
      %c1_19 = arith.constant 1 : index
      %c0_20 = arith.constant 0 : index
      %c0_21 = arith.constant 0 : index
      %28 = vector.load %arg6[%c1_19, %c0_20, %c0_21] : memref<2x128x128xf32, #tpu.memory_space<vmem>>, vector<1x128x128xf32>
      %29 = vector.shape_cast %28 : vector<1x128x128xf32> to vector<128x128xf32>
      %30 = vector.shape_cast %27 : vector<128x128xf32> to vector<1x128x128xf32>
      tpu.vector_store %arg6[%c1_19, %c0_20, %c0_21], %30 {strides = array<i32>} : memref<2x128x128xf32, #tpu.memory_space<vmem>>, vector<1x128x128xf32>,
    } else {
    }
    return
  }
  func.func @transform_0(%arg0: i32) -> (i32, i32) {
    %c1_i32 = arith.constant 1 : i32
    %0 = arith.minsi %arg0, %c1_i32 : i32
    %c0_i32 = arith.constant 0 : i32
    %c0_i32_0 = arith.constant 0 : i32
    return %c0_i32, %0 : i32, i32
  }
  func.func @transform_1(%arg0: i32) -> (i32, i32) {
    %c1_i32 = arith.constant 1 : i32
    %0 = arith.minsi %arg0, %c1_i32 : i32
    %c0_i32 = arith.constant 0 : i32
    %c0_i32_0 = arith.constant 0 : i32
    return %0, %c0_i32 : i32, i32
  }
  func.func @transform_2(%arg0: i32) -> (i32, i32) {
    %c0_i32 = arith.constant 0 : i32
    %c0_i32_0 = arith.constant 0 : i32
    %c0_i32_1 = arith.constant 0 : i32
    return %c0_i32, %c0_i32_0 : i32, i32
  }
  func.func @transform_3(%arg0: i32) -> (i32, i32) {
    %c2_i32 = arith.constant 2 : i32
    %0 = arith.subi %arg0, %c2_i32 : i32
    %c0_i32 = arith.constant 0 : i32
    %1 = arith.maxsi %0, %c0_i32 : i32
    %c0_i32_0 = arith.constant 0 : i32
    %c0_i32_1 = arith.constant 0 : i32
    return %c0_i32_0, %1 : i32, i32
  }
  func.func @transform_4(%arg0: i32) -> (i32, i32) {
    %c2_i32 = arith.constant 2 : i32
    %0 = arith.subi %arg0, %c2_i32 : i32
    %c0_i32 = arith.constant 0 : i32
    %1 = arith.maxsi %0, %c0_i32 : i32
    %c0_i32_0 = arith.constant 0 : i32
    %c0_i32_1 = arith.constant 0 : i32
    return %c0_i32_0, %1 : i32, i32
  }
  func.func @transform_5(%arg0: i32) -> (i32, i32, i32) {
    %c0_i32 = arith.constant 0 : i32
    %c0_i32_0 = arith.constant 0 : i32
    %c0_i32_1 = arith.constant 0 : i32
    %c0_i32_2 = arith.constant 0 : i32
    return %c0_i32, %c0_i32_0, %c0_i32_1 : i32, i32, i32
  }
}

</mosaic_0001>

<llo_original>
// kernel: tpu_custom_call.1
$region0: #{tpu_custom_call.1}
  #allocation0 [shape = 'u32[]', space=smem, size = 0x4, offset = 0x4, fixed_abs, tag = 'smem constant byte address 0x4 - core index']
  #allocation1 [shape = 'u32[72,128]{1,0:T(1,128)}', space=vmem, size = 0x9000, scoped, tag = 'internal scratch']
  #allocation2 [shape = 'f32[2,128]{1,0:T(2,128)}', space=vmem, size = 0x400, scoped, tag = 'scratch operand']
  #allocation3 [shape = 'f32[2,32,128]{2,1,0:T(8,128)}', space=vmem, size = 0x8000, scoped, tag = 'scratch operand']
  %s0 = inlined_call_operand.hbm [shape: bf16[2,256], index: 0, kind: input, shape index: {}]
  %s1 = inlined_call_operand.hbm [shape: bf16[256,128], index: 1, kind: input, shape index: {}]
  %s2 = inlined_call_operand.vmem [shape: f32[1,128], index: 2, kind: input, shape index: {}]
  %s3 = inlined_call_operand.hbm [shape: bf16[128,4096], index: 3, kind: input, shape index: {}]
  %s4 = inlined_call_operand.hbm [shape: f32[1,4096], index: 4, kind: input, shape index: {}]
  %s5 = inlined_call_operand.hbm [shape: f32[2,128,128], index: 5, kind: output, shape index: {}]
  %s6 = sld [smem:[#allocation0]]
  $region89: #{tpu_custom_call.1} parent=0
    _
  %s8 = ssub.s32 1, %s6
  %s9 = scalar_select 0, %s8, %s6
  $region1: #{tpu_custom_call.1} parent=0
    #allocation4 [shape = 'u8[1024]{0}', space=vmem, size = 0x400, scoped, tag = 'input window, operand 0']
    #allocation5 [shape = 's32[2]{0}', space=sflag, size = 0x8, scoped, tag = 'scoped memory for tpu_custom_call.1']
    #allocation6 [shape = 's32[2]{0}', space=sflag, size = 0x8, scoped, tag = 'scoped memory for tpu_custom_call.1']
    #allocation7 [shape = 'u8[65536]{0}', space=vmem, size = 0x10000, scoped, tag = 'input window, operand 1']
    #allocation8 [shape = 's32[2]{0}', space=sflag, size = 0x8, scoped, tag = 'scoped memory for tpu_custom_call.1']
    #allocation9 [shape = 'u8[1048576]{0}', space=vmem, size = 0x100000, scoped, tag = 'input window, operand 3']
    #allocation10 [shape = 'u8[16384]{0}', space=vmem, size = 0x4000, scoped, tag = 'input window, operand 4']
    #allocation11 [shape = 's32[2]{0}', space=sflag, size = 0x8, scoped, tag = 'scoped memory for tpu_custom_call.1']
    #allocation12 [shape = 'u8[131072]{0}', space=vmem, size = 0x20000, scoped, tag = 'output window, operand 0, single buffered']
    %10 = vsyncpa [#allocation5], 0
    %s11 = scalar_lea.sflag [#allocation5], 1
    %12 = vsyncpa %s11, 0
    %13 = vsyncpa [#allocation8], 0
    %s14 = scalar_lea.sflag [#allocation8], 1
    %15 = vsyncpa %s14, 0
    %16 = vsyncpa [#allocation11], 0
    %s17 = scalar_lea.sflag [#allocation11], 1
    %18 = vsyncpa %s17, 0
    %19 = vsyncpa [#allocation6], 0
    loop: start=0, step=1, limit=6
    $region2: #{tpu_custom_call.1} parent=1 // loop_pre_header
      _
    $region3: #{tpu_custom_call.1} parent=1 // loop_header
      %s21 = sphi 0, %s25
      %p22 = scmp.ge.s32.totalorder %s21, 6
      %s35 = sphi 0, %s37
      %s38 = sphi 0, %s35
      %s39 = sphi 0, %s38
      %s55 = sphi 0, %s39
      %s65 = sphi 0, %s67
      %s68 = sphi 0, %s65
      %s69 = sphi 0, %s68
      %s85 = sphi 0, %s69
      %s89 = sphi 0, %s89
      %s91 = sphi 0, %s89
      %s92 = sphi 0, %s91
      %s106 = sphi 0, %s92
      %s118 = sphi 0, %s120
      %s121 = sphi 0, %s118
      %s122 = sphi 0, %s121
      %s138 = sphi 0, %s122
      %s150 = sphi 0, %s152
      %s153 = sphi 0, %s150
      %s154 = sphi 0, %s153
      %s170 = sphi 0, %s154
      %s174 = sphi 0, %s174
      %s176 = sphi 0, %s174
      %s177 = sphi 0, %s176
      %s191 = sphi 0, %s177
    $region4: #{tpu_custom_call.1} parent=1 // loop_header_branch
      %24 = sbr.rel (%p22) target = $region8
    $region5: #{tpu_custom_call.1} parent=1 // loop_body
      %s26 = ssub.s32 %s21, 1
      %s27 = ssub.s32 %s21, 2
      %s28 = sadd.s32 %s21, 1
      %p29 = scmp.lt.s32.totalorder %s21, 1
      %s30 = scalar_select %p29, %s21, 1
      %p31 = scmp.lt.s32.totalorder %s28, 1
      %s32 = scalar_select %p31, %s28, 1
      %s33 = ssub.s32 %s30, %s32
      %p34 = scmp.eq.s32.totalorder %s33, 0
      %s36 = sadd.s32 %s35, 1
      %s37 = scalar_select %p34, %s35, %s36
      %p40 = pneg %p34
      %p41 = scmp.eq.s32.totalorder %s21, 3
      %p42 = por %p40, %p41
      %p43 = scmp.ne.s32.totalorder %s35, %s38
      %p44 = scmp.eq.s32.totalorder %s21, 0
      %p45 = por %p43, %p44
      %p46 = scmp.ne.s32.totalorder %s35, %s38
      %p47 = scmp.eq.s32.totalorder %s26, 3
      %p48 = por %p46, %p47
      %p49 = scmp.ne.s32.totalorder %s38, %s39
      %p50 = scmp.eq.s32.totalorder %s26, 0
      %p51 = por %p49, %p50
      %p52 = scmp.ne.s32.totalorder %s38, %s39
      %p53 = scmp.eq.s32.totalorder %s27, 3
      %p54 = por %p52, %p53
      %p56 = scmp.ne.s32.totalorder %s39, %s55
      %p57 = scmp.eq.s32.totalorder %s27, 0
      %p58 = por %p56, %p57
      %p59 = scmp.lt.s32.totalorder %s21, 1
      %s60 = scalar_select %p59, %s21, 1
      %p61 = scmp.lt.s32.totalorder %s28, 1
      %s62 = scalar_select %p61, %s28, 1
      %s63 = ssub.s32 %s60, %s62
      %p64 = scmp.eq.s32.totalorder %s63, 0
      %s66 = sadd.s32 %s65, 1
      %s67 = scalar_select %p64, %s65, %s66
      %p70 = pneg %p64
      %p71 = scmp.eq.s32.totalorder %s21, 3
      %p72 = por %p70, %p71
      %p73 = scmp.ne.s32.totalorder %s65, %s68
      %p74 = scmp.eq.s32.totalorder %s21, 0
      %p75 = por %p73, %p74
      %p76 = scmp.ne.s32.totalorder %s65, %s68
      %p77 = scmp.eq.s32.totalorder %s26, 3
      %p78 = por %p76, %p77
      %p79 = scmp.ne.s32.totalorder %s68, %s69
      %p80 = scmp.eq.s32.totalorder %s26, 0
      %p81 = por %p79, %p80
      %p82 = scmp.ne.s32.totalorder %s68, %s69
      %p83 = scmp.eq.s32.totalorder %s27, 3
      %p84 = por %p82, %p83
      %p86 = scmp.ne.s32.totalorder %s69, %s85
      %p87 = scmp.eq.s32.totalorder %s27, 0
      %p88 = por %p86, %p87
      %s90 = sadd.s32 %s89, 1
      %p93 = scmp.eq.s32.totalorder %s21, 3
      %p94 = scmp.ne.s32.totalorder %s89, %s91
      %p95 = scmp.eq.s32.totalorder %s21, 0
      %p96 = por %p94, %p95
      %p97 = scmp.ne.s32.totalorder %s89, %s91
      %p98 = scmp.eq.s32.totalorder %s26, 3
      %p99 = por %p97, %p98
      %p100 = scmp.ne.s32.totalorder %s91, %s92
      %p101 = scmp.eq.s32.totalorder %s26, 0
      %p102 = por %p100, %p101
      %p103 = scmp.ne.s32.totalorder %s91, %s92
      %p104 = scmp.eq.s32.totalorder %s27, 3
      %p105 = por %p103, %p104
      %p107 = scmp.ne.s32.totalorder %s92, %s106
      %p108 = scmp.eq.s32.totalorder %s27, 0
      %p109 = por %p107, %p108
      %s110 = ssub.s32 %s21, 2
      %p111 = scmp.gt.s32.totalorder %s110, 0
      %s112 = scalar_select %p111, %s110, 0
      %s113 = ssub.s32 %s28, 2
      %p114 = scmp.gt.s32.totalorder %s113, 0
      %s115 = scalar_select %p114, %s113, 0
      %s116 = ssub.s32 %s112, %s115
      %p117 = scmp.eq.s32.totalorder %s116, 0
      %s119 = sadd.s32 %s118, 1
      %s120 = scalar_select %p117, %s118, %s119
      %p123 = pneg %p117
      %p124 = scmp.eq.s32.totalorder %s21, 3
      %p125 = por %p123, %p124
      %p126 = scmp.ne.s32.totalorder %s118, %s121
      %p127 = scmp.eq.s32.totalorder %s21, 0
      %p128 = por %p126, %p127
      %p129 = scmp.ne.s32.totalorder %s118, %s121
      %p130 = scmp.eq.s32.totalorder %s26, 3
      %p131 = por %p129, %p130
      %p132 = scmp.ne.s32.totalorder %s121, %s122
      %p133 = scmp.eq.s32.totalorder %s26, 0
      %p134 = por %p132, %p133
      %p135 = scmp.ne.s32.totalorder %s121, %s122
      %p136 = scmp.eq.s32.totalorder %s27, 3
      %p137 = por %p135, %p136
      %p139 = scmp.ne.s32.totalorder %s122, %s138
      %p140 = scmp.eq.s32.totalorder %s27, 0
      %p141 = por %p139, %p140
      %s142 = ssub.s32 %s21, 2
      %p143 = scmp.gt.s32.totalorder %s142, 0
      %s144 = scalar_select %p143, %s142, 0
      %s145 = ssub.s32 %s28, 2
      %p146 = scmp.gt.s32.totalorder %s145, 0
      %s147 = scalar_select %p146, %s145, 0
      %s148 = ssub.s32 %s144, %s147
      %p149 = scmp.eq.s32.totalorder %s148, 0
      %s151 = sadd.s32 %s150, 1
      %s152 = scalar_select %p149, %s150, %s151
      %p155 = pneg %p149
      %p156 = scmp.eq.s32.totalorder %s21, 3
      %p157 = por %p155, %p156
      %p158 = scmp.ne.s32.totalorder %s150, %s153
      %p159 = scmp.eq.s32.totalorder %s21, 0
      %p160 = por %p158, %p159
      %p161 = scmp.ne.s32.totalorder %s150, %s153
      %p162 = scmp.eq.s32.totalorder %s26, 3
      %p163 = por %p161, %p162
      %p164 = scmp.ne.s32.totalorder %s153, %s154
      %p165 = scmp.eq.s32.totalorder %s26, 0
      %p166 = por %p164, %p165
      %p167 = scmp.ne.s32.totalorder %s153, %s154
      %p168 = scmp.eq.s32.totalorder %s27, 3
      %p169 = por %p167, %p168
      %p171 = scmp.ne.s32.totalorder %s154, %s170
      %p172 = scmp.eq.s32.totalorder %s27, 0
      %p173 = por %p171, %p172
      %s175 = sadd.s32 %s174, 1
      %p178 = scmp.eq.s32.totalorder %s21, 3
      %p179 = scmp.ne.s32.totalorder %s174, %s176
      %p180 = scmp.eq.s32.totalorder %s21, 0
      %p181 = por %p179, %p180
      %p182 = scmp.ne.s32.totalorder %s174, %s176
      %p183 = scmp.eq.s32.totalorder %s26, 3
      %p184 = por %p182, %p183
      %p185 = scmp.ne.s32.totalorder %s176, %s177
      %p186 = scmp.eq.s32.totalorder %s26, 0
      %p187 = por %p185, %p186
      %p188 = scmp.ne.s32.totalorder %s176, %s177
      %p189 = scmp.eq.s32.totalorder %s27, 3
      %p190 = por %p188, %p189
      %p192 = scmp.ne.s32.totalorder %s177, %s191
      %p193 = scmp.eq.s32.totalorder %s27, 0
      %p194 = por %p192, %p193
      %p195 = scmp.le.s32.totalorder 1, %s21
      %p196 = scmp.lt.s32.totalorder %s21, 5
      %p197 = pnand %p195, %p196
      %p198 = pneg %p197
      // Predicated region
      $region9: #{tpu_custom_call.1} parent=5 // pred_check
        _
      $region10: #{tpu_custom_call.1} parent=5 // pred_check_branch
        %200 = sbr.rel (%p197) target = $region12
      $region11: #{tpu_custom_call.1} parent=5 // pred_region
        %s201 = ssub.s32 %s21, 1
        // Predicated region
        $region13: #{tpu_custom_call.1} parent=11 // pred_check
          %p202 = pneg %p102
        $region14: #{tpu_custom_call.1} parent=11 // pred_check_branch
          %204 = sbr.rel (%p202) target = $region16
        $region15: #{tpu_custom_call.1} parent=11 // pred_region
          _
        $region16: #{tpu_custom_call.1} parent=11 // pred_fallthru
          _
      $region12: #{tpu_custom_call.1} parent=5 // pred_fallthru
        _
      %p205 = scmp.lt.s32.totalorder %s21, 4
      // Predicated region
      $region17: #{tpu_custom_call.1} parent=5 // pred_check
        %p206 = pneg %p205
      $region18: #{tpu_custom_call.1} parent=5 // pred_check_branch
        %208 = sbr.rel (%p206) target = $region20
      $region19: #{tpu_custom_call.1} parent=5 // pred_region
        // Predicated region
        $region21: #{tpu_custom_call.1} parent=19 // pred_check
          %p209 = pneg %p45
        $region22: #{tpu_custom_call.1} parent=19 // pred_check_branch
          %211 = sbr.rel (%p209) target = $region24
        $region23: #{tpu_custom_call.1} parent=19 // pred_region
          %s212 = sand.u32 %s35, 1
          %s213 = scalar_lea.sflag [#allocation5], %s212
          %s214 = sand.u32 %s35, 1
          %s215 = scalar_lea.vmem [#allocation4], %s214
          %p216 = scmp.lt.s32.totalorder %s21, 1
          %s217 = scalar_select %p216, %s21, 1
          %219 = vsyncadd %s213, 0
          %s220 = scalar_lea.hbm %s0, %s217
          %s222 = sshll.u32 %s220, 4
          %s223 = int_to_ptr.hbm [resolvable:$true] %s222
          %s224 = sshll.u32 %s215, 4
          %s225 = int_to_ptr.vmem [resolvable:$true] %s224
          %227 = dma.hbm_to_vmem [thread:$0]  %s223, 16, %s225, %s213
        $region24: #{tpu_custom_call.1} parent=19 // pred_fallthru
          _
        // Predicated region
        $region25: #{tpu_custom_call.1} parent=19 // pred_check
          %p228 = pneg %p75
        $region26: #{tpu_custom_call.1} parent=19 // pred_check_branch
          %230 = sbr.rel (%p228) target = $region28
        $region27: #{tpu_custom_call.1} parent=19 // pred_region
          %s231 = sand.u32 %s21, 1
          %s232 = scalar_lea.sflag [#allocation8], %s231
          %s233 = sand.u32 %s65, 1
          %s234 = smul.addr %s233, 64
          %s235 = scalar_lea.vmem [#allocation7], %s234
          %p236 = scmp.lt.s32.totalorder %s21, 1
          %s237 = scalar_select %p236, %s21, 1
          %s238 = smul.u32 16, %s237
          %240 = vsyncadd %s232, 0
          %s241 = smul.addr %s238, 4
          %s242 = scalar_lea.hbm %s1, %s241
          %s243 = sshll.u32 %s242, 4
          %s244 = int_to_ptr.hbm [resolvable:$true] %s243
          %s245 = sshll.u32 %s235, 4
          %s246 = int_to_ptr.vmem [resolvable:$true] %s245
          %251 = dma.hbm_to_vmem [thread:$0]  %s244, 1024, %s246, %s232, 64, 64, 4
        $region28: #{tpu_custom_call.1} parent=19 // pred_fallthru
          _
        // Predicated region
        $region29: #{tpu_custom_call.1} parent=19 // pred_check
          %p252 = pneg %p128
        $region30: #{tpu_custom_call.1} parent=19 // pred_check_branch
          %254 = sbr.rel (%p252) target = $region32
        $region31: #{tpu_custom_call.1} parent=19 // pred_region
          %s255 = sand.u32 %s21, 1
          %s256 = scalar_lea.sflag [#allocation8], %s255
          %s257 = sand.u32 %s118, 1
          %s258 = smul.addr %s257, 1024
          %s259 = scalar_lea.vmem [#allocation9], %s258
          %s260 = ssub.s32 %s21, 2
          %p261 = scmp.gt.s32.totalorder %s260, 0
          %s262 = scalar_select %p261, %s260, 0
          %s263 = smul.u32 16, %s262
          %265 = vsyncadd %s256, 0
          %s266 = smul.addr %s263, 4
          %s267 = scalar_lea.hbm %s3, %s266
          %s268 = sshll.u32 %s267, 4
          %s269 = int_to_ptr.hbm [resolvable:$true] %s268
          %s270 = sshll.u32 %s259, 4
          %s271 = int_to_ptr.vmem [resolvable:$true] %s270
          %276 = dma.hbm_to_vmem [thread:$0]  %s269, 16384, %s271, %s256, 2048, 1024, 64
        $region32: #{tpu_custom_call.1} parent=19 // pred_fallthru
          _
        // Predicated region
        $region33: #{tpu_custom_call.1} parent=19 // pred_check
          %p277 = pneg %p160
        $region34: #{tpu_custom_call.1} parent=19 // pred_check_branch
          %279 = sbr.rel (%p277) target = $region36
        $region35: #{tpu_custom_call.1} parent=19 // pred_region
          %s280 = sand.u32 %s150, 1
          %s281 = scalar_lea.sflag [#allocation11], %s280
          %s282 = sand.u32 %s150, 1
          %s283 = smul.addr %s282, 16
          %s284 = scalar_lea.vmem [#allocation10], %s283
          %s285 = ssub.s32 %s21, 2
          %p286 = scmp.gt.s32.totalorder %s285, 0
          %s287 = scalar_select %p286, %s285, 0
          %s288 = smul.u32 16, %s287
          %290 = vsyncadd %s281, 0
          %s291 = scalar_lea.hbm %s4, %s288
          %s293 = sshll.u32 %s291, 4
          %s294 = int_to_ptr.hbm [resolvable:$true] %s293
          %s295 = sshll.u32 %s284, 4
          %s296 = int_to_ptr.vmem [resolvable:$true] %s295
          %298 = dma.hbm_to_vmem [thread:$0]  %s294, 256, %s296, %s281
        $region36: #{tpu_custom_call.1} parent=19 // pred_fallthru
          _
      $region20: #{tpu_custom_call.1} parent=5 // pred_fallthru
        _
      %p299 = scmp.le.s32.totalorder 1, %s21
      %p300 = scmp.lt.s32.totalorder %s21, 5
      %p301 = pnand %p299, %p300
      %p302 = pneg %p301
      // Predicated region
      $region37: #{tpu_custom_call.1} parent=5 // pred_check
        _
      $region38: #{tpu_custom_call.1} parent=5 // pred_check_branch
        %304 = sbr.rel (%p301) target = $region40
      $region39: #{tpu_custom_call.1} parent=5 // pred_region
        %s305 = ssub.s32 %s21, 1
        %s306 = sand.u32 %s38, 1
        %s307 = scalar_lea.sflag [#allocation5], %s306
        %s308 = sand.u32 %s38, 1
        %s309 = scalar_lea.vmem [#allocation4], %s308
        // Predicated region
        $region41: #{tpu_custom_call.1} parent=39 // pred_check
          %p310 = pneg %p51
        $region42: #{tpu_custom_call.1} parent=39 // pred_check_branch
          %312 = sbr.rel (%p310) target = $region44
        $region43: #{tpu_custom_call.1} parent=39 // pred_region
          %314 = dma.done %s307, 16
        $region44: #{tpu_custom_call.1} parent=39 // pred_fallthru
          _
        %s315 = sand.u32 %s26, 1
        %s316 = scalar_lea.sflag [#allocation8], %s315
        %s317 = sand.u32 %s68, 1
        %s318 = smul.addr %s317, 64
        %s319 = scalar_lea.vmem [#allocation7], %s318
        // Predicated region
        $region45: #{tpu_custom_call.1} parent=39 // pred_check
          %p320 = pneg %p81
        $region46: #{tpu_custom_call.1} parent=39 // pred_check_branch
          %322 = sbr.rel (%p320) target = $region48
        $region47: #{tpu_custom_call.1} parent=39 // pred_region
          %324 = dma.done %s316, 1024
        $region48: #{tpu_custom_call.1} parent=39 // pred_fallthru
          _
        %s325 = sand.u32 %s26, 1
        %s326 = scalar_lea.sflag [#allocation8], %s325
        %s327 = sand.u32 %s121, 1
        %s328 = smul.addr %s327, 1024
        %s329 = scalar_lea.vmem [#allocation9], %s328
        // Predicated region
        $region49: #{tpu_custom_call.1} parent=39 // pred_check
          %p330 = pneg %p134
        $region50: #{tpu_custom_call.1} parent=39 // pred_check_branch
          %332 = sbr.rel (%p330) target = $region52
        $region51: #{tpu_custom_call.1} parent=39 // pred_region
          %334 = dma.done %s326, 16384
        $region52: #{tpu_custom_call.1} parent=39 // pred_fallthru
          _
        %s335 = sand.u32 %s153, 1
        %s336 = scalar_lea.sflag [#allocation11], %s335
        %s337 = sand.u32 %s153, 1
        %s338 = smul.addr %s337, 16
        %s339 = scalar_lea.vmem [#allocation10], %s338
        // Predicated region
        $region53: #{tpu_custom_call.1} parent=39 // pred_check
          %p340 = pneg %p166
        $region54: #{tpu_custom_call.1} parent=39 // pred_check_branch
          %342 = sbr.rel (%p340) target = $region56
        $region55: #{tpu_custom_call.1} parent=39 // pred_region
          %344 = dma.done %s336, 256
        $region56: #{tpu_custom_call.1} parent=39 // pred_fallthru
          _
        %s345 = sand.u32 %s38, 1
        %s346 = scalar_lea.sflag [#allocation5], %s345
        %s347 = sand.u32 %s38, 1
        %s348 = scalar_lea.vmem [#allocation4], %s347
        %p349 = pneg %p51
        %p350 = pneg %p48
        %s351 = sand.u32 %s26, 1
        %s352 = scalar_lea.sflag [#allocation8], %s351
        %s353 = sand.u32 %s68, 1
        %s354 = smul.addr %s353, 64
        %s355 = scalar_lea.vmem [#allocation7], %s354
        %p356 = pneg %p81
        %p357 = pneg %p78
        %p358 = pneg %p102
        %p359 = pneg %p99
        %s360 = sand.u32 %s26, 1
        %s361 = scalar_lea.sflag [#allocation8], %s360
        %s362 = sand.u32 %s121, 1
        %s363 = smul.addr %s362, 1024
        %s364 = scalar_lea.vmem [#allocation9], %s363
        %p365 = pneg %p134
        %p366 = pneg %p131
        %s367 = sand.u32 %s153, 1
        %s368 = scalar_lea.sflag [#allocation11], %s367
        %s369 = sand.u32 %s153, 1
        %s370 = smul.addr %s369, 16
        %s371 = scalar_lea.vmem [#allocation10], %s370
        %p372 = pneg %p166
        %p373 = pneg %p163
        %p374 = pneg %p187
        %p375 = pneg %p184
        %p376 = scmp.lt.s32.totalorder %s26, 1
        %s377 = scalar_select %p376, %s26, 1
        %p378 = scmp.lt.s32.totalorder %s26, 1
        %s379 = scalar_select %p378, %s26, 1
        %s380 = smul.u32 16, %s379
        %s381 = ssub.s32 %s26, 2
        %p382 = scmp.gt.s32.totalorder %s381, 0
        %s383 = scalar_select %p382, %s381, 0
        %s384 = smul.u32 16, %s383
        %s385 = ssub.s32 %s26, 2
        %p386 = scmp.gt.s32.totalorder %s385, 0
        %s387 = scalar_select %p386, %s385, 0
        %s388 = smul.u32 16, %s387
        %p389 = scmp.eq.s32.totalorder %s26, 0
        // Predicated region
        $region57: #{tpu_custom_call.1} parent=39 // pred_check
          %p390 = pneg %p389
        $region58: #{tpu_custom_call.1} parent=39 // pred_check_branch
          %392 = sbr.rel (%p390) target = $region60
        $region59: #{tpu_custom_call.1} parent=39 // pred_region
          %393 = vst [vmem:[#allocation2] sm:$0x3] 0.0
        $region60: #{tpu_custom_call.1} parent=39 // pred_fallthru
          _
        %p394 = scmp.lt.s32.totalorder %s26, 2
        // Predicated region
        $region61: #{tpu_custom_call.1} parent=39 // pred_check
          %p395 = pneg %p394
        $region62: #{tpu_custom_call.1} parent=39 // pred_check_branch
          %397 = sbr.rel (%p395) target = $region64
        $region63: #{tpu_custom_call.1} parent=39 // pred_region
          %v398 = vld [vmem:[#allocation2] sm:$0x3]
          %v399 = vld [vmem:[%s309] sm:$0x1]
          %v400 = vld [vmem:[%s319] sm:$0xf]
          %v401 = vld [vmem:[%s319 + $0x4] sm:$0xf]
          %v402 = vld [vmem:[%s319 + $0x8] sm:$0xf]
          %v403 = vld [vmem:[%s319 + $0xc] sm:$0xf]
          %v404 = vld [vmem:[%s319 + $0x10] sm:$0xf]
          %v405 = vld [vmem:[%s319 + $0x14] sm:$0xf]
          %v406 = vld [vmem:[%s319 + $0x18] sm:$0xf]
          %v407 = vld [vmem:[%s319 + $0x1c] sm:$0xf]
          %v408 = vld [vmem:[%s319 + $0x20] sm:$0xf]
          %v409 = vld [vmem:[%s319 + $0x24] sm:$0xf]
          %v410 = vld [vmem:[%s319 + $0x28] sm:$0xf]
          %v411 = vld [vmem:[%s319 + $0x2c] sm:$0xf]
          %v412 = vld [vmem:[%s319 + $0x30] sm:$0xf]
          %v413 = vld [vmem:[%s319 + $0x34] sm:$0xf]
          %v414 = vld [vmem:[%s319 + $0x38] sm:$0xf]
          %v415 = vld [vmem:[%s319 + $0x3c] sm:$0xf]
          %v432 = vunpack.c.l.b16 %v400
          %v433 = vunpack.c.l.b16 %v401
          %v434 = vunpack.c.l.b16 %v402
          %v435 = vunpack.c.l.b16 %v403
          %v436 = vunpack.c.l.b16 %v404
          %v437 = vunpack.c.l.b16 %v405
          %v438 = vunpack.c.l.b16 %v406
          %v439 = vunpack.c.l.b16 %v407
          %v440 = vunpack.c.l.b16 %v408
          %v441 = vunpack.c.l.b16 %v409
          %v442 = vunpack.c.l.b16 %v410
          %v443 = vunpack.c.l.b16 %v411
          %v444 = vunpack.c.l.b16 %v412
          %v445 = vunpack.c.l.b16 %v413
          %v446 = vunpack.c.l.b16 %v414
          %v447 = vunpack.c.l.b16 %v415
          %v448 = vpack.c.b16 %v433, %v432
          %v449 = vpack.c.b16 %v435, %v434
          %v450 = vpack.c.b16 %v437, %v436
          %v451 = vpack.c.b16 %v439, %v438
          %v452 = vpack.c.b16 %v441, %v440
          %v453 = vpack.c.b16 %v443, %v442
          %v454 = vpack.c.b16 %v445, %v444
          %v455 = vpack.c.b16 %v447, %v446
          %464 = vmatpush.bf16.msra.mxu0 %v455
          %465 = vmatpush.bf16.msra.mxu0 %v454
          %466 = vmatpush.bf16.msra.mxu0 %v453
          %467 = vmatpush.bf16.msra.mxu0 %v452
          %468 = vmatpush.bf16.msra.mxu0 %v451
          %469 = vmatpush.bf16.msra.mxu0 %v450
          %470 = vmatpush.bf16.msra.mxu0 %v449
          %471 = vmatpush.bf16.msra.mxu0 %v448
          %472 = vmatmul.bf16.gmra.mxu0 %v399
          %v473 = vpop.f32.mrf.mxu0
          %v474 = vadd.f32 0.0, %v473
          %v475 = vpop.f32.mrf.mxu0
          %476 = vdwg.mxu0
          %v477 = vadd.f32 %v398, %v474
          %478 = vst [vmem:[#allocation2] sm:$0x3] %v477
        $region64: #{tpu_custom_call.1} parent=39 // pred_fallthru
          _
        %p479 = scmp.eq.s32.totalorder %s26, 1
        // Predicated region
        $region65: #{tpu_custom_call.1} parent=39 // pred_check
          %p480 = pneg %p479
        $region66: #{tpu_custom_call.1} parent=39 // pred_check_branch
          %482 = sbr.rel (%p480) target = $region68
        $region67: #{tpu_custom_call.1} parent=39 // pred_region
          %v483 = vld [vmem:[#allocation2] sm:$0x3]
          %v484 = vld [vmem:[%s2] sm:$0x1]
          %v486 = vperm.slane %v484, 0
          %v488 = vadd.f32 %v483, %v486
          %v489 = vmax.f32 %v488, 0.0
          %490 = vst [vmem:[#allocation2] sm:$0x3] %v489
        $region68: #{tpu_custom_call.1} parent=39 // pred_fallthru
          _
        %p491 = scmp.ge.s32.totalorder %s26, 2
        // Predicated region
        $region69: #{tpu_custom_call.1} parent=39 // pred_check
          %p492 = pneg %p491
        $region70: #{tpu_custom_call.1} parent=39 // pred_check_branch
          %494 = sbr.rel (%p492) target = $region72
        $region71: #{tpu_custom_call.1} parent=39 // pred_region
          %s495 = ssub.s32 %s26, 2
          %v496 = vld [vmem:[#allocation2] sm:$0x3]
          %v497 = vpack.c.bf16 %v496, %v496
          %v498 = vld [vmem:[%s329] sm:$0xff]
          %v499 = vld [vmem:[%s329 + $0x8] sm:$0xff]
          %v500 = vld [vmem:[%s329 + $0x10] sm:$0xff]
          %v501 = vld [vmem:[%s329 + $0x18] sm:$0xff]
          %v502 = vld [vmem:[%s329 + $0x20] sm:$0xff]
          %v503 = vld [vmem:[%s329 + $0x28] sm:$0xff]
          %v504 = vld [vmem:[%s329 + $0x30] sm:$0xff]
          %v505 = vld [vmem:[%s329 + $0x38] sm:$0xff]
          %v506 = vld [vmem:[%s329 + $0x40] sm:$0xff]
          %v507 = vld [vmem:[%s329 + $0x48] sm:$0xff]
          %v508 = vld [vmem:[%s329 + $0x50] sm:$0xff]
          %v509 = vld [vmem:[%s329 + $0x58] sm:$0xff]
          %v510 = vld [vmem:[%s329 + $0x60] sm:$0xff]
          %v511 = vld [vmem:[%s329 + $0x68] sm:$0xff]
          %v512 = vld [vmem:[%s329 + $0x70] sm:$0xff]
          %v513 = vld [vmem:[%s329 + $0x78] sm:$0xff]
          %v514 = vld [vmem:[%s329 + $0x80] sm:$0xff]
          %v515 = vld [vmem:[%s329 + $0x88] sm:$0xff]
          %v516 = vld [vmem:[%s329 + $0x90] sm:$0xff]
          %v517 = vld [vmem:[%s329 + $0x98] sm:$0xff]
          %v518 = vld [vmem:[%s329 + $0xa0] sm:$0xff]
          %v519 = vld [vmem:[%s329 + $0xa8] sm:$0xff]
          %v520 = vld [vmem:[%s329 + $0xb0] sm:$0xff]
          %v521 = vld [vmem:[%s329 + $0xb8] sm:$0xff]
          %v522 = vld [vmem:[%s329 + $0xc0] sm:$0xff]
          %v523 = vld [vmem:[%s329 + $0xc8] sm:$0xff]
          %v524 = vld [vmem:[%s329 + $0xd0] sm:$0xff]
          %v525 = vld [vmem:[%s329 + $0xd8] sm:$0xff]
          %v526 = vld [vmem:[%s329 + $0xe0] sm:$0xff]
          %v527 = vld [vmem:[%s329 + $0xe8] sm:$0xff]
          %v528 = vld [vmem:[%s329 + $0xf0] sm:$0xff]
          %v529 = vld [vmem:[%s329 + $0xf8] sm:$0xff]
          %v530 = vld [vmem:[%s329 + $0x100] sm:$0xff]
          %v531 = vld [vmem:[%s329 + $0x108] sm:$0xff]
          %v532 = vld [vmem:[%s329 + $0x110] sm:$0xff]
          %v533 = vld [vmem:[%s329 + $0x118] sm:$0xff]
          %v534 = vld [vmem:[%s329 + $0x120] sm:$0xff]
          %v535 = vld [vmem:[%s329 + $0x128] sm:$0xff]
          %v536 = vld [vmem:[%s329 + $0x130] sm:$0xff]
          %v537 = vld [vmem:[%s329 + $0x138] sm:$0xff]
          %v538 = vld [vmem:[%s329 + $0x140] sm:$0xff]
          %v539 = vld [vmem:[%s329 + $0x148] sm:$0xff]
          %v540 = vld [vmem:[%s329 + $0x150] sm:$0xff]
          %v541 = vld [vmem:[%s329 + $0x158] sm:$0xff]
          %v542 = vld [vmem:[%s329 + $0x160] sm:$0xff]
          %v543 = vld [vmem:[%s329 + $0x168] sm:$0xff]
          %v544 = vld [vmem:[%s329 + $0x170] sm:$0xff]
          %v545 = vld [vmem:[%s329 + $0x178] sm:$0xff]
          %v546 = vld [vmem:[%s329 + $0x180] sm:$0xff]
          %v547 = vld [vmem:[%s329 + $0x188] sm:$0xff]
          %v548 = vld [vmem:[%s329 + $0x190] sm:$0xff]
          %v549 = vld [vmem:[%s329 + $0x198] sm:$0xff]
          %v550 = vld [vmem:[%s329 + $0x1a0] sm:$0xff]
          %v551 = vld [vmem:[%s329 + $0x1a8] sm:$0xff]
          %v552 = vld [vmem:[%s329 + $0x1b0] sm:$0xff]
          %v553 = vld [vmem:[%s329 + $0x1b8] sm:$0xff]
          %v554 = vld [vmem:[%s329 + $0x1c0] sm:$0xff]
          %v555 = vld [vmem:[%s329 + $0x1c8] sm:$0xff]
          %v556 = vld [vmem:[%s329 + $0x1d0] sm:$0xff]
          %v557 = vld [vmem:[%s329 + $0x1d8] sm:$0xff]
          %v558 = vld [vmem:[%s329 + $0x1e0] sm:$0xff]
          %v559 = vld [vmem:[%s329 + $0x1e8] sm:$0xff]
          %v560 = vld [vmem:[%s329 + $0x1f0] sm:$0xff]
          %v561 = vld [vmem:[%s329 + $0x1f8] sm:$0xff]
          %v562 = vld [vmem:[%s329 + $0x200] sm:$0xff]
          %v563 = vld [vmem:[%s329 + $0x208] sm:$0xff]
          %v564 = vld [vmem:[%s329 + $0x210] sm:$0xff]
          %v565 = vld [vmem:[%s329 + $0x218] sm:$0xff]
          %v566 = vld [vmem:[%s329 + $0x220] sm:$0xff]
          %v567 = vld [vmem:[%s329 + $0x228] sm:$0xff]
          %v568 = vld [vmem:[%s329 + $0x230] sm:$0xff]
          %v569 = vld [vmem:[%s329 + $0x238] sm:$0xff]
          %v570 = vld [vmem:[%s329 + $0x240] sm:$0xff]
          %v571 = vld [vmem:[%s329 + $0x248] sm:$0xff]
          %v572 = vld [vmem:[%s329 + $0x250] sm:$0xff]
          %v573 = vld [vmem:[%s329 + $0x258] sm:$0xff]
          %v574 = vld [vmem:[%s329 + $0x260] sm:$0xff]
          %v575 = vld [vmem:[%s329 + $0x268] sm:$0xff]
          %v576 = vld [vmem:[%s329 + $0x270] sm:$0xff]
          %v577 = vld [vmem:[%s329 + $0x278] sm:$0xff]
          %v578 = vld [vmem:[%s329 + $0x280] sm:$0xff]
          %v579 = vld [vmem:[%s329 + $0x288] sm:$0xff]
          %v580 = vld [vmem:[%s329 + $0x290] sm:$0xff]
          %v581 = vld [vmem:[%s329 + $0x298] sm:$0xff]
          %v582 = vld [vmem:[%s329 + $0x2a0] sm:$0xff]
          %v583 = vld [vmem:[%s329 + $0x2a8] sm:$0xff]
          %v584 = vld [vmem:[%s329 + $0x2b0] sm:$0xff]
          %v585 = vld [vmem:[%s329 + $0x2b8] sm:$0xff]
          %v586 = vld [vmem:[%s329 + $0x2c0] sm:$0xff]
          %v587 = vld [vmem:[%s329 + $0x2c8] sm:$0xff]
          %v588 = vld [vmem:[%s329 + $0x2d0] sm:$0xff]
          %v589 = vld [vmem:[%s329 + $0x2d8] sm:$0xff]
          %v590 = vld [vmem:[%s329 + $0x2e0] sm:$0xff]
          %v591 = vld [vmem:[%s329 + $0x2e8] sm:$0xff]
          %v592 = vld [vmem:[%s329 + $0x2f0] sm:$0xff]
          %v593 = vld [vmem:[%s329 + $0x2f8] sm:$0xff]
          %v594 = vld [vmem:[%s329 + $0x300] sm:$0xff]
          %v595 = vld [vmem:[%s329 + $0x308] sm:$0xff]
          %v596 = vld [vmem:[%s329 + $0x310] sm:$0xff]
          %v597 = vld [vmem:[%s329 + $0x318] sm:$0xff]
          %v598 = vld [vmem:[%s329 + $0x320] sm:$0xff]
          %v599 = vld [vmem:[%s329 + $0x328] sm:$0xff]
          %v600 = vld [vmem:[%s329 + $0x330] sm:$0xff]
          %v601 = vld [vmem:[%s329 + $0x338] sm:$0xff]
          %v602 = vld [vmem:[%s329 + $0x340] sm:$0xff]
          %v603 = vld [vmem:[%s329 + $0x348] sm:$0xff]
          %v604 = vld [vmem:[%s329 + $0x350] sm:$0xff]
          %v605 = vld [vmem:[%s329 + $0x358] sm:$0xff]
          %v606 = vld [vmem:[%s329 + $0x360] sm:$0xff]
          %v607 = vld [vmem:[%s329 + $0x368] sm:$0xff]
          %v608 = vld [vmem:[%s329 + $0x370] sm:$0xff]
          %v609 = vld [vmem:[%s329 + $0x378] sm:$0xff]
          %v610 = vld [vmem:[%s329 + $0x380] sm:$0xff]
          %v611 = vld [vmem:[%s329 + $0x388] sm:$0xff]
          %v612 = vld [vmem:[%s329 + $0x390] sm:$0xff]
          %v613 = vld [vmem:[%s329 + $0x398] sm:$0xff]
          %v614 = vld [vmem:[%s329 + $0x3a0] sm:$0xff]
          %v615 = vld [vmem:[%s329 + $0x3a8] sm:$0xff]
          %v616 = vld [vmem:[%s329 + $0x3b0] sm:$0xff]
          %v617 = vld [vmem:[%s329 + $0x3b8] sm:$0xff]
          %v618 = vld [vmem:[%s329 + $0x3c0] sm:$0xff]
          %v619 = vld [vmem:[%s329 + $0x3c8] sm:$0xff]
          %v620 = vld [vmem:[%s329 + $0x3d0] sm:$0xff]
          %v621 = vld [vmem:[%s329 + $0x3d8] sm:$0xff]
          %v622 = vld [vmem:[%s329 + $0x3e0] sm:$0xff]
          %v623 = vld [vmem:[%s329 + $0x3e8] sm:$0xff]
          %v624 = vld [vmem:[%s329 + $0x3f0] sm:$0xff]
          %v625 = vld [vmem:[%s329 + $0x3f8] sm:$0xff]
          %v626 = vld [vmem:[%s339] sm:$0xff]
          %v627 = vld [vmem:[%s339 + $0x8] sm:$0xff]
          %v630 = vperm.slane %v626, 0
          %v631 = vperm.slane %v626, 1
          %v632 = vperm.slane %v626, 2
          %v633 = vperm.slane %v626, 3
          %v634 = vperm.slane %v626, 4
          %v635 = vperm.slane %v626, 5
          %v636 = vperm.slane %v626, 6
          %v637 = vperm.slane %v626, 7
          %v638 = vperm.slane %v627, 0
          %v639 = vperm.slane %v627, 1
          %v640 = vperm.slane %v627, 2
          %v641 = vperm.slane %v627, 3
          %v642 = vperm.slane %v627, 4
          %v643 = vperm.slane %v627, 5
          %v644 = vperm.slane %v627, 6
          %v645 = vperm.slane %v627, 7
          %v790 = vunpack.c.l.b16 %v498
          %v791 = vunpack.c.h.b16 %v498
          %v792 = vunpack.c.l.b16 %v499
          %v793 = vunpack.c.h.b16 %v499
          %v794 = vunpack.c.l.b16 %v500
          %v795 = vunpack.c.h.b16 %v500
          %v796 = vunpack.c.l.b16 %v501
          %v797 = vunpack.c.h.b16 %v501
          %v798 = vunpack.c.l.b16 %v502
          %v799 = vunpack.c.h.b16 %v502
          %v800 = vunpack.c.l.b16 %v503
          %v801 = vunpack.c.h.b16 %v503
          %v802 = vunpack.c.l.b16 %v504
          %v803 = vunpack.c.h.b16 %v504
          %v804 = vunpack.c.l.b16 %v505
          %v805 = vunpack.c.h.b16 %v505
          %v806 = vunpack.c.l.b16 %v506
          %v807 = vunpack.c.h.b16 %v506
          %v808 = vunpack.c.l.b16 %v507
          %v809 = vunpack.c.h.b16 %v507
          %v810 = vunpack.c.l.b16 %v508
          %v811 = vunpack.c.h.b16 %v508
          %v812 = vunpack.c.l.b16 %v509
          %v813 = vunpack.c.h.b16 %v509
          %v814 = vunpack.c.l.b16 %v510
          %v815 = vunpack.c.h.b16 %v510
          %v816 = vunpack.c.l.b16 %v511
          %v817 = vunpack.c.h.b16 %v511
          %v818 = vunpack.c.l.b16 %v512
          %v819 = vunpack.c.h.b16 %v512
          %v820 = vunpack.c.l.b16 %v513
          %v821 = vunpack.c.h.b16 %v513
          %v822 = vunpack.c.l.b16 %v514
          %v823 = vunpack.c.h.b16 %v514
          %v824 = vunpack.c.l.b16 %v515
          %v825 = vunpack.c.h.b16 %v515
          %v826 = vunpack.c.l.b16 %v516
          %v827 = vunpack.c.h.b16 %v516
          %v828 = vunpack.c.l.b16 %v517
          %v829 = vunpack.c.h.b16 %v517
          %v830 = vunpack.c.l.b16 %v518
          %v831 = vunpack.c.h.b16 %v518
          %v832 = vunpack.c.l.b16 %v519
          %v833 = vunpack.c.h.b16 %v519
          %v834 = vunpack.c.l.b16 %v520
          %v835 = vunpack.c.h.b16 %v520
          %v836 = vunpack.c.l.b16 %v521
          %v837 = vunpack.c.h.b16 %v521
          %v838 = vunpack.c.l.b16 %v522
          %v839 = vunpack.c.h.b16 %v522
          %v840 = vunpack.c.l.b16 %v523
          %v841 = vunpack.c.h.b16 %v523
          %v842 = vunpack.c.l.b16 %v524
          %v843 = vunpack.c.h.b16 %v524
          %v844 = vunpack.c.l.b16 %v525
          %v845 = vunpack.c.h.b16 %v525
          %v846 = vunpack.c.l.b16 %v526
          %v847 = vunpack.c.h.b16 %v526
          %v848 = vunpack.c.l.b16 %v527
          %v849 = vunpack.c.h.b16 %v527
          %v850 = vunpack.c.l.b16 %v528
          %v851 = vunpack.c.h.b16 %v528
          %v852 = vunpack.c.l.b16 %v529
          %v853 = vunpack.c.h.b16 %v529
          %v854 = vunpack.c.l.b16 %v530
          %v855 = vunpack.c.h.b16 %v530
          %v856 = vunpack.c.l.b16 %v531
          %v857 = vunpack.c.h.b16 %v531
          %v858 = vunpack.c.l.b16 %v532
          %v859 = vunpack.c.h.b16 %v532
          %v860 = vunpack.c.l.b16 %v533
          %v861 = vunpack.c.h.b16 %v533
          %v862 = vunpack.c.l.b16 %v534
          %v863 = vunpack.c.h.b16 %v534
          %v864 = vunpack.c.l.b16 %v535
          %v865 = vunpack.c.h.b16 %v535
          %v866 = vunpack.c.l.b16 %v536
          %v867 = vunpack.c.h.b16 %v536
          %v868 = vunpack.c.l.b16 %v537
          %v869 = vunpack.c.h.b16 %v537
          %v870 = vunpack.c.l.b16 %v538
          %v871 = vunpack.c.h.b16 %v538
          %v872 = vunpack.c.l.b16 %v539
          %v873 = vunpack.c.h.b16 %v539
          %v874 = vunpack.c.l.b16 %v540
          %v875 = vunpack.c.h.b16 %v540
          %v876 = vunpack.c.l.b16 %v541
          %v877 = vunpack.c.h.b16 %v541
          %v878 = vunpack.c.l.b16 %v542
          %v879 = vunpack.c.h.b16 %v542
          %v880 = vunpack.c.l.b16 %v543
          %v881 = vunpack.c.h.b16 %v543
          %v882 = vunpack.c.l.b16 %v544
          %v883 = vunpack.c.h.b16 %v544
          %v884 = vunpack.c.l.b16 %v545
          %v885 = vunpack.c.h.b16 %v545
          %v886 = vunpack.c.l.b16 %v546
          %v887 = vunpack.c.h.b16 %v546
          %v888 = vunpack.c.l.b16 %v547
          %v889 = vunpack.c.h.b16 %v547
          %v890 = vunpack.c.l.b16 %v548
          %v891 = vunpack.c.h.b16 %v548
          %v892 = vunpack.c.l.b16 %v549
          %v893 = vunpack.c.h.b16 %v549
          %v894 = vunpack.c.l.b16 %v550
          %v895 = vunpack.c.h.b16 %v550
          %v896 = vunpack.c.l.b16 %v551
          %v897 = vunpack.c.h.b16 %v551
          %v898 = vunpack.c.l.b16 %v552
          %v899 = vunpack.c.h.b16 %v552
          %v900 = vunpack.c.l.b16 %v553
          %v901 = vunpack.c.h.b16 %v553
          %v902 = vunpack.c.l.b16 %v554
          %v903 = vunpack.c.h.b16 %v554
          %v904 = vunpack.c.l.b16 %v555
          %v905 = vunpack.c.h.b16 %v555
          %v906 = vunpack.c.l.b16 %v556
          %v907 = vunpack.c.h.b16 %v556
          %v908 = vunpack.c.l.b16 %v557
          %v909 = vunpack.c.h.b16 %v557
          %v910 = vunpack.c.l.b16 %v558
          %v911 = vunpack.c.h.b16 %v558
          %v912 = vunpack.c.l.b16 %v559
          %v913 = vunpack.c.h.b16 %v559
          %v914 = vunpack.c.l.b16 %v560
          %v915 = vunpack.c.h.b16 %v560
          %v916 = vunpack.c.l.b16 %v561
          %v917 = vunpack.c.h.b16 %v561
          %v918 = vunpack.c.l.b16 %v562
          %v919 = vunpack.c.h.b16 %v562
          %v920 = vunpack.c.l.b16 %v563
          %v921 = vunpack.c.h.b16 %v563
          %v922 = vunpack.c.l.b16 %v564
          %v923 = vunpack.c.h.b16 %v564
          %v924 = vunpack.c.l.b16 %v565
          %v925 = vunpack.c.h.b16 %v565
          %v926 = vunpack.c.l.b16 %v566
          %v927 = vunpack.c.h.b16 %v566
          %v928 = vunpack.c.l.b16 %v567
          %v929 = vunpack.c.h.b16 %v567
          %v930 = vunpack.c.l.b16 %v568
          %v931 = vunpack.c.h.b16 %v568
          %v932 = vunpack.c.l.b16 %v569
          %v933 = vunpack.c.h.b16 %v569
          %v934 = vunpack.c.l.b16 %v570
          %v935 = vunpack.c.h.b16 %v570
          %v936 = vunpack.c.l.b16 %v571
          %v937 = vunpack.c.h.b16 %v571
          %v938 = vunpack.c.l.b16 %v572
          %v939 = vunpack.c.h.b16 %v572
          %v940 = vunpack.c.l.b16 %v573
          %v941 = vunpack.c.h.b16 %v573
          %v942 = vunpack.c.l.b16 %v574
          %v943 = vunpack.c.h.b16 %v574
          %v944 = vunpack.c.l.b16 %v575
          %v945 = vunpack.c.h.b16 %v575
          %v946 = vunpack.c.l.b16 %v576
          %v947 = vunpack.c.h.b16 %v576
          %v948 = vunpack.c.l.b16 %v577
          %v949 = vunpack.c.h.b16 %v577
          %v950 = vunpack.c.l.b16 %v578
          %v951 = vunpack.c.h.b16 %v578
          %v952 = vunpack.c.l.b16 %v579
          %v953 = vunpack.c.h.b16 %v579
          %v954 = vunpack.c.l.b16 %v580
          %v955 = vunpack.c.h.b16 %v580
          %v956 = vunpack.c.l.b16 %v581
          %v957 = vunpack.c.h.b16 %v581
          %v958 = vunpack.c.l.b16 %v582
          %v959 = vunpack.c.h.b16 %v582
          %v960 = vunpack.c.l.b16 %v583
          %v961 = vunpack.c.h.b16 %v583
          %v962 = vunpack.c.l.b16 %v584
          %v963 = vunpack.c.h.b16 %v584
          %v964 = vunpack.c.l.b16 %v585
          %v965 = vunpack.c.h.b16 %v585
          %v966 = vunpack.c.l.b16 %v586
          %v967 = vunpack.c.h.b16 %v586
          %v968 = vunpack.c.l.b16 %v587
          %v969 = vunpack.c.h.b16 %v587
          %v970 = vunpack.c.l.b16 %v588
          %v971 = vunpack.c.h.b16 %v588
          %v972 = vunpack.c.l.b16 %v589
          %v973 = vunpack.c.h.b16 %v589
          %v974 = vunpack.c.l.b16 %v590
          %v975 = vunpack.c.h.b16 %v590
          %v976 = vunpack.c.l.b16 %v591
          %v977 = vunpack.c.h.b16 %v591
          %v978 = vunpack.c.l.b16 %v592
          %v979 = vunpack.c.h.b16 %v592
          %v980 = vunpack.c.l.b16 %v593
          %v981 = vunpack.c.h.b16 %v593
          %v982 = vunpack.c.l.b16 %v594
          %v983 = vunpack.c.h.b16 %v594
          %v984 = vunpack.c.l.b16 %v595
          %v985 = vunpack.c.h.b16 %v595
          %v986 = vunpack.c.l.b16 %v596
          %v987 = vunpack.c.h.b16 %v596
          %v988 = vunpack.c.l.b16 %v597
          %v989 = vunpack.c.h.b16 %v597
          %v990 = vunpack.c.l.b16 %v598
          %v991 = vunpack.c.h.b16 %v598
          %v992 = vunpack.c.l.b16 %v599
          %v993 = vunpack.c.h.b16 %v599
          %v994 = vunpack.c.l.b16 %v600
          %v995 = vunpack.c.h.b16 %v600
          %v996 = vunpack.c.l.b16 %v601
          %v997 = vunpack.c.h.b16 %v601
          %v998 = vunpack.c.l.b16 %v602
          %v999 = vunpack.c.h.b16 %v602
          %v1000 = vunpack.c.l.b16 %v603
          %v1001 = vunpack.c.h.b16 %v603
          %v1002 = vunpack.c.l.b16 %v604
          %v1003 = vunpack.c.h.b16 %v604
          %v1004 = vunpack.c.l.b16 %v605
          %v1005 = vunpack.c.h.b16 %v605
          %v1006 = vunpack.c.l.b16 %v606
          %v1007 = vunpack.c.h.b16 %v606
          %v1008 = vunpack.c.l.b16 %v607
          %v1009 = vunpack.c.h.b16 %v607
          %v1010 = vunpack.c.l.b16 %v608
          %v1011 = vunpack.c.h.b16 %v608
          %v1012 = vunpack.c.l.b16 %v609
          %v1013 = vunpack.c.h.b16 %v609
          %v1014 = vunpack.c.l.b16 %v610
          %v1015 = vunpack.c.h.b16 %v610
          %v1016 = vunpack.c.l.b16 %v611
          %v1017 = vunpack.c.h.b16 %v611
          %v1018 = vunpack.c.l.b16 %v612
          %v1019 = vunpack.c.h.b16 %v612
          %v1020 = vunpack.c.l.b16 %v613
          %v1021 = vunpack.c.h.b16 %v613
          %v1022 = vunpack.c.l.b16 %v614
          %v1023 = vunpack.c.h.b16 %v614
          %v1024 = vunpack.c.l.b16 %v615
          %v1025 = vunpack.c.h.b16 %v615
          %v1026 = vunpack.c.l.b16 %v616
          %v1027 = vunpack.c.h.b16 %v616
          %v1028 = vunpack.c.l.b16 %v617
          %v1029 = vunpack.c.h.b16 %v617
          %v1030 = vunpack.c.l.b16 %v618
          %v1031 = vunpack.c.h.b16 %v618
          %v1032 = vunpack.c.l.b16 %v619
          %v1033 = vunpack.c.h.b16 %v619
          %v1034 = vunpack.c.l.b16 %v620
          %v1035 = vunpack.c.h.b16 %v620
          %v1036 = vunpack.c.l.b16 %v621
          %v1037 = vunpack.c.h.b16 %v621
          %v1038 = vunpack.c.l.b16 %v622
          %v1039 = vunpack.c.h.b16 %v622
          %v1040 = vunpack.c.l.b16 %v623
          %v1041 = vunpack.c.h.b16 %v623
          %v1042 = vunpack.c.l.b16 %v624
          %v1043 = vunpack.c.h.b16 %v624
          %v1044 = vunpack.c.l.b16 %v625
          %v1045 = vunpack.c.h.b16 %v625
          %v1046 = vpack.c.b16 %v806, %v790
          %v1047 = vpack.c.b16 %v807, %v791
          %v1048 = vpack.c.b16 %v808, %v792
          %v1049 = vpack.c.b16 %v809, %v793
          %v1050 = vpack.c.b16 %v810, %v794
          %v1051 = vpack.c.b16 %v811, %v795
          %v1052 = vpack.c.b16 %v812, %v796
          %v1053 = vpack.c.b16 %v813, %v797
          %v1054 = vpack.c.b16 %v814, %v798
          %v1055 = vpack.c.b16 %v815, %v799
          %v1056 = vpack.c.b16 %v816, %v800
          %v1057 = vpack.c.b16 %v817, %v801
          %v1058 = vpack.c.b16 %v818, %v802
          %v1059 = vpack.c.b16 %v819, %v803
          %v1060 = vpack.c.b16 %v820, %v804
          %v1061 = vpack.c.b16 %v821, %v805
          %v1062 = vpack.c.b16 %v838, %v822
          %v1063 = vpack.c.b16 %v839, %v823
          %v1064 = vpack.c.b16 %v840, %v824
          %v1065 = vpack.c.b16 %v841, %v825
          %v1066 = vpack.c.b16 %v842, %v826
          %v1067 = vpack.c.b16 %v843, %v827
          %v1068 = vpack.c.b16 %v844, %v828
          %v1069 = vpack.c.b16 %v845, %v829
          %v1070 = vpack.c.b16 %v846, %v830
          %v1071 = vpack.c.b16 %v847, %v831
          %v1072 = vpack.c.b16 %v848, %v832
          %v1073 = vpack.c.b16 %v849, %v833
          %v1074 = vpack.c.b16 %v850, %v834
          %v1075 = vpack.c.b16 %v851, %v835
          %v1076 = vpack.c.b16 %v852, %v836
          %v1077 = vpack.c.b16 %v853, %v837
          %v1078 = vpack.c.b16 %v870, %v854
          %v1079 = vpack.c.b16 %v871, %v855
          %v1080 = vpack.c.b16 %v872, %v856
          %v1081 = vpack.c.b16 %v873, %v857
          %v1082 = vpack.c.b16 %v874, %v858
          %v1083 = vpack.c.b16 %v875, %v859
          %v1084 = vpack.c.b16 %v876, %v860
          %v1085 = vpack.c.b16 %v877, %v861
          %v1086 = vpack.c.b16 %v878, %v862
          %v1087 = vpack.c.b16 %v879, %v863
          %v1088 = vpack.c.b16 %v880, %v864
          %v1089 = vpack.c.b16 %v881, %v865
          %v1090 = vpack.c.b16 %v882, %v866
          %v1091 = vpack.c.b16 %v883, %v867
          %v1092 = vpack.c.b16 %v884, %v868
          %v1093 = vpack.c.b16 %v885, %v869
          %v1094 = vpack.c.b16 %v902, %v886
          %v1095 = vpack.c.b16 %v903, %v887
          %v1096 = vpack.c.b16 %v904, %v888
          %v1097 = vpack.c.b16 %v905, %v889
          %v1098 = vpack.c.b16 %v906, %v890
          %v1099 = vpack.c.b16 %v907, %v891
          %v1100 = vpack.c.b16 %v908, %v892
          %v1101 = vpack.c.b16 %v909, %v893
          %v1102 = vpack.c.b16 %v910, %v894
          %v1103 = vpack.c.b16 %v911, %v895
          %v1104 = vpack.c.b16 %v912, %v896
          %v1105 = vpack.c.b16 %v913, %v897
          %v1106 = vpack.c.b16 %v914, %v898
          %v1107 = vpack.c.b16 %v915, %v899
          %v1108 = vpack.c.b16 %v916, %v900
          %v1109 = vpack.c.b16 %v917, %v901
          %v1110 = vpack.c.b16 %v934, %v918
          %v1111 = vpack.c.b16 %v935, %v919
          %v1112 = vpack.c.b16 %v936, %v920
          %v1113 = vpack.c.b16 %v937, %v921
          %v1114 = vpack.c.b16 %v938, %v922
          %v1115 = vpack.c.b16 %v939, %v923
          %v1116 = vpack.c.b16 %v940, %v924
          %v1117 = vpack.c.b16 %v941, %v925
          %v1118 = vpack.c.b16 %v942, %v926
          %v1119 = vpack.c.b16 %v943, %v927
          %v1120 = vpack.c.b16 %v944, %v928
          %v1121 = vpack.c.b16 %v945, %v929
          %v1122 = vpack.c.b16 %v946, %v930
          %v1123 = vpack.c.b16 %v947, %v931
          %v1124 = vpack.c.b16 %v948, %v932
          %v1125 = vpack.c.b16 %v949, %v933
          %v1126 = vpack.c.b16 %v966, %v950
          %v1127 = vpack.c.b16 %v967, %v951
          %v1128 = vpack.c.b16 %v968, %v952
          %v1129 = vpack.c.b16 %v969, %v953
          %v1130 = vpack.c.b16 %v970, %v954
          %v1131 = vpack.c.b16 %v971, %v955
          %v1132 = vpack.c.b16 %v972, %v956
          %v1133 = vpack.c.b16 %v973, %v957
          %v1134 = vpack.c.b16 %v974, %v958
          %v1135 = vpack.c.b16 %v975, %v959
          %v1136 = vpack.c.b16 %v976, %v960
          %v1137 = vpack.c.b16 %v977, %v961
          %v1138 = vpack.c.b16 %v978, %v962
          %v1139 = vpack.c.b16 %v979, %v963
          %v1140 = vpack.c.b16 %v980, %v964
          %v1141 = vpack.c.b16 %v981, %v965
          %v1142 = vpack.c.b16 %v998, %v982
          %v1143 = vpack.c.b16 %v999, %v983
          %v1144 = vpack.c.b16 %v1000, %v984
          %v1145 = vpack.c.b16 %v1001, %v985
          %v1146 = vpack.c.b16 %v1002, %v986
          %v1147 = vpack.c.b16 %v1003, %v987
          %v1148 = vpack.c.b16 %v1004, %v988
          %v1149 = vpack.c.b16 %v1005, %v989
          %v1150 = vpack.c.b16 %v1006, %v990
          %v1151 = vpack.c.b16 %v1007, %v991
          %v1152 = vpack.c.b16 %v1008, %v992
          %v1153 = vpack.c.b16 %v1009, %v993
          %v1154 = vpack.c.b16 %v1010, %v994
          %v1155 = vpack.c.b16 %v1011, %v995
          %v1156 = vpack.c.b16 %v1012, %v996
          %v1157 = vpack.c.b16 %v1013, %v997
          %v1158 = vpack.c.b16 %v1030, %v1014
          %v1159 = vpack.c.b16 %v1031, %v1015
          %v1160 = vpack.c.b16 %v1032, %v1016
          %v1161 = vpack.c.b16 %v1033, %v1017
          %v1162 = vpack.c.b16 %v1034, %v1018
          %v1163 = vpack.c.b16 %v1035, %v1019
          %v1164 = vpack.c.b16 %v1036, %v1020
          %v1165 = vpack.c.b16 %v1037, %v1021
          %v1166 = vpack.c.b16 %v1038, %v1022
          %v1167 = vpack.c.b16 %v1039, %v1023
          %v1168 = vpack.c.b16 %v1040, %v1024
          %v1169 = vpack.c.b16 %v1041, %v1025
          %v1170 = vpack.c.b16 %v1042, %v1026
          %v1171 = vpack.c.b16 %v1043, %v1027
          %v1172 = vpack.c.b16 %v1044, %v1028
          %v1173 = vpack.c.b16 %v1045, %v1029
          %1302 = vmatpush.bf16.msra.mxu0 %v1158
          %1303 = vmatpush.bf16.msra.mxu0 %v1142
          %1304 = vmatpush.bf16.msra.mxu0 %v1126
          %1305 = vmatpush.bf16.msra.mxu0 %v1110
          %1306 = vmatpush.bf16.msra.mxu0 %v1094
          %1307 = vmatpush.bf16.msra.mxu0 %v1078
          %1308 = vmatpush.bf16.msra.mxu0 %v1062
          %1309 = vmatpush.bf16.msra.mxu0 %v1046
          %1310 = vmatmul.bf16.gmra.mxu0 %v497
          %v1311 = vpop.f32.mrf.mxu0
          %v1312 = vadd.f32 %v630, %v1311
          %v1313 = vpop.f32.mrf.mxu0
          %1314 = vdwg.mxu0
          %1315 = vmatpush.bf16.msra.mxu0 %v1159
          %1316 = vmatpush.bf16.msra.mxu0 %v1143
          %1317 = vmatpush.bf16.msra.mxu0 %v1127
          %1318 = vmatpush.bf16.msra.mxu0 %v1111
          %1319 = vmatpush.bf16.msra.mxu0 %v1095
          %1320 = vmatpush.bf16.msra.mxu0 %v1079
          %1321 = vmatpush.bf16.msra.mxu0 %v1063
          %1322 = vmatpush.bf16.msra.mxu0 %v1047
          %1323 = vmatmul.bf16.gmra.mxu0 %v497
          %v1324 = vpop.f32.mrf.mxu0
          %v1325 = vadd.f32 %v631, %v1324
          %v1326 = vpop.f32.mrf.mxu0
          %1327 = vdwg.mxu0
          %1328 = vmatpush.bf16.msra.mxu0 %v1160
          %1329 = vmatpush.bf16.msra.mxu0 %v1144
          %1330 = vmatpush.bf16.msra.mxu0 %v1128
          %1331 = vmatpush.bf16.msra.mxu0 %v1112
          %1332 = vmatpush.bf16.msra.mxu0 %v1096
          %1333 = vmatpush.bf16.msra.mxu0 %v1080
          %1334 = vmatpush.bf16.msra.mxu0 %v1064
          %1335 = vmatpush.bf16.msra.mxu0 %v1048
          %1336 = vmatmul.bf16.gmra.mxu0 %v497
          %v1337 = vpop.f32.mrf.mxu0
          %v1338 = vadd.f32 %v632, %v1337
          %v1339 = vpop.f32.mrf.mxu0
          %1340 = vdwg.mxu0
          %1341 = vmatpush.bf16.msra.mxu0 %v1161
          %1342 = vmatpush.bf16.msra.mxu0 %v1145
          %1343 = vmatpush.bf16.msra.mxu0 %v1129
          %1344 = vmatpush.bf16.msra.mxu0 %v1113
          %1345 = vmatpush.bf16.msra.mxu0 %v1097
          %1346 = vmatpush.bf16.msra.mxu0 %v1081
          %1347 = vmatpush.bf16.msra.mxu0 %v1065
          %1348 = vmatpush.bf16.msra.mxu0 %v1049
          %1349 = vmatmul.bf16.gmra.mxu0 %v497
          %v1350 = vpop.f32.mrf.mxu0
          %v1351 = vadd.f32 %v633, %v1350
          %v1352 = vpop.f32.mrf.mxu0
          %1353 = vdwg.mxu0
          %1354 = vmatpush.bf16.msra.mxu0 %v1162
          %1355 = vmatpush.bf16.msra.mxu0 %v1146
          %1356 = vmatpush.bf16.msra.mxu0 %v1130
          %1357 = vmatpush.bf16.msra.mxu0 %v1114
          %1358 = vmatpush.bf16.msra.mxu0 %v1098
          %1359 = vmatpush.bf16.msra.mxu0 %v1082
          %1360 = vmatpush.bf16.msra.mxu0 %v1066
          %1361 = vmatpush.bf16.msra.mxu0 %v1050
          %1362 = vmatmul.bf16.gmra.mxu0 %v497
          %v1363 = vpop.f32.mrf.mxu0
          %v1364 = vadd.f32 %v634, %v1363
          %v1365 = vpop.f32.mrf.mxu0
          %1366 = vdwg.mxu0
          %1367 = vmatpush.bf16.msra.mxu0 %v1163
          %1368 = vmatpush.bf16.msra.mxu0 %v1147
          %1369 = vmatpush.bf16.msra.mxu0 %v1131
          %1370 = vmatpush.bf16.msra.mxu0 %v1115
          %1371 = vmatpush.bf16.msra.mxu0 %v1099
          %1372 = vmatpush.bf16.msra.mxu0 %v1083
          %1373 = vmatpush.bf16.msra.mxu0 %v1067
          %1374 = vmatpush.bf16.msra.mxu0 %v1051
          %1375 = vmatmul.bf16.gmra.mxu0 %v497
          %v1376 = vpop.f32.mrf.mxu0
          %v1377 = vadd.f32 %v635, %v1376
          %v1378 = vpop.f32.mrf.mxu0
          %1379 = vdwg.mxu0
          %1380 = vmatpush.bf16.msra.mxu0 %v1164
          %1381 = vmatpush.bf16.msra.mxu0 %v1148
          %1382 = vmatpush.bf16.msra.mxu0 %v1132
          %1383 = vmatpush.bf16.msra.mxu0 %v1116
          %1384 = vmatpush.bf16.msra.mxu0 %v1100
          %1385 = vmatpush.bf16.msra.mxu0 %v1084
          %1386 = vmatpush.bf16.msra.mxu0 %v1068
          %1387 = vmatpush.bf16.msra.mxu0 %v1052
          %1388 = vmatmul.bf16.gmra.mxu0 %v497
          %v1389 = vpop.f32.mrf.mxu0
          %v1390 = vadd.f32 %v636, %v1389
          %v1391 = vpop.f32.mrf.mxu0
          %1392 = vdwg.mxu0
          %1393 = vmatpush.bf16.msra.mxu0 %v1165
          %1394 = vmatpush.bf16.msra.mxu0 %v1149
          %1395 = vmatpush.bf16.msra.mxu0 %v1133
          %1396 = vmatpush.bf16.msra.mxu0 %v1117
          %1397 = vmatpush.bf16.msra.mxu0 %v1101
          %1398 = vmatpush.bf16.msra.mxu0 %v1085
          %1399 = vmatpush.bf16.msra.mxu0 %v1069
          %1400 = vmatpush.bf16.msra.mxu0 %v1053
          %1401 = vmatmul.bf16.gmra.mxu0 %v497
          %v1402 = vpop.f32.mrf.mxu0
          %v1403 = vadd.f32 %v637, %v1402
          %v1404 = vpop.f32.mrf.mxu0
          %1405 = vdwg.mxu0
          %1406 = vmatpush.bf16.msra.mxu0 %v1166
          %1407 = vmatpush.bf16.msra.mxu0 %v1150
          %1408 = vmatpush.bf16.msra.mxu0 %v1134
          %1409 = vmatpush.bf16.msra.mxu0 %v1118
          %1410 = vmatpush.bf16.msra.mxu0 %v1102
          %1411 = vmatpush.bf16.msra.mxu0 %v1086
          %1412 = vmatpush.bf16.msra.mxu0 %v1070
          %1413 = vmatpush.bf16.msra.mxu0 %v1054
          %1414 = vmatmul.bf16.gmra.mxu0 %v497
          %v1415 = vpop.f32.mrf.mxu0
          %v1416 = vadd.f32 %v638, %v1415
          %v1417 = vpop.f32.mrf.mxu0
          %1418 = vdwg.mxu0
          %1419 = vmatpush.bf16.msra.mxu0 %v1167
          %1420 = vmatpush.bf16.msra.mxu0 %v1151
          %1421 = vmatpush.bf16.msra.mxu0 %v1135
          %1422 = vmatpush.bf16.msra.mxu0 %v1119
          %1423 = vmatpush.bf16.msra.mxu0 %v1103
          %1424 = vmatpush.bf16.msra.mxu0 %v1087
          %1425 = vmatpush.bf16.msra.mxu0 %v1071
          %1426 = vmatpush.bf16.msra.mxu0 %v1055
          %1427 = vmatmul.bf16.gmra.mxu0 %v497
          %v1428 = vpop.f32.mrf.mxu0
          %v1429 = vadd.f32 %v639, %v1428
          %v1430 = vpop.f32.mrf.mxu0
          %1431 = vdwg.mxu0
          %1432 = vmatpush.bf16.msra.mxu0 %v1168
          %1433 = vmatpush.bf16.msra.mxu0 %v1152
          %1434 = vmatpush.bf16.msra.mxu0 %v1136
          %1435 = vmatpush.bf16.msra.mxu0 %v1120
          %1436 = vmatpush.bf16.msra.mxu0 %v1104
          %1437 = vmatpush.bf16.msra.mxu0 %v1088
          %1438 = vmatpush.bf16.msra.mxu0 %v1072
          %1439 = vmatpush.bf16.msra.mxu0 %v1056
          %1440 = vmatmul.bf16.gmra.mxu0 %v497
          %v1441 = vpop.f32.mrf.mxu0
          %v1442 = vadd.f32 %v640, %v1441
          %v1443 = vpop.f32.mrf.mxu0
          %1444 = vdwg.mxu0
          %1445 = vmatpush.bf16.msra.mxu0 %v1169
          %1446 = vmatpush.bf16.msra.mxu0 %v1153
          %1447 = vmatpush.bf16.msra.mxu0 %v1137
          %1448 = vmatpush.bf16.msra.mxu0 %v1121
          %1449 = vmatpush.bf16.msra.mxu0 %v1105
          %1450 = vmatpush.bf16.msra.mxu0 %v1089
          %1451 = vmatpush.bf16.msra.mxu0 %v1073
          %1452 = vmatpush.bf16.msra.mxu0 %v1057
          %1453 = vmatmul.bf16.gmra.mxu0 %v497
          %v1454 = vpop.f32.mrf.mxu0
          %v1455 = vadd.f32 %v641, %v1454
          %v1456 = vpop.f32.mrf.mxu0
          %1457 = vdwg.mxu0
          %1458 = vmatpush.bf16.msra.mxu0 %v1170
          %1459 = vmatpush.bf16.msra.mxu0 %v1154
          %1460 = vmatpush.bf16.msra.mxu0 %v1138
          %1461 = vmatpush.bf16.msra.mxu0 %v1122
          %1462 = vmatpush.bf16.msra.mxu0 %v1106
          %1463 = vmatpush.bf16.msra.mxu0 %v1090
          %1464 = vmatpush.bf16.msra.mxu0 %v1074
          %1465 = vmatpush.bf16.msra.mxu0 %v1058
          %1466 = vmatmul.bf16.gmra.mxu0 %v497
          %v1467 = vpop.f32.mrf.mxu0
          %v1468 = vadd.f32 %v642, %v1467
          %v1469 = vpop.f32.mrf.mxu0
          %1470 = vdwg.mxu0
          %1471 = vmatpush.bf16.msra.mxu0 %v1171
          %1472 = vmatpush.bf16.msra.mxu0 %v1155
          %1473 = vmatpush.bf16.msra.mxu0 %v1139
          %1474 = vmatpush.bf16.msra.mxu0 %v1123
          %1475 = vmatpush.bf16.msra.mxu0 %v1107
          %1476 = vmatpush.bf16.msra.mxu0 %v1091
          %1477 = vmatpush.bf16.msra.mxu0 %v1075
          %1478 = vmatpush.bf16.msra.mxu0 %v1059
          %1479 = vmatmul.bf16.gmra.mxu0 %v497
          %v1480 = vpop.f32.mrf.mxu0
          %v1481 = vadd.f32 %v643, %v1480
          %v1482 = vpop.f32.mrf.mxu0
          %1483 = vdwg.mxu0
          %1484 = vmatpush.bf16.msra.mxu0 %v1172
          %1485 = vmatpush.bf16.msra.mxu0 %v1156
          %1486 = vmatpush.bf16.msra.mxu0 %v1140
          %1487 = vmatpush.bf16.msra.mxu0 %v1124
          %1488 = vmatpush.bf16.msra.mxu0 %v1108
          %1489 = vmatpush.bf16.msra.mxu0 %v1092
          %1490 = vmatpush.bf16.msra.mxu0 %v1076
          %1491 = vmatpush.bf16.msra.mxu0 %v1060
          %1492 = vmatmul.bf16.gmra.mxu0 %v497
          %v1493 = vpop.f32.mrf.mxu0
          %v1494 = vadd.f32 %v644, %v1493
          %v1495 = vpop.f32.mrf.mxu0
          %1496 = vdwg.mxu0
          %1497 = vmatpush.bf16.msra.mxu0 %v1173
          %1498 = vmatpush.bf16.msra.mxu0 %v1157
          %1499 = vmatpush.bf16.msra.mxu0 %v1141
          %1500 = vmatpush.bf16.msra.mxu0 %v1125
          %1501 = vmatpush.bf16.msra.mxu0 %v1109
          %1502 = vmatpush.bf16.msra.mxu0 %v1093
          %1503 = vmatpush.bf16.msra.mxu0 %v1077
          %1504 = vmatpush.bf16.msra.mxu0 %v1061
          %1505 = vmatmul.bf16.gmra.mxu0 %v497
          %v1506 = vpop.f32.mrf.mxu0
          %v1507 = vadd.f32 %v645, %v1506
          %v1508 = vpop.f32.mrf.mxu0
          %1509 = vdwg.mxu0
          %v1510 = vrot.slane %v1338, 4
          %vm1511 = vcmask 1047556
          %v1512 = vsel %vm1511, %v1510, %v1312
          %v1514 = vunpack.c.l.s4 1983009808
          %v1515 = vunpack.c.0.s8 %v1514
          %v1516 = vperm.slane %v1512, %v1515
          %v1517 = vrot.slane %v1351, 4
          %v1518 = vsel %vm1511, %v1517, %v1325
          %v1520 = vunpack.c.l.s4 1983009808
          %v1521 = vunpack.c.0.s8 %v1520
          %v1522 = vperm.slane %v1518, %v1521
          %v1523 = vrot.slane %v1390, 4
          %v1524 = vsel %vm1511, %v1523, %v1364
          %v1526 = vunpack.c.l.s4 1983009808
          %v1527 = vunpack.c.0.s8 %v1526
          %v1528 = vperm.slane %v1524, %v1527
          %v1529 = vrot.slane %v1403, 4
          %v1530 = vsel %vm1511, %v1529, %v1377
          %v1532 = vunpack.c.l.s4 1983009808
          %v1533 = vunpack.c.0.s8 %v1532
          %v1534 = vperm.slane %v1530, %v1533
          %v1535 = vrot.slane %v1522, 4
          %v1536 = vsel %vm1511, %v1535, %v1516
          %v1538 = vunpack.c.l.s4 1934713408
          %v1539 = vunpack.c.0.s8 %v1538
          %v1540 = vperm.slane %v1536, %v1539
          %v1541 = vrot.slane %v1534, 4
          %v1542 = vsel %vm1511, %v1541, %v1528
          %v1544 = vunpack.c.l.s4 1934713408
          %v1545 = vunpack.c.0.s8 %v1544
          %v1546 = vperm.slane %v1542, %v1545
          %v1547 = vrot.slane %v1546, 4
          %v1548 = vsel %vm1511, %v1547, %v1540
          %v1549 = vrot.slane %v1540, 4
          %v1550 = vsel %vm1511, %v1546, %v1549
          %v1551 = vrot.slane %v1442, 4
          %v1552 = vsel %vm1511, %v1551, %v1416
          %v1554 = vunpack.c.l.s4 1983009808
          %v1555 = vunpack.c.0.s8 %v1554
          %v1556 = vperm.slane %v1552, %v1555
          %v1557 = vrot.slane %v1455, 4
          %v1558 = vsel %vm1511, %v1557, %v1429
          %v1560 = vunpack.c.l.s4 1983009808
          %v1561 = vunpack.c.0.s8 %v1560
          %v1562 = vperm.slane %v1558, %v1561
          %v1563 = vrot.slane %v1494, 4
          %v1564 = vsel %vm1511, %v1563, %v1468
          %v1566 = vunpack.c.l.s4 1983009808
          %v1567 = vunpack.c.0.s8 %v1566
          %v1568 = vperm.slane %v1564, %v1567
          %v1569 = vrot.slane %v1507, 4
          %v1570 = vsel %vm1511, %v1569, %v1481
          %v1572 = vunpack.c.l.s4 1983009808
          %v1573 = vunpack.c.0.s8 %v1572
          %v1574 = vperm.slane %v1570, %v1573
          %v1575 = vrot.slane %v1562, 4
          %v1576 = vsel %vm1511, %v1575, %v1556
          %v1578 = vunpack.c.l.s4 1934713408
          %v1579 = vunpack.c.0.s8 %v1578
          %v1580 = vperm.slane %v1576, %v1579
          %v1581 = vrot.slane %v1574, 4
          %v1582 = vsel %vm1511, %v1581, %v1568
          %v1584 = vunpack.c.l.s4 1934713408
          %v1585 = vunpack.c.0.s8 %v1584
          %v1586 = vperm.slane %v1582, %v1585
          %v1587 = vrot.slane %v1586, 4
          %v1588 = vsel %vm1511, %v1587, %v1580
          %v1589 = vrot.slane %v1580, 4
          %v1590 = vsel %vm1511, %v1586, %v1589
          %s1591 = smul.u32 %s495, 16
          %s1592 = scalar_lea.vmem [#allocation3], %s1591
          %1593 = vst [vmem:[%s1592] sm:$0xff] %v1548
          %1594 = vst [vmem:[%s1592 + $0x8] sm:$0xff] %v1588
          %1595 = vst [vmem:[%s1592 + $0x20] sm:$0xff] %v1550
          %1596 = vst [vmem:[%s1592 + $0x28] sm:$0xff] %v1590
        $region72: #{tpu_custom_call.1} parent=39 // pred_fallthru
          _
        %p1597 = scmp.eq.s32.totalorder %s26, 3
        // Predicated region
        $region73: #{tpu_custom_call.1} parent=39 // pred_check
          %p1598 = pneg %p1597
        $region74: #{tpu_custom_call.1} parent=39 // pred_check_branch
          %1600 = sbr.rel (%p1598) target = $region76
        $region75: #{tpu_custom_call.1} parent=39 // pred_region
          %v1601 = vld [vmem:[#allocation3] sm:$0xff]
          %v1602 = vld [vmem:[#allocation3 + $0x8] sm:$0xff]
          %v1603 = vld [vmem:[#allocation3 + $0x10] sm:$0xff]
          %v1604 = vld [vmem:[#allocation3 + $0x18] sm:$0xff]
          %1605 = vxpose.xlu0.b32.start [1/16] %v1601, 128
          %1606 = vxpose.xlu0.b32.cont [2/16] %v1602, 128
          %1607 = vxpose.xlu0.b32.cont [3/16] 0.0, 128
          %1608 = vxpose.xlu0.b32.cont [4/16] 0.0, 128
          %1609 = vxpose.xlu0.b32.cont [5/16] 0.0, 128
          %1610 = vxpose.xlu0.b32.cont [6/16] 0.0, 128
          %1611 = vxpose.xlu0.b32.cont [7/16] 0.0, 128
          %1612 = vxpose.xlu0.b32.cont [8/16] 0.0, 128
          %1613 = vxpose.xlu0.b32.cont [9/16] 0.0, 128
          %1614 = vxpose.xlu0.b32.cont [10/16] 0.0, 128
          %1615 = vxpose.xlu0.b32.cont [11/16] 0.0, 128
          %1616 = vxpose.xlu0.b32.cont [12/16] 0.0, 128
          %1617 = vxpose.xlu0.b32.cont [13/16] 0.0, 128
          %1618 = vxpose.xlu0.b32.cont [14/16] 0.0, 128
          %1619 = vxpose.xlu0.b32.cont [15/16] 0.0, 128
          %1620 = vxpose.xlu0.b32.end [16/16] 0.0, 128
          %v1621 = vpop.trf.xlu0
          %v1622 = vpop.trf.xlu0
          %v1623 = vpop.trf.xlu0
          %v1624 = vpop.trf.xlu0
          %v1625 = vpop.trf.xlu0
          %v1626 = vpop.trf.xlu0
          %v1627 = vpop.trf.xlu0
          %v1628 = vpop.trf.xlu0
          %v1629 = vpop.trf.xlu0
          %v1630 = vpop.trf.xlu0
          %v1631 = vpop.trf.xlu0
          %v1632 = vpop.trf.xlu0
          %v1633 = vpop.trf.xlu0
          %v1634 = vpop.trf.xlu0
          %v1635 = vpop.trf.xlu0
          %v1636 = vpop.trf.xlu0
          %vm1637 = vcmask 130048
          %v1639 = vsel %vm1637, %v1621, 0
          %v1642 = vsel %vm1637, %v1622, 0
          %v1645 = vsel %vm1637, %v1623, 0
          %v1648 = vsel %vm1637, %v1624, 0
          %v1651 = vsel %vm1637, %v1625, 0
          %v1654 = vsel %vm1637, %v1626, 0
          %v1657 = vsel %vm1637, %v1627, 0
          %v1660 = vsel %vm1637, %v1628, 0
          %v1663 = vsel %vm1637, %v1629, 0
          %v1666 = vsel %vm1637, %v1630, 0
          %v1669 = vsel %vm1637, %v1631, 0
          %v1672 = vsel %vm1637, %v1632, 0
          %v1675 = vsel %vm1637, %v1633, 0
          %v1678 = vsel %vm1637, %v1634, 0
          %v1681 = vsel %vm1637, %v1635, 0
          %v1684 = vsel %vm1637, %v1636, 0
          %1686 = vmatpush.msra.mxu0 0.0
          %1687 = vmatpush.msra.mxu0 0.0
          %1688 = vmatpush.msra.mxu0 0.0
          %1689 = vmatpush.msra.mxu0 0.0
          %1690 = vmatpush.msra.mxu0 0.0
          %1691 = vmatpush.msra.mxu0 0.0
          %1692 = vmatpush.msra.mxu0 0.0
          %1693 = vmatpush.msra.mxu0 0.0
          %1694 = vmatpush.msra.mxu0 0.0
          %1695 = vmatpush.msra.mxu0 0.0
          %1696 = vmatpush.msra.mxu0 0.0
          %1697 = vmatpush.msra.mxu0 0.0
          %1698 = vmatpush.msra.mxu0 0.0
          %1699 = vmatpush.msra.mxu0 0.0
          %1700 = vmatpush.msra.mxu0 %v1604
          %1701 = vmatpush.msra.mxu0 %v1603
          %1702 = vmatmul.f32.gmra.mxu0 %v1639
          %v1703 = vpop.f32.mrf.mxu0
          %v1704 = vadd.f32 0.0, %v1703
          %1705 = vmatmul.f32.gmra.mxu0 %v1642
          %v1706 = vpop.f32.mrf.mxu0
          %v1707 = vadd.f32 0.0, %v1706
          %1708 = vmatmul.f32.gmra.mxu0 %v1645
          %v1709 = vpop.f32.mrf.mxu0
          %v1710 = vadd.f32 0.0, %v1709
          %1711 = vmatmul.f32.gmra.mxu0 %v1648
          %v1712 = vpop.f32.mrf.mxu0
          %v1713 = vadd.f32 0.0, %v1712
          %1714 = vmatmul.f32.gmra.mxu0 %v1651
          %v1715 = vpop.f32.mrf.mxu0
          %v1716 = vadd.f32 0.0, %v1715
          %1717 = vmatmul.f32.gmra.mxu0 %v1654
          %v1718 = vpop.f32.mrf.mxu0
          %v1719 = vadd.f32 0.0, %v1718
          %1720 = vmatmul.f32.gmra.mxu0 %v1657
          %v1721 = vpop.f32.mrf.mxu0
          %v1722 = vadd.f32 0.0, %v1721
          %1723 = vmatmul.f32.gmra.mxu0 %v1660
          %v1724 = vpop.f32.mrf.mxu0
          %v1725 = vadd.f32 0.0, %v1724
          %1726 = vmatmul.f32.gmra.mxu0 %v1663
          %v1727 = vpop.f32.mrf.mxu0
          %v1728 = vadd.f32 0.0, %v1727
          %1729 = vmatmul.f32.gmra.mxu0 %v1666
          %v1730 = vpop.f32.mrf.mxu0
          %v1731 = vadd.f32 0.0, %v1730
          %1732 = vmatmul.f32.gmra.mxu0 %v1669
          %v1733 = vpop.f32.mrf.mxu0
          %v1734 = vadd.f32 0.0, %v1733
          %1735 = vmatmul.f32.gmra.mxu0 %v1672
          %v1736 = vpop.f32.mrf.mxu0
          %v1737 = vadd.f32 0.0, %v1736
          %1738 = vmatmul.f32.gmra.mxu0 %v1675
          %v1739 = vpop.f32.mrf.mxu0
          %v1740 = vadd.f32 0.0, %v1739
          %1741 = vmatmul.f32.gmra.mxu0 %v1678
          %v1742 = vpop.f32.mrf.mxu0
          %v1743 = vadd.f32 0.0, %v1742
          %1744 = vmatmul.f32.gmra.mxu0 %v1681
          %v1745 = vpop.f32.mrf.mxu0
          %v1746 = vadd.f32 0.0, %v1745
          %1747 = vmatmul.f32.gmra.mxu0 %v1684
          %v1748 = vpop.f32.mrf.mxu0
          %v1749 = vadd.f32 0.0, %v1748
          %1750 = vdwg.mxu0
          %1751 = vst [vmem:[#allocation12] sm:$0xff] %v1704
          %1752 = vst [vmem:[#allocation12 + $0x8] sm:$0xff] %v1707
          %1753 = vst [vmem:[#allocation12 + $0x10] sm:$0xff] %v1710
          %1754 = vst [vmem:[#allocation12 + $0x18] sm:$0xff] %v1713
          %1755 = vst [vmem:[#allocation12 + $0x20] sm:$0xff] %v1716
          %1756 = vst [vmem:[#allocation12 + $0x28] sm:$0xff] %v1719
          %1757 = vst [vmem:[#allocation12 + $0x30] sm:$0xff] %v1722
          %1758 = vst [vmem:[#allocation12 + $0x38] sm:$0xff] %v1725
          %1759 = vst [vmem:[#allocation12 + $0x40] sm:$0xff] %v1728
          %1760 = vst [vmem:[#allocation12 + $0x48] sm:$0xff] %v1731
          %1761 = vst [vmem:[#allocation12 + $0x50] sm:$0xff] %v1734
          %1762 = vst [vmem:[#allocation12 + $0x58] sm:$0xff] %v1737
          %1763 = vst [vmem:[#allocation12 + $0x60] sm:$0xff] %v1740
          %1764 = vst [vmem:[#allocation12 + $0x68] sm:$0xff] %v1743
          %1765 = vst [vmem:[#allocation12 + $0x70] sm:$0xff] %v1746
          %1766 = vst [vmem:[#allocation12 + $0x78] sm:$0xff] %v1749
          %s1767 = scalar_lea.vmem [#allocation3], 32
          %v1768 = vld [vmem:[%s1767] sm:$0xff]
          %v1769 = vld [vmem:[%s1767 + $0x8] sm:$0xff]
          %v1770 = vld [vmem:[%s1767 + $0x10] sm:$0xff]
          %v1771 = vld [vmem:[%s1767 + $0x18] sm:$0xff]
          %1772 = vxpose.xlu0.b32.start [1/16] %v1768, 128
          %1773 = vxpose.xlu0.b32.cont [2/16] %v1769, 128
          %1774 = vxpose.xlu0.b32.cont [3/16] 0.0, 128
          %1775 = vxpose.xlu0.b32.cont [4/16] 0.0, 128
          %1776 = vxpose.xlu0.b32.cont [5/16] 0.0, 128
          %1777 = vxpose.xlu0.b32.cont [6/16] 0.0, 128
          %1778 = vxpose.xlu0.b32.cont [7/16] 0.0, 128
          %1779 = vxpose.xlu0.b32.cont [8/16] 0.0, 128
          %1780 = vxpose.xlu0.b32.cont [9/16] 0.0, 128
          %1781 = vxpose.xlu0.b32.cont [10/16] 0.0, 128
          %1782 = vxpose.xlu0.b32.cont [11/16] 0.0, 128
          %1783 = vxpose.xlu0.b32.cont [12/16] 0.0, 128
          %1784 = vxpose.xlu0.b32.cont [13/16] 0.0, 128
          %1785 = vxpose.xlu0.b32.cont [14/16] 0.0, 128
          %1786 = vxpose.xlu0.b32.cont [15/16] 0.0, 128
          %1787 = vxpose.xlu0.b32.end [16/16] 0.0, 128
          %v1788 = vpop.trf.xlu0
          %v1789 = vpop.trf.xlu0
          %v1790 = vpop.trf.xlu0
          %v1791 = vpop.trf.xlu0
          %v1792 = vpop.trf.xlu0
          %v1793 = vpop.trf.xlu0
          %v1794 = vpop.trf.xlu0
          %v1795 = vpop.trf.xlu0
          %v1796 = vpop.trf.xlu0
          %v1797 = vpop.trf.xlu0
          %v1798 = vpop.trf.xlu0
          %v1799 = vpop.trf.xlu0
          %v1800 = vpop.trf.xlu0
          %v1801 = vpop.trf.xlu0
          %v1802 = vpop.trf.xlu0
          %v1803 = vpop.trf.xlu0
          %v1805 = vsel %vm1637, %v1788, 0
          %v1808 = vsel %vm1637, %v1789, 0
          %v1811 = vsel %vm1637, %v1790, 0
          %v1814 = vsel %vm1637, %v1791, 0
          %v1817 = vsel %vm1637, %v1792, 0
          %v1820 = vsel %vm1637, %v1793, 0
          %v1823 = vsel %vm1637, %v1794, 0
          %v1826 = vsel %vm1637, %v1795, 0
          %v1829 = vsel %vm1637, %v1796, 0
          %v1832 = vsel %vm1637, %v1797, 0
          %v1835 = vsel %vm1637, %v1798, 0
          %v1838 = vsel %vm1637, %v1799, 0
          %v1841 = vsel %vm1637, %v1800, 0
          %v1844 = vsel %vm1637, %v1801, 0
          %v1847 = vsel %vm1637, %v1802, 0
          %v1850 = vsel %vm1637, %v1803, 0
          %1852 = vmatpush.msra.mxu0 0.0
          %1853 = vmatpush.msra.mxu0 0.0
          %1854 = vmatpush.msra.mxu0 0.0
          %1855 = vmatpush.msra.mxu0 0.0
          %1856 = vmatpush.msra.mxu0 0.0
          %1857 = vmatpush.msra.mxu0 0.0
          %1858 = vmatpush.msra.mxu0 0.0
          %1859 = vmatpush.msra.mxu0 0.0
          %1860 = vmatpush.msra.mxu0 0.0
          %1861 = vmatpush.msra.mxu0 0.0
          %1862 = vmatpush.msra.mxu0 0.0
          %1863 = vmatpush.msra.mxu0 0.0
          %1864 = vmatpush.msra.mxu0 0.0
          %1865 = vmatpush.msra.mxu0 0.0
          %1866 = vmatpush.msra.mxu0 %v1771
          %1867 = vmatpush.msra.mxu0 %v1770
          %1868 = vmatmul.f32.gmra.mxu0 %v1805
          %v1869 = vpop.f32.mrf.mxu0
          %v1870 = vadd.f32 0.0, %v1869
          %1871 = vmatmul.f32.gmra.mxu0 %v1808
          %v1872 = vpop.f32.mrf.mxu0
          %v1873 = vadd.f32 0.0, %v1872
          %1874 = vmatmul.f32.gmra.mxu0 %v1811
          %v1875 = vpop.f32.mrf.mxu0
          %v1876 = vadd.f32 0.0, %v1875
          %1877 = vmatmul.f32.gmra.mxu0 %v1814
          %v1878 = vpop.f32.mrf.mxu0
          %v1879 = vadd.f32 0.0, %v1878
          %1880 = vmatmul.f32.gmra.mxu0 %v1817
          %v1881 = vpop.f32.mrf.mxu0
          %v1882 = vadd.f32 0.0, %v1881
          %1883 = vmatmul.f32.gmra.mxu0 %v1820
          %v1884 = vpop.f32.mrf.mxu0
          %v1885 = vadd.f32 0.0, %v1884
          %1886 = vmatmul.f32.gmra.mxu0 %v1823
          %v1887 = vpop.f32.mrf.mxu0
          %v1888 = vadd.f32 0.0, %v1887
          %1889 = vmatmul.f32.gmra.mxu0 %v1826
          %v1890 = vpop.f32.mrf.mxu0
          %v1891 = vadd.f32 0.0, %v1890
          %1892 = vmatmul.f32.gmra.mxu0 %v1829
          %v1893 = vpop.f32.mrf.mxu0
          %v1894 = vadd.f32 0.0, %v1893
          %1895 = vmatmul.f32.gmra.mxu0 %v1832
          %v1896 = vpop.f32.mrf.mxu0
          %v1897 = vadd.f32 0.0, %v1896
          %1898 = vmatmul.f32.gmra.mxu0 %v1835
          %v1899 = vpop.f32.mrf.mxu0
          %v1900 = vadd.f32 0.0, %v1899
          %1901 = vmatmul.f32.gmra.mxu0 %v1838
          %v1902 = vpop.f32.mrf.mxu0
          %v1903 = vadd.f32 0.0, %v1902
          %1904 = vmatmul.f32.gmra.mxu0 %v1841
          %v1905 = vpop.f32.mrf.mxu0
          %v1906 = vadd.f32 0.0, %v1905
          %1907 = vmatmul.f32.gmra.mxu0 %v1844
          %v1908 = vpop.f32.mrf.mxu0
          %v1909 = vadd.f32 0.0, %v1908
          %1910 = vmatmul.f32.gmra.mxu0 %v1847
          %v1911 = vpop.f32.mrf.mxu0
          %v1912 = vadd.f32 0.0, %v1911
          %1913 = vmatmul.f32.gmra.mxu0 %v1850
          %v1914 = vpop.f32.mrf.mxu0
          %v1915 = vadd.f32 0.0, %v1914
          %1916 = vdwg.mxu0
          %s1917 = scalar_lea.vmem [#allocation12], 128
          %1918 = vst [vmem:[%s1917] sm:$0xff] %v1870
          %1919 = vst [vmem:[%s1917 + $0x8] sm:$0xff] %v1873
          %1920 = vst [vmem:[%s1917 + $0x10] sm:$0xff] %v1876
          %1921 = vst [vmem:[%s1917 + $0x18] sm:$0xff] %v1879
          %1922 = vst [vmem:[%s1917 + $0x20] sm:$0xff] %v1882
          %1923 = vst [vmem:[%s1917 + $0x28] sm:$0xff] %v1885
          %1924 = vst [vmem:[%s1917 + $0x30] sm:$0xff] %v1888
          %1925 = vst [vmem:[%s1917 + $0x38] sm:$0xff] %v1891
          %1926 = vst [vmem:[%s1917 + $0x40] sm:$0xff] %v1894
          %1927 = vst [vmem:[%s1917 + $0x48] sm:$0xff] %v1897
          %1928 = vst [vmem:[%s1917 + $0x50] sm:$0xff] %v1900
          %1929 = vst [vmem:[%s1917 + $0x58] sm:$0xff] %v1903
          %1930 = vst [vmem:[%s1917 + $0x60] sm:$0xff] %v1906
          %1931 = vst [vmem:[%s1917 + $0x68] sm:$0xff] %v1909
          %1932 = vst [vmem:[%s1917 + $0x70] sm:$0xff] %v1912
          %1933 = vst [vmem:[%s1917 + $0x78] sm:$0xff] %v1915
        $region76: #{tpu_custom_call.1} parent=39 // pred_fallthru
          _
        // Predicated region
        $region77: #{tpu_custom_call.1} parent=39 // pred_check
          %p1934 = pneg %p184
        $region78: #{tpu_custom_call.1} parent=39 // pred_check_branch
          %1936 = sbr.rel (%p1934) target = $region80
        $region79: #{tpu_custom_call.1} parent=39 // pred_region
          %1938 = vsyncadd [#allocation6], 0
          %s1939 = sshll.u32 [#allocation12], 4
          %s1940 = int_to_ptr.vmem [resolvable:$true] %s1939
          %s1941 = sshll.u32 %s5, 4
          %s1942 = int_to_ptr.hbm [resolvable:$true] %s1941
          %1947 = dma.vmem_to_hbm [thread:$0]  %s1940, 4096, %s1942, [#allocation6], 128, 128, 8
        $region80: #{tpu_custom_call.1} parent=39 // pred_fallthru
          _
        // Predicated region
        $region81: #{tpu_custom_call.1} parent=39 // pred_check
          %p1948 = pneg %p184
        $region82: #{tpu_custom_call.1} parent=39 // pred_check_branch
          %1950 = sbr.rel (%p1948) target = $region84
        $region83: #{tpu_custom_call.1} parent=39 // pred_region
          %1952 = dma.done [#allocation6], 4096
        $region84: #{tpu_custom_call.1} parent=39 // pred_fallthru
          _
      $region40: #{tpu_custom_call.1} parent=5 // pred_fallthru
        _
      %p1953 = scmp.le.s32.totalorder 2, %s21
      // Predicated region
      $region85: #{tpu_custom_call.1} parent=5 // pred_check
        %p1954 = pneg %p1953
      $region86: #{tpu_custom_call.1} parent=5 // pred_check_branch
        %1956 = sbr.rel (%p1954) target = $region88
      $region87: #{tpu_custom_call.1} parent=5 // pred_region
        %s1957 = ssub.s32 %s21, 2
      $region88: #{tpu_custom_call.1} parent=5 // pred_fallthru
        _
    $region6: #{tpu_custom_call.1} parent=1 // loop_footer
      %s25 = sadd.s32 1, %s21
    $region7: #{tpu_custom_call.1} parent=1 // loop_footer_branch
      %20 = sbr.rel target = $region3
    $region8: #{tpu_custom_call.1} parent=1 // loop_exit
      _
    %1958 = vsyncpa [#allocation5], 1
    %s1959 = scalar_lea.sflag [#allocation5], 1
    %1960 = vsyncpa %s1959, 1
    %1961 = vsyncpa [#allocation8], 1
    %s1962 = scalar_lea.sflag [#allocation8], 1
    %1963 = vsyncpa %s1962, 1
    %1964 = vsyncpa [#allocation11], 1
    %s1965 = scalar_lea.sflag [#allocation11], 1
    %1966 = vsyncpa %s1965, 1
    %1967 = vsyncpa [#allocation6], 1
    %s1968 = scalar_lea.sflag [#allocation6], 1
    %1969 = vsyncpa %s1968, 1

// kernel: tpu_custom_call.1
$region0: #{tpu_custom_call.1}
  #allocation0 [shape = 'u32[]', space=smem, size = 0x4, offset = 0x4, fixed_abs, tag = 'smem constant byte address 0x4 - core index']
  #allocation1 [shape = 'u32[72,128]{1,0:T(1,128)}', space=vmem, size = 0x9000, scoped, tag = 'internal scratch']
  #allocation2 [shape = 'f32[2,128]{1,0:T(2,128)}', space=vmem, size = 0x400, scoped, tag = 'scratch operand']
  #allocation3 [shape = 'f32[2,32,128]{2,1,0:T(8,128)}', space=vmem, size = 0x8000, scoped, tag = 'scratch operand']
  %s0 = inlined_call_operand.hbm [shape: bf16[2,256], index: 0, kind: input, shape index: {}]
  %s1 = inlined_call_operand.hbm [shape: bf16[256,128], index: 1, kind: input, shape index: {}]
  %s2 = inlined_call_operand.vmem [shape: f32[1,128], index: 2, kind: input, shape index: {}]
  %s3 = inlined_call_operand.hbm [shape: bf16[128,4096], index: 3, kind: input, shape index: {}]
  %s4 = inlined_call_operand.hbm [shape: f32[1,4096], index: 4, kind: input, shape index: {}]
  %s5 = inlined_call_operand.hbm [shape: f32[2,128,128], index: 5, kind: output, shape index: {}]
  %s6 = sld [smem:[#allocation0]]
  $region89: #{tpu_custom_call.1} parent=0
    _
  %s8 = ssub.s32 1, %s6
  %s9 = scalar_select 0, %s8, %s6
  $region1: #{tpu_custom_call.1} parent=0
    #allocation4 [shape = 'u8[1024]{0}', space=vmem, size = 0x400, scoped, tag = 'input window, operand 0']
    #allocation5 [shape = 's32[2]{0}', space=sflag, size = 0x8, scoped, tag = 'scoped memory for tpu_custom_call.1']
    #allocation6 [shape = 's32[2]{0}', space=sflag, size = 0x8, scoped, tag = 'scoped memory for tpu_custom_call.1']
    #allocation7 [shape = 'u8[65536]{0}', space=vmem, size = 0x10000, scoped, tag = 'input window, operand 1']
    #allocation8 [shape = 's32[2]{0}', space=sflag, size = 0x8, scoped, tag = 'scoped memory for tpu_custom_call.1']
    #allocation9 [shape = 'u8[1048576]{0}', space=vmem, size = 0x100000, scoped, tag = 'input window, operand 3']
    #allocation10 [shape = 'u8[16384]{0}', space=vmem, size = 0x4000, scoped, tag = 'input window, operand 4']
    #allocation11 [shape = 's32[2]{0}', space=sflag, size = 0x8, scoped, tag = 'scoped memory for tpu_custom_call.1']
    #allocation12 [shape = 'u8[131072]{0}', space=vmem, size = 0x20000, scoped, tag = 'output window, operand 0, single buffered']
    %10 = vsyncpa [#allocation5], 0
    %s11 = scalar_lea.sflag [#allocation5], 1
    %12 = vsyncpa %s11, 0
    %13 = vsyncpa [#allocation8], 0
    %s14 = scalar_lea.sflag [#allocation8], 1
    %15 = vsyncpa %s14, 0
    %16 = vsyncpa [#allocation11], 0
    %s17 = scalar_lea.sflag [#allocation11], 1
    %18 = vsyncpa %s17, 0
    %19 = vsyncpa [#allocation6], 0
    loop: start=0, step=1, limit=6
    $region2: #{tpu_custom_call.1} parent=1 // loop_pre_header
      _
    $region3: #{tpu_custom_call.1} parent=1 // loop_header
      %s21 = sphi 0, %s25
      %p22 = scmp.ge.s32.totalorder %s21, 6
      %s35 = sphi 0, %s37
      %s38 = sphi 0, %s35
      %s39 = sphi 0, %s38
      %s55 = sphi 0, %s39
      %s65 = sphi 0, %s67
      %s68 = sphi 0, %s65
      %s69 = sphi 0, %s68
      %s85 = sphi 0, %s69
      %s89 = sphi 0, %s89
      %s91 = sphi 0, %s89
      %s92 = sphi 0, %s91
      %s106 = sphi 0, %s92
      %s118 = sphi 0, %s120
      %s121 = sphi 0, %s118
      %s122 = sphi 0, %s121
      %s138 = sphi 0, %s122
      %s150 = sphi 0, %s152
      %s153 = sphi 0, %s150
      %s154 = sphi 0, %s153
      %s170 = sphi 0, %s154
      %s174 = sphi 0, %s174
      %s176 = sphi 0, %s174
      %s177 = sphi 0, %s176
      %s191 = sphi 0, %s177
    $region4: #{tpu_custom_call.1} parent=1 // loop_header_branch
      %24 = sbr.rel (%p22) target = $region8
    $region5: #{tpu_custom_call.1} parent=1 // loop_body
      %s26 = ssub.s32 %s21, 1
      %s27 = ssub.s32 %s21, 2
      %s28 = sadd.s32 %s21, 1
      %p29 = scmp.lt.s32.totalorder %s21, 1
      %s30 = scalar_select %p29, %s21, 1
      %p31 = scmp.lt.s32.totalorder %s28, 1
      %s32 = scalar_select %p31, %s28, 1
      %s33 = ssub.s32 %s30, %s32
      %p34 = scmp.eq.s32.totalorder %s33, 0
      %s36 = sadd.s32 %s35, 1
      %s37 = scalar_select %p34, %s35, %s36
      %p40 = pneg %p34
      %p41 = scmp.eq.s32.totalorder %s21, 3
      %p42 = por %p40, %p41
      %p43 = scmp.ne.s32.totalorder %s35, %s38
      %p44 = scmp.eq.s32.totalorder %s21, 0
      %p45 = por %p43, %p44
      %p46 = scmp.ne.s32.totalorder %s35, %s38
      %p47 = scmp.eq.s32.totalorder %s26, 3
      %p48 = por %p46, %p47
      %p49 = scmp.ne.s32.totalorder %s38, %s39
      %p50 = scmp.eq.s32.totalorder %s26, 0
      %p51 = por %p49, %p50
      %p52 = scmp.ne.s32.totalorder %s38, %s39
      %p53 = scmp.eq.s32.totalorder %s27, 3
      %p54 = por %p52, %p53
      %p56 = scmp.ne.s32.totalorder %s39, %s55
      %p57 = scmp.eq.s32.totalorder %s27, 0
      %p58 = por %p56, %p57
      %p59 = scmp.lt.s32.totalorder %s21, 1
      %s60 = scalar_select %p59, %s21, 1
      %p61 = scmp.lt.s32.totalorder %s28, 1
      %s62 = scalar_select %p61, %s28, 1
      %s63 = ssub.s32 %s60, %s62
      %p64 = scmp.eq.s32.totalorder %s63, 0
      %s66 = sadd.s32 %s65, 1
      %s67 = scalar_select %p64, %s65, %s66
      %p70 = pneg %p64
      %p71 = scmp.eq.s32.totalorder %s21, 3
      %p72 = por %p70, %p71
      %p73 = scmp.ne.s32.totalorder %s65, %s68
      %p74 = scmp.eq.s32.totalorder %s21, 0
      %p75 = por %p73, %p74
      %p76 = scmp.ne.s32.totalorder %s65, %s68
      %p77 = scmp.eq.s32.totalorder %s26, 3
      %p78 = por %p76, %p77
      %p79 = scmp.ne.s32.totalorder %s68, %s69
      %p80 = scmp.eq.s32.totalorder %s26, 0
      %p81 = por %p79, %p80
      %p82 = scmp.ne.s32.totalorder %s68, %s69
      %p83 = scmp.eq.s32.totalorder %s27, 3
      %p84 = por %p82, %p83
      %p86 = scmp.ne.s32.totalorder %s69, %s85
      %p87 = scmp.eq.s32.totalorder %s27, 0
      %p88 = por %p86, %p87
      %s90 = sadd.s32 %s89, 1
      %p93 = scmp.eq.s32.totalorder %s21, 3
      %p94 = scmp.ne.s32.totalorder %s89, %s91
      %p95 = scmp.eq.s32.totalorder %s21, 0
      %p96 = por %p94, %p95
      %p97 = scmp.ne.s32.totalorder %s89, %s91
      %p98 = scmp.eq.s32.totalorder %s26, 3
      %p99 = por %p97, %p98
      %p100 = scmp.ne.s32.totalorder %s91, %s92
      %p101 = scmp.eq.s32.totalorder %s26, 0
      %p102 = por %p100, %p101
      %p103 = scmp.ne.s32.totalorder %s91, %s92
      %p104 = scmp.eq.s32.totalorder %s27, 3
      %p105 = por %p103, %p104
      %p107 = scmp.ne.s32.totalorder %s92, %s106
      %p108 = scmp.eq.s32.totalorder %s27, 0
      %p109 = por %p107, %p108
      %s110 = ssub.s32 %s21, 2
      %p111 = scmp.gt.s32.totalorder %s110, 0
      %s112 = scalar_select %p111, %s110, 0
      %s113 = ssub.s32 %s28, 2
      %p114 = scmp.gt.s32.totalorder %s113, 0
      %s115 = scalar_select %p114, %s113, 0
      %s116 = ssub.s32 %s112, %s115
      %p117 = scmp.eq.s32.totalorder %s116, 0
      %s119 = sadd.s32 %s118, 1
      %s120 = scalar_select %p117, %s118, %s119
      %p123 = pneg %p117
      %p124 = scmp.eq.s32.totalorder %s21, 3
      %p125 = por %p123, %p124
      %p126 = scmp.ne.s32.totalorder %s118, %s121
      %p127 = scmp.eq.s32.totalorder %s21, 0
      %p128 = por %p126, %p127
      %p129 = scmp.ne.s32.totalorder %s118, %s121
      %p130 = scmp.eq.s32.totalorder %s26, 3
      %p131 = por %p129, %p130
      %p132 = scmp.ne.s32.totalorder %s121, %s122
      %p133 = scmp.eq.s32.totalorder %s26, 0
      %p134 = por %p132, %p133
      %p135 = scmp.ne.s32.totalorder %s121, %s122
      %p136 = scmp.eq.s32.totalorder %s27, 3
      %p137 = por %p135, %p136
      %p139 = scmp.ne.s32.totalorder %s122, %s138
      %p140 = scmp.eq.s32.totalorder %s27, 0
      %p141 = por %p139, %p140
      %s142 = ssub.s32 %s21, 2
      %p143 = scmp.gt.s32.totalorder %s142, 0
      %s144 = scalar_select %p143, %s142, 0
      %s145 = ssub.s32 %s28, 2
      %p146 = scmp.gt.s32.totalorder %s145, 0
      %s147 = scalar_select %p146, %s145, 0
      %s148 = ssub.s32 %s144, %s147
      %p149 = scmp.eq.s32.totalorder %s148, 0
      %s151 = sadd.s32 %s150, 1
      %s152 = scalar_select %p149, %s150, %s151
      %p155 = pneg %p149
      %p156 = scmp.eq.s32.totalorder %s21, 3
      %p157 = por %p155, %p156
      %p158 = scmp.ne.s32.totalorder %s150, %s153
      %p159 = scmp.eq.s32.totalorder %s21, 0
      %p160 = por %p158, %p159
      %p161 = scmp.ne.s32.totalorder %s150, %s153
      %p162 = scmp.eq.s32.totalorder %s26, 3
      %p163 = por %p161, %p162
      %p164 = scmp.ne.s32.totalorder %s153, %s154
      %p165 = scmp.eq.s32.totalorder %s26, 0
      %p166 = por %p164, %p165
      %p167 = scmp.ne.s32.totalorder %s153, %s154
      %p168 = scmp.eq.s32.totalorder %s27, 3
      %p169 = por %p167, %p168
      %p171 = scmp.ne.s32.totalorder %s154, %s170
      %p172 = scmp.eq.s32.totalorder %s27, 0
      %p173 = por %p171, %p172
      %s175 = sadd.s32 %s174, 1
      %p178 = scmp.eq.s32.totalorder %s21, 3
      %p179 = scmp.ne.s32.totalorder %s174, %s176
      %p180 = scmp.eq.s32.totalorder %s21, 0
      %p181 = por %p179, %p180
      %p182 = scmp.ne.s32.totalorder %s174, %s176
      %p183 = scmp.eq.s32.totalorder %s26, 3
      %p184 = por %p182, %p183
      %p185 = scmp.ne.s32.totalorder %s176, %s177
      %p186 = scmp.eq.s32.totalorder %s26, 0
      %p187 = por %p185, %p186
      %p188 = scmp.ne.s32.totalorder %s176, %s177
      %p189 = scmp.eq.s32.totalorder %s27, 3
      %p190 = por %p188, %p189
      %p192 = scmp.ne.s32.totalorder %s177, %s191
      %p193 = scmp.eq.s32.totalorder %s27, 0
      %p194 = por %p192, %p193
      %p195 = scmp.le.s32.totalorder 1, %s21
      %p196 = scmp.lt.s32.totalorder %s21, 5
      %p197 = pnand %p195, %p196
      %p198 = pneg %p197
      // Predicated region
      $region9: #{tpu_custom_call.1} parent=5 // pred_check
        _
      $region10: #{tpu_custom_call.1} parent=5 // pred_check_branch
        %200 = sbr.rel (%p197) target = $region12
      $region11: #{tpu_custom_call.1} parent=5 // pred_region
        %s201 = ssub.s32 %s21, 1
        // Predicated region
        $region13: #{tpu_custom_call.1} parent=11 // pred_check
          %p202 = pneg %p102
        $region14: #{tpu_custom_call.1} parent=11 // pred_check_branch
          %204 = sbr.rel (%p202) target = $region16
        $region15: #{tpu_custom_call.1} parent=11 // pred_region
          _
        $region16: #{tpu_custom_call.1} parent=11 // pred_fallthru
          _
      $region12: #{tpu_custom_call.1} parent=5 // pred_fallthru
        _
      %p205 = scmp.lt.s32.totalorder %s21, 4
      // Predicated region
      $region17: #{tpu_custom_call.1} parent=5 // pred_check
        %p206 = pneg %p205
      $region18: #{tpu_custom_call.1} parent=5 // pred_check_branch
        %208 = sbr.rel (%p206) target = $region20
      $region19: #{tpu_custom_call.1} parent=5 // pred_region
        // Predicated region
        $region21: #{tpu_custom_call.1} parent=19 // pred_check
          %p209 = pneg %p45
        $region22: #{tpu_custom_call.1} parent=19 // pred_check_branch
          %211 = sbr.rel (%p209) target = $region24
        $region23: #{tpu_custom_call.1} parent=19 // pred_region
          %s212 = sand.u32 %s35, 1
          %s213 = scalar_lea.sflag [#allocation5], %s212
          %s214 = sand.u32 %s35, 1
          %s215 = scalar_lea.vmem [#allocation4], %s214
          %p216 = scmp.lt.s32.totalorder %s21, 1
          %s217 = scalar_select %p216, %s21, 1
          %219 = vsyncadd %s213, 0
          %s220 = scalar_lea.hbm %s0, %s217
          %s222 = sshll.u32 %s220, 4
          %s223 = int_to_ptr.hbm [resolvable:$true] %s222
          %s224 = sshll.u32 %s215, 4
          %s225 = int_to_ptr.vmem [resolvable:$true] %s224
          %227 = dma.hbm_to_vmem [thread:$0]  %s223, 16, %s225, %s213
        $region24: #{tpu_custom_call.1} parent=19 // pred_fallthru
          _
        // Predicated region
        $region25: #{tpu_custom_call.1} parent=19 // pred_check
          %p228 = pneg %p75
        $region26: #{tpu_custom_call.1} parent=19 // pred_check_branch
          %230 = sbr.rel (%p228) target = $region28
        $region27: #{tpu_custom_call.1} parent=19 // pred_region
          %s231 = sand.u32 %s21, 1
          %s232 = scalar_lea.sflag [#allocation8], %s231
          %s233 = sand.u32 %s65, 1
          %s234 = smul.addr %s233, 64
          %s235 = scalar_lea.vmem [#allocation7], %s234
          %p236 = scmp.lt.s32.totalorder %s21, 1
          %s237 = scalar_select %p236, %s21, 1
          %s238 = smul.u32 16, %s237
          %240 = vsyncadd %s232, 0
          %s241 = smul.addr %s238, 4
          %s242 = scalar_lea.hbm %s1, %s241
          %s243 = sshll.u32 %s242, 4
          %s244 = int_to_ptr.hbm [resolvable:$true] %s243
          %s245 = sshll.u32 %s235, 4
          %s246 = int_to_ptr.vmem [resolvable:$true] %s245
          %251 = dma.hbm_to_vmem [thread:$0]  %s244, 1024, %s246, %s232, 64, 64, 4
        $region28: #{tpu_custom_call.1} parent=19 // pred_fallthru
          _
        // Predicated region
        $region29: #{tpu_custom_call.1} parent=19 // pred_check
          %p252 = pneg %p128
        $region30: #{tpu_custom_call.1} parent=19 // pred_check_branch
          %254 = sbr.rel (%p252) target = $region32
        $region31: #{tpu_custom_call.1} parent=19 // pred_region
          %s255 = sand.u32 %s21, 1
          %s256 = scalar_lea.sflag [#allocation8], %s255
          %s257 = sand.u32 %s118, 1
          %s258 = smul.addr %s257, 1024
          %s259 = scalar_lea.vmem [#allocation9], %s258
          %s260 = ssub.s32 %s21, 2
          %p261 = scmp.gt.s32.totalorder %s260, 0
          %s262 = scalar_select %p261, %s260, 0
          %s263 = smul.u32 16, %s262
          %265 = vsyncadd %s256, 0
          %s266 = smul.addr %s263, 4
          %s267 = scalar_lea.hbm %s3, %s266
          %s268 = sshll.u32 %s267, 4
          %s269 = int_to_ptr.hbm [resolvable:$true] %s268
          %s270 = sshll.u32 %s259, 4
          %s271 = int_to_ptr.vmem [resolvable:$true] %s270
          %276 = dma.hbm_to_vmem [thread:$0]  %s269, 16384, %s271, %s256, 2048, 1024, 64
        $region32: #{tpu_custom_call.1} parent=19 // pred_fallthru
          _
        // Predicated region
        $region33: #{tpu_custom_call.1} parent=19 // pred_check
          %p277 = pneg %p160
        $region34: #{tpu_custom_call.1} parent=19 // pred_check_branch
          %279 = sbr.rel (%p277) target = $region36
        $region35: #{tpu_custom_call.1} parent=19 // pred_region
          %s280 = sand.u32 %s150, 1
          %s281 = scalar_lea.sflag [#allocation11], %s280
          %s282 = sand.u32 %s150, 1
          %s283 = smul.addr %s282, 16
          %s284 = scalar_lea.vmem [#allocation10], %s283
          %s285 = ssub.s32 %s21, 2
          %p286 = scmp.gt.s32.totalorder %s285, 0
          %s287 = scalar_select %p286, %s285, 0
          %s288 = smul.u32 16, %s287
          %290 = vsyncadd %s281, 0
          %s291 = scalar_lea.hbm %s4, %s288
          %s293 = sshll.u32 %s291, 4
          %s294 = int_to_ptr.hbm [resolvable:$true] %s293
          %s295 = sshll.u32 %s284, 4
          %s296 = int_to_ptr.vmem [resolvable:$true] %s295
          %298 = dma.hbm_to_vmem [thread:$0]  %s294, 256, %s296, %s281
        $region36: #{tpu_custom_call.1} parent=19 // pred_fallthru
          _
      $region20: #{tpu_custom_call.1} parent=5 // pred_fallthru
        _
      %p299 = scmp.le.s32.totalorder 1, %s21
      %p300 = scmp.lt.s32.totalorder %s21, 5
      %p301 = pnand %p299, %p300
      %p302 = pneg %p301
      // Predicated region
      $region37: #{tpu_custom_call.1} parent=5 // pred_check
        _
      $region38: #{tpu_custom_call.1} parent=5 // pred_check_branch
        %304 = sbr.rel (%p301) target = $region40
      $region39: #{tpu_custom_call.1} parent=5 // pred_region
        %s305 = ssub.s32 %s21, 1
        %s306 = sand.u32 %s38, 1
        %s307 = scalar_lea.sflag [#allocation5], %s306
        %s308 = sand.u32 %s38, 1
        %s309 = scalar_lea.vmem [#allocation4], %s308
        // Predicated region
        $region41: #{tpu_custom_call.1} parent=39 // pred_check
          %p310 = pneg %p51
        $region42: #{tpu_custom_call.1} parent=39 // pred_check_branch
          %312 = sbr.rel (%p310) target = $region44
        $region43: #{tpu_custom_call.1} parent=39 // pred_region
          %314 = dma.done %s307, 16
        $region44: #{tpu_custom_call.1} parent=39 // pred_fallthru
          _
        %s315 = sand.u32 %s26, 1
        %s316 = scalar_lea.sflag [#allocation8], %s315
        %s317 = sand.u32 %s68, 1
        %s318 = smul.addr %s317, 64
        %s319 = scalar_lea.vmem [#allocation7], %s318
        // Predicated region
        $region45: #{tpu_custom_call.1} parent=39 // pred_check
          %p320 = pneg %p81
        $region46: #{tpu_custom_call.1} parent=39 // pred_check_branch
          %322 = sbr.rel (%p320) target = $region48
        $region47: #{tpu_custom_call.1} parent=39 // pred_region
          %324 = dma.done %s316, 1024
        $region48: #{tpu_custom_call.1} parent=39 // pred_fallthru
          _
        %s325 = sand.u32 %s26, 1
        %s326 = scalar_lea.sflag [#allocation8], %s325
        %s327 = sand.u32 %s121, 1
        %s328 = smul.addr %s327, 1024
        %s329 = scalar_lea.vmem [#allocation9], %s328
        // Predicated region
        $region49: #{tpu_custom_call.1} parent=39 // pred_check
          %p330 = pneg %p134
        $region50: #{tpu_custom_call.1} parent=39 // pred_check_branch
          %332 = sbr.rel (%p330) target = $region52
        $region51: #{tpu_custom_call.1} parent=39 // pred_region
          %334 = dma.done %s326, 16384
        $region52: #{tpu_custom_call.1} parent=39 // pred_fallthru
          _
        %s335 = sand.u32 %s153, 1
        %s336 = scalar_lea.sflag [#allocation11], %s335
        %s337 = sand.u32 %s153, 1
        %s338 = smul.addr %s337, 16
        %s339 = scalar_lea.vmem [#allocation10], %s338
        // Predicated region
        $region53: #{tpu_custom_call.1} parent=39 // pred_check
          %p340 = pneg %p166
        $region54: #{tpu_custom_call.1} parent=39 // pred_check_branch
          %342 = sbr.rel (%p340) target = $region56
        $region55: #{tpu_custom_call.1} parent=39 // pred_region
          %344 = dma.done %s336, 256
        $region56: #{tpu_custom_call.1} parent=39 // pred_fallthru
          _
        %s345 = sand.u32 %s38, 1
        %s346 = scalar_lea.sflag [#allocation5], %s345
        %s347 = sand.u32 %s38, 1
        %s348 = scalar_lea.vmem [#allocation4], %s347
        %p349 = pneg %p51
        %p350 = pneg %p48
        %s351 = sand.u32 %s26, 1
        %s352 = scalar_lea.sflag [#allocation8], %s351
        %s353 = sand.u32 %s68, 1
        %s354 = smul.addr %s353, 64
        %s355 = scalar_lea.vmem [#allocation7], %s354
        %p356 = pneg %p81
        %p357 = pneg %p78
        %p358 = pneg %p102
        %p359 = pneg %p99
        %s360 = sand.u32 %s26, 1
        %s361 = scalar_lea.sflag [#allocation8], %s360
        %s362 = sand.u32 %s121, 1
        %s363 = smul.addr %s362, 1024
        %s364 = scalar_lea.vmem [#allocation9], %s363
        %p365 = pneg %p134
        %p366 = pneg %p131
        %s367 = sand.u32 %s153, 1
        %s368 = scalar_lea.sflag [#allocation11], %s367
        %s369 = sand.u32 %s153, 1
        %s370 = smul.addr %s369, 16
        %s371 = scalar_lea.vmem [#allocation10], %s370
        %p372 = pneg %p166
        %p373 = pneg %p163
        %p374 = pneg %p187
        %p375 = pneg %p184
        %p376 = scmp.lt.s32.totalorder %s26, 1
        %s377 = scalar_select %p376, %s26, 1
        %p378 = scmp.lt.s32.totalorder %s26, 1
        %s379 = scalar_select %p378, %s26, 1
        %s380 = smul.u32 16, %s379
        %s381 = ssub.s32 %s26, 2
        %p382 = scmp.gt.s32.totalorder %s381, 0
        %s383 = scalar_select %p382, %s381, 0
        %s384 = smul.u32 16, %s383
        %s385 = ssub.s32 %s26, 2
        %p386 = scmp.gt.s32.totalorder %s385, 0
        %s387 = scalar_select %p386, %s385, 0
        %s388 = smul.u32 16, %s387
        %p389 = scmp.eq.s32.totalorder %s26, 0
        // Predicated region
        $region57: #{tpu_custom_call.1} parent=39 // pred_check
          %p390 = pneg %p389
        $region58: #{tpu_custom_call.1} parent=39 // pred_check_branch
          %392 = sbr.rel (%p390) target = $region60
        $region59: #{tpu_custom_call.1} parent=39 // pred_region
          %393 = vst [vmem:[#allocation2] sm:$0x3] 0.0
        $region60: #{tpu_custom_call.1} parent=39 // pred_fallthru
          _
        %p394 = scmp.lt.s32.totalorder %s26, 2
        // Predicated region
        $region61: #{tpu_custom_call.1} parent=39 // pred_check
          %p395 = pneg %p394
        $region62: #{tpu_custom_call.1} parent=39 // pred_check_branch
          %397 = sbr.rel (%p395) target = $region64
        $region63: #{tpu_custom_call.1} parent=39 // pred_region
          %v398 = vld [vmem:[#allocation2] sm:$0x3]
          %v399 = vld [vmem:[%s309] sm:$0x1]
          %v400 = vld [vmem:[%s319] sm:$0xf]
          %v401 = vld [vmem:[%s319 + $0x4] sm:$0xf]
          %v402 = vld [vmem:[%s319 + $0x8] sm:$0xf]
          %v403 = vld [vmem:[%s319 + $0xc] sm:$0xf]
          %v404 = vld [vmem:[%s319 + $0x10] sm:$0xf]
          %v405 = vld [vmem:[%s319 + $0x14] sm:$0xf]
          %v406 = vld [vmem:[%s319 + $0x18] sm:$0xf]
          %v407 = vld [vmem:[%s319 + $0x1c] sm:$0xf]
          %v408 = vld [vmem:[%s319 + $0x20] sm:$0xf]
          %v409 = vld [vmem:[%s319 + $0x24] sm:$0xf]
          %v410 = vld [vmem:[%s319 + $0x28] sm:$0xf]
          %v411 = vld [vmem:[%s319 + $0x2c] sm:$0xf]
          %v412 = vld [vmem:[%s319 + $0x30] sm:$0xf]
          %v413 = vld [vmem:[%s319 + $0x34] sm:$0xf]
          %v414 = vld [vmem:[%s319 + $0x38] sm:$0xf]
          %v415 = vld [vmem:[%s319 + $0x3c] sm:$0xf]
          %v432 = vunpack.c.l.b16 %v400
          %v433 = vunpack.c.l.b16 %v401
          %v434 = vunpack.c.l.b16 %v402
          %v435 = vunpack.c.l.b16 %v403
          %v436 = vunpack.c.l.b16 %v404
          %v437 = vunpack.c.l.b16 %v405
          %v438 = vunpack.c.l.b16 %v406
          %v439 = vunpack.c.l.b16 %v407
          %v440 = vunpack.c.l.b16 %v408
          %v441 = vunpack.c.l.b16 %v409
          %v442 = vunpack.c.l.b16 %v410
          %v443 = vunpack.c.l.b16 %v411
          %v444 = vunpack.c.l.b16 %v412
          %v445 = vunpack.c.l.b16 %v413
          %v446 = vunpack.c.l.b16 %v414
          %v447 = vunpack.c.l.b16 %v415
          %v448 = vpack.c.b16 %v433, %v432
          %v449 = vpack.c.b16 %v435, %v434
          %v450 = vpack.c.b16 %v437, %v436
          %v451 = vpack.c.b16 %v439, %v438
          %v452 = vpack.c.b16 %v441, %v440
          %v453 = vpack.c.b16 %v443, %v442
          %v454 = vpack.c.b16 %v445, %v444
          %v455 = vpack.c.b16 %v447, %v446
          %464 = vmatpush.bf16.msra.mxu0 %v455
          %465 = vmatpush.bf16.msra.mxu0 %v454
          %466 = vmatpush.bf16.msra.mxu0 %v453
          %467 = vmatpush.bf16.msra.mxu0 %v452
          %468 = vmatpush.bf16.msra.mxu0 %v451
          %469 = vmatpush.bf16.msra.mxu0 %v450
          %470 = vmatpush.bf16.msra.mxu0 %v449
          %471 = vmatpush.bf16.msra.mxu0 %v448
          %472 = vmatmul.bf16.gmra.mxu0 %v399
          %v473 = vpop.f32.mrf.mxu0
          %v474 = vadd.f32 0.0, %v473
          %v475 = vpop.f32.mrf.mxu0
          %476 = vdwg.mxu0
          %v477 = vadd.f32 %v398, %v474
          %478 = vst [vmem:[#allocation2] sm:$0x3] %v477
        $region64: #{tpu_custom_call.1} parent=39 // pred_fallthru
          _
        %p479 = scmp.eq.s32.totalorder %s26, 1
        // Predicated region
        $region65: #{tpu_custom_call.1} parent=39 // pred_check
          %p480 = pneg %p479
        $region66: #{tpu_custom_call.1} parent=39 // pred_check_branch
          %482 = sbr.rel (%p480) target = $region68
        $region67: #{tpu_custom_call.1} parent=39 // pred_region
          %v483 = vld [vmem:[#allocation2] sm:$0x3]
          %v484 = vld [vmem:[%s2] sm:$0x1]
          %v486 = vperm.slane %v484, 0
          %v488 = vadd.f32 %v483, %v486
          %v489 = vmax.f32 %v488, 0.0
          %490 = vst [vmem:[#allocation2] sm:$0x3] %v489
        $region68: #{tpu_custom_call.1} parent=39 // pred_fallthru
          _
        %p491 = scmp.ge.s32.totalorder %s26, 2
        // Predicated region
        $region69: #{tpu_custom_call.1} parent=39 // pred_check
          %p492 = pneg %p491
        $region70: #{tpu_custom_call.1} parent=39 // pred_check_branch
          %494 = sbr.rel (%p492) target = $region72
        $region71: #{tpu_custom_call.1} parent=39 // pred_region
          %s495 = ssub.s32 %s26, 2
          %v496 = vld [vmem:[#allocation2] sm:$0x3]
          %v497 = vpack.c.bf16 %v496, %v496
          %v498 = vld [vmem:[%s329] sm:$0xff]
          %v499 = vld [vmem:[%s329 + $0x8] sm:$0xff]
          %v500 = vld [vmem:[%s329 + $0x10] sm:$0xff]
          %v501 = vld [vmem:[%s329 + $0x18] sm:$0xff]
          %v502 = vld [vmem:[%s329 + $0x20] sm:$0xff]
          %v503 = vld [vmem:[%s329 + $0x28] sm:$0xff]
          %v504 = vld [vmem:[%s329 + $0x30] sm:$0xff]
          %v505 = vld [vmem:[%s329 + $0x38] sm:$0xff]
          %v506 = vld [vmem:[%s329 + $0x40] sm:$0xff]
          %v507 = vld [vmem:[%s329 + $0x48] sm:$0xff]
          %v508 = vld [vmem:[%s329 + $0x50] sm:$0xff]
          %v509 = vld [vmem:[%s329 + $0x58] sm:$0xff]
          %v510 = vld [vmem:[%s329 + $0x60] sm:$0xff]
          %v511 = vld [vmem:[%s329 + $0x68] sm:$0xff]
          %v512 = vld [vmem:[%s329 + $0x70] sm:$0xff]
          %v513 = vld [vmem:[%s329 + $0x78] sm:$0xff]
          %v514 = vld [vmem:[%s329 + $0x80] sm:$0xff]
          %v515 = vld [vmem:[%s329 + $0x88] sm:$0xff]
          %v516 = vld [vmem:[%s329 + $0x90] sm:$0xff]
          %v517 = vld [vmem:[%s329 + $0x98] sm:$0xff]
          %v518 = vld [vmem:[%s329 + $0xa0] sm:$0xff]
          %v519 = vld [vmem:[%s329 + $0xa8] sm:$0xff]
          %v520 = vld [vmem:[%s329 + $0xb0] sm:$0xff]
          %v521 = vld [vmem:[%s329 + $0xb8] sm:$0xff]
          %v522 = vld [vmem:[%s329 + $0xc0] sm:$0xff]
          %v523 = vld [vmem:[%s329 + $0xc8] sm:$0xff]
          %v524 = vld [vmem:[%s329 + $0xd0] sm:$0xff]
          %v525 = vld [vmem:[%s329 + $0xd8] sm:$0xff]
          %v526 = vld [vmem:[%s329 + $0xe0] sm:$0xff]
          %v527 = vld [vmem:[%s329 + $0xe8] sm:$0xff]
          %v528 = vld [vmem:[%s329 + $0xf0] sm:$0xff]
          %v529 = vld [vmem:[%s329 + $0xf8] sm:$0xff]
          %v530 = vld [vmem:[%s329 + $0x100] sm:$0xff]
          %v531 = vld [vmem:[%s329 + $0x108] sm:$0xff]
          %v532 = vld [vmem:[%s329 + $0x110] sm:$0xff]
          %v533 = vld [vmem:[%s329 + $0x118] sm:$0xff]
          %v534 = vld [vmem:[%s329 + $0x120] sm:$0xff]
          %v535 = vld [vmem:[%s329 + $0x128] sm:$0xff]
          %v536 = vld [vmem:[%s329 + $0x130] sm:$0xff]
          %v537 = vld [vmem:[%s329 + $0x138] sm:$0xff]
          %v538 = vld [vmem:[%s329 + $0x140] sm:$0xff]
          %v539 = vld [vmem:[%s329 + $0x148] sm:$0xff]
          %v540 = vld [vmem:[%s329 + $0x150] sm:$0xff]
          %v541 = vld [vmem:[%s329 + $0x158] sm:$0xff]
          %v542 = vld [vmem:[%s329 + $0x160] sm:$0xff]
          %v543 = vld [vmem:[%s329 + $0x168] sm:$0xff]
          %v544 = vld [vmem:[%s329 + $0x170] sm:$0xff]
          %v545 = vld [vmem:[%s329 + $0x178] sm:$0xff]
          %v546 = vld [vmem:[%s329 + $0x180] sm:$0xff]
          %v547 = vld [vmem:[%s329 + $0x188] sm:$0xff]
          %v548 = vld [vmem:[%s329 + $0x190] sm:$0xff]
          %v549 = vld [vmem:[%s329 + $0x198] sm:$0xff]
          %v550 = vld [vmem:[%s329 + $0x1a0] sm:$0xff]
          %v551 = vld [vmem:[%s329 + $0x1a8] sm:$0xff]
          %v552 = vld [vmem:[%s329 + $0x1b0] sm:$0xff]
          %v553 = vld [vmem:[%s329 + $0x1b8] sm:$0xff]
          %v554 = vld [vmem:[%s329 + $0x1c0] sm:$0xff]
          %v555 = vld [vmem:[%s329 + $0x1c8] sm:$0xff]
          %v556 = vld [vmem:[%s329 + $0x1d0] sm:$0xff]
          %v557 = vld [vmem:[%s329 + $0x1d8] sm:$0xff]
          %v558 = vld [vmem:[%s329 + $0x1e0] sm:$0xff]
          %v559 = vld [vmem:[%s329 + $0x1e8] sm:$0xff]
          %v560 = vld [vmem:[%s329 + $0x1f0] sm:$0xff]
          %v561 = vld [vmem:[%s329 + $0x1f8] sm:$0xff]
          %v562 = vld [vmem:[%s329 + $0x200] sm:$0xff]
          %v563 = vld [vmem:[%s329 + $0x208] sm:$0xff]
          %v564 = vld [vmem:[%s329 + $0x210] sm:$0xff]
          %v565 = vld [vmem:[%s329 + $0x218] sm:$0xff]
          %v566 = vld [vmem:[%s329 + $0x220] sm:$0xff]
          %v567 = vld [vmem:[%s329 + $0x228] sm:$0xff]
          %v568 = vld [vmem:[%s329 + $0x230] sm:$0xff]
          %v569 = vld [vmem:[%s329 + $0x238] sm:$0xff]
          %v570 = vld [vmem:[%s329 + $0x240] sm:$0xff]
          %v571 = vld [vmem:[%s329 + $0x248] sm:$0xff]
          %v572 = vld [vmem:[%s329 + $0x250] sm:$0xff]
          %v573 = vld [vmem:[%s329 + $0x258] sm:$0xff]
          %v574 = vld [vmem:[%s329 + $0x260] sm:$0xff]
          %v575 = vld [vmem:[%s329 + $0x268] sm:$0xff]
          %v576 = vld [vmem:[%s329 + $0x270] sm:$0xff]
          %v577 = vld [vmem:[%s329 + $0x278] sm:$0xff]
          %v578 = vld [vmem:[%s329 + $0x280] sm:$0xff]
          %v579 = vld [vmem:[%s329 + $0x288] sm:$0xff]
          %v580 = vld [vmem:[%s329 + $0x290] sm:$0xff]
          %v581 = vld [vmem:[%s329 + $0x298] sm:$0xff]
          %v582 = vld [vmem:[%s329 + $0x2a0] sm:$0xff]
          %v583 = vld [vmem:[%s329 + $0x2a8] sm:$0xff]
          %v584 = vld [vmem:[%s329 + $0x2b0] sm:$0xff]
          %v585 = vld [vmem:[%s329 + $0x2b8] sm:$0xff]
          %v586 = vld [vmem:[%s329 + $0x2c0] sm:$0xff]
          %v587 = vld [vmem:[%s329 + $0x2c8] sm:$0xff]
          %v588 = vld [vmem:[%s329 + $0x2d0] sm:$0xff]
          %v589 = vld [vmem:[%s329 + $0x2d8] sm:$0xff]
          %v590 = vld [vmem:[%s329 + $0x2e0] sm:$0xff]
          %v591 = vld [vmem:[%s329 + $0x2e8] sm:$0xff]
          %v592 = vld [vmem:[%s329 + $0x2f0] sm:$0xff]
          %v593 = vld [vmem:[%s329 + $0x2f8] sm:$0xff]
          %v594 = vld [vmem:[%s329 + $0x300] sm:$0xff]
          %v595 = vld [vmem:[%s329 + $0x308] sm:$0xff]
          %v596 = vld [vmem:[%s329 + $0x310] sm:$0xff]
          %v597 = vld [vmem:[%s329 + $0x318] sm:$0xff]
          %v598 = vld [vmem:[%s329 + $0x320] sm:$0xff]
          %v599 = vld [vmem:[%s329 + $0x328] sm:$0xff]
          %v600 = vld [vmem:[%s329 + $0x330] sm:$0xff]
          %v601 = vld [vmem:[%s329 + $0x338] sm:$0xff]
          %v602 = vld [vmem:[%s329 + $0x340] sm:$0xff]
          %v603 = vld [vmem:[%s329 + $0x348] sm:$0xff]
          %v604 = vld [vmem:[%s329 + $0x350] sm:$0xff]
          %v605 = vld [vmem:[%s329 + $0x358] sm:$0xff]
          %v606 = vld [vmem:[%s329 + $0x360] sm:$0xff]
          %v607 = vld [vmem:[%s329 + $0x368] sm:$0xff]
          %v608 = vld [vmem:[%s329 + $0x370] sm:$0xff]
          %v609 = vld [vmem:[%s329 + $0x378] sm:$0xff]
          %v610 = vld [vmem:[%s329 + $0x380] sm:$0xff]
          %v611 = vld [vmem:[%s329 + $0x388] sm:$0xff]
          %v612 = vld [vmem:[%s329 + $0x390] sm:$0xff]
          %v613 = vld [vmem:[%s329 + $0x398] sm:$0xff]
          %v614 = vld [vmem:[%s329 + $0x3a0] sm:$0xff]
          %v615 = vld [vmem:[%s329 + $0x3a8] sm:$0xff]
          %v616 = vld [vmem:[%s329 + $0x3b0] sm:$0xff]
          %v617 = vld [vmem:[%s329 + $0x3b8] sm:$0xff]
          %v618 = vld [vmem:[%s329 + $0x3c0] sm:$0xff]
          %v619 = vld [vmem:[%s329 + $0x3c8] sm:$0xff]
          %v620 = vld [vmem:[%s329 + $0x3d0] sm:$0xff]
          %v621 = vld [vmem:[%s329 + $0x3d8] sm:$0xff]
          %v622 = vld [vmem:[%s329 + $0x3e0] sm:$0xff]
          %v623 = vld [vmem:[%s329 + $0x3e8] sm:$0xff]
          %v624 = vld [vmem:[%s329 + $0x3f0] sm:$0xff]
          %v625 = vld [vmem:[%s329 + $0x3f8] sm:$0xff]
          %v626 = vld [vmem:[%s339] sm:$0xff]
          %v627 = vld [vmem:[%s339 + $0x8] sm:$0xff]
          %v630 = vperm.slane %v626, 0
          %v631 = vperm.slane %v626, 1
          %v632 = vperm.slane %v626, 2
          %v633 = vperm.slane %v626, 3
          %v634 = vperm.slane %v626, 4
          %v635 = vperm.slane %v626, 5
          %v636 = vperm.slane %v626, 6
          %v637 = vperm.slane %v626, 7
          %v638 = vperm.slane %v627, 0
          %v639 = vperm.slane %v627, 1
          %v640 = vperm.slane %v627, 2
          %v641 = vperm.slane %v627, 3
          %v642 = vperm.slane %v627, 4
          %v643 = vperm.slane %v627, 5
          %v644 = vperm.slane %v627, 6
          %v645 = vperm.slane %v627, 7
          %v790 = vunpack.c.l.b16 %v498
          %v791 = vunpack.c.h.b16 %v498
          %v792 = vunpack.c.l.b16 %v499
          %v793 = vunpack.c.h.b16 %v499
          %v794 = vunpack.c.l.b16 %v500
          %v795 = vunpack.c.h.b16 %v500
          %v796 = vunpack.c.l.b16 %v501
          %v797 = vunpack.c.h.b16 %v501
          %v798 = vunpack.c.l.b16 %v502
          %v799 = vunpack.c.h.b16 %v502
          %v800 = vunpack.c.l.b16 %v503
          %v801 = vunpack.c.h.b16 %v503
          %v802 = vunpack.c.l.b16 %v504
          %v803 = vunpack.c.h.b16 %v504
          %v804 = vunpack.c.l.b16 %v505
          %v805 = vunpack.c.h.b16 %v505
          %v806 = vunpack.c.l.b16 %v506
          %v807 = vunpack.c.h.b16 %v506
          %v808 = vunpack.c.l.b16 %v507
          %v809 = vunpack.c.h.b16 %v507
          %v810 = vunpack.c.l.b16 %v508
          %v811 = vunpack.c.h.b16 %v508
          %v812 = vunpack.c.l.b16 %v509
          %v813 = vunpack.c.h.b16 %v509
          %v814 = vunpack.c.l.b16 %v510
          %v815 = vunpack.c.h.b16 %v510
          %v816 = vunpack.c.l.b16 %v511
          %v817 = vunpack.c.h.b16 %v511
          %v818 = vunpack.c.l.b16 %v512
          %v819 = vunpack.c.h.b16 %v512
          %v820 = vunpack.c.l.b16 %v513
          %v821 = vunpack.c.h.b16 %v513
          %v822 = vunpack.c.l.b16 %v514
          %v823 = vunpack.c.h.b16 %v514
          %v824 = vunpack.c.l.b16 %v515
          %v825 = vunpack.c.h.b16 %v515
          %v826 = vunpack.c.l.b16 %v516
          %v827 = vunpack.c.h.b16 %v516
          %v828 = vunpack.c.l.b16 %v517
          %v829 = vunpack.c.h.b16 %v517
          %v830 = vunpack.c.l.b16 %v518
          %v831 = vunpack.c.h.b16 %v518
          %v832 = vunpack.c.l.b16 %v519
          %v833 = vunpack.c.h.b16 %v519
          %v834 = vunpack.c.l.b16 %v520
          %v835 = vunpack.c.h.b16 %v520
          %v836 = vunpack.c.l.b16 %v521
          %v837 = vunpack.c.h.b16 %v521
          %v838 = vunpack.c.l.b16 %v522
          %v839 = vunpack.c.h.b16 %v522
          %v840 = vunpack.c.l.b16 %v523
          %v841 = vunpack.c.h.b16 %v523
          %v842 = vunpack.c.l.b16 %v524
          %v843 = vunpack.c.h.b16 %v524
          %v844 = vunpack.c.l.b16 %v525
          %v845 = vunpack.c.h.b16 %v525
          %v846 = vunpack.c.l.b16 %v526
          %v847 = vunpack.c.h.b16 %v526
          %v848 = vunpack.c.l.b16 %v527
          %v849 = vunpack.c.h.b16 %v527
          %v850 = vunpack.c.l.b16 %v528
          %v851 = vunpack.c.h.b16 %v528
          %v852 = vunpack.c.l.b16 %v529
          %v853 = vunpack.c.h.b16 %v529
          %v854 = vunpack.c.l.b16 %v530
          %v855 = vunpack.c.h.b16 %v530
          %v856 = vunpack.c.l.b16 %v531
          %v857 = vunpack.c.h.b16 %v531
          %v858 = vunpack.c.l.b16 %v532
          %v859 = vunpack.c.h.b16 %v532
          %v860 = vunpack.c.l.b16 %v533
          %v861 = vunpack.c.h.b16 %v533
          %v862 = vunpack.c.l.b16 %v534
          %v863 = vunpack.c.h.b16 %v534
          %v864 = vunpack.c.l.b16 %v535
          %v865 = vunpack.c.h.b16 %v535
          %v866 = vunpack.c.l.b16 %v536
          %v867 = vunpack.c.h.b16 %v536
          %v868 = vunpack.c.l.b16 %v537
          %v869 = vunpack.c.h.b16 %v537
          %v870 = vunpack.c.l.b16 %v538
          %v871 = vunpack.c.h.b16 %v538
          %v872 = vunpack.c.l.b16 %v539
          %v873 = vunpack.c.h.b16 %v539
          %v874 = vunpack.c.l.b16 %v540
          %v875 = vunpack.c.h.b16 %v540
          %v876 = vunpack.c.l.b16 %v541
          %v877 = vunpack.c.h.b16 %v541
          %v878 = vunpack.c.l.b16 %v542
          %v879 = vunpack.c.h.b16 %v542
          %v880 = vunpack.c.l.b16 %v543
          %v881 = vunpack.c.h.b16 %v543
          %v882 = vunpack.c.l.b16 %v544
          %v883 = vunpack.c.h.b16 %v544
          %v884 = vunpack.c.l.b16 %v545
          %v885 = vunpack.c.h.b16 %v545
          %v886 = vunpack.c.l.b16 %v546
          %v887 = vunpack.c.h.b16 %v546
          %v888 = vunpack.c.l.b16 %v547
          %v889 = vunpack.c.h.b16 %v547
          %v890 = vunpack.c.l.b16 %v548
          %v891 = vunpack.c.h.b16 %v548
          %v892 = vunpack.c.l.b16 %v549
          %v893 = vunpack.c.h.b16 %v549
          %v894 = vunpack.c.l.b16 %v550
          %v895 = vunpack.c.h.b16 %v550
          %v896 = vunpack.c.l.b16 %v551
          %v897 = vunpack.c.h.b16 %v551
          %v898 = vunpack.c.l.b16 %v552
          %v899 = vunpack.c.h.b16 %v552
          %v900 = vunpack.c.l.b16 %v553
          %v901 = vunpack.c.h.b16 %v553
          %v902 = vunpack.c.l.b16 %v554
          %v903 = vunpack.c.h.b16 %v554
          %v904 = vunpack.c.l.b16 %v555
          %v905 = vunpack.c.h.b16 %v555
          %v906 = vunpack.c.l.b16 %v556
          %v907 = vunpack.c.h.b16 %v556
          %v908 = vunpack.c.l.b16 %v557
          %v909 = vunpack.c.h.b16 %v557
          %v910 = vunpack.c.l.b16 %v558
          %v911 = vunpack.c.h.b16 %v558
          %v912 = vunpack.c.l.b16 %v559
          %v913 = vunpack.c.h.b16 %v559
          %v914 = vunpack.c.l.b16 %v560
          %v915 = vunpack.c.h.b16 %v560
          %v916 = vunpack.c.l.b16 %v561
          %v917 = vunpack.c.h.b16 %v561
          %v918 = vunpack.c.l.b16 %v562
          %v919 = vunpack.c.h.b16 %v562
          %v920 = vunpack.c.l.b16 %v563
          %v921 = vunpack.c.h.b16 %v563
          %v922 = vunpack.c.l.b16 %v564
          %v923 = vunpack.c.h.b16 %v564
          %v924 = vunpack.c.l.b16 %v565
          %v925 = vunpack.c.h.b16 %v565
          %v926 = vunpack.c.l.b16 %v566
          %v927 = vunpack.c.h.b16 %v566
          %v928 = vunpack.c.l.b16 %v567
          %v929 = vunpack.c.h.b16 %v567
          %v930 = vunpack.c.l.b16 %v568
          %v931 = vunpack.c.h.b16 %v568
          %v932 = vunpack.c.l.b16 %v569
          %v933 = vunpack.c.h.b16 %v569
          %v934 = vunpack.c.l.b16 %v570
          %v935 = vunpack.c.h.b16 %v570
          %v936 = vunpack.c.l.b16 %v571
          %v937 = vunpack.c.h.b16 %v571
          %v938 = vunpack.c.l.b16 %v572
          %v939 = vunpack.c.h.b16 %v572
          %v940 = vunpack.c.l.b16 %v573
          %v941 = vunpack.c.h.b16 %v573
          %v942 = vunpack.c.l.b16 %v574
          %v943 = vunpack.c.h.b16 %v574
          %v944 = vunpack.c.l.b16 %v575
          %v945 = vunpack.c.h.b16 %v575
          %v946 = vunpack.c.l.b16 %v576
          %v947 = vunpack.c.h.b16 %v576
          %v948 = vunpack.c.l.b16 %v577
          %v949 = vunpack.c.h.b16 %v577
          %v950 = vunpack.c.l.b16 %v578
          %v951 = vunpack.c.h.b16 %v578
          %v952 = vunpack.c.l.b16 %v579
          %v953 = vunpack.c.h.b16 %v579
          %v954 = vunpack.c.l.b16 %v580
          %v955 = vunpack.c.h.b16 %v580
          %v956 = vunpack.c.l.b16 %v581
          %v957 = vunpack.c.h.b16 %v581
          %v958 = vunpack.c.l.b16 %v582
          %v959 = vunpack.c.h.b16 %v582
          %v960 = vunpack.c.l.b16 %v583
          %v961 = vunpack.c.h.b16 %v583
          %v962 = vunpack.c.l.b16 %v584
          %v963 = vunpack.c.h.b16 %v584
          %v964 = vunpack.c.l.b16 %v585
          %v965 = vunpack.c.h.b16 %v585
          %v966 = vunpack.c.l.b16 %v586
          %v967 = vunpack.c.h.b16 %v586
          %v968 = vunpack.c.l.b16 %v587
          %v969 = vunpack.c.h.b16 %v587
          %v970 = vunpack.c.l.b16 %v588
          %v971 = vunpack.c.h.b16 %v588
          %v972 = vunpack.c.l.b16 %v589
          %v973 = vunpack.c.h.b16 %v589
          %v974 = vunpack.c.l.b16 %v590
          %v975 = vunpack.c.h.b16 %v590
          %v976 = vunpack.c.l.b16 %v591
          %v977 = vunpack.c.h.b16 %v591
          %v978 = vunpack.c.l.b16 %v592
          %v979 = vunpack.c.h.b16 %v592
          %v980 = vunpack.c.l.b16 %v593
          %v981 = vunpack.c.h.b16 %v593
          %v982 = vunpack.c.l.b16 %v594
          %v983 = vunpack.c.h.b16 %v594
          %v984 = vunpack.c.l.b16 %v595
          %v985 = vunpack.c.h.b16 %v595
          %v986 = vunpack.c.l.b16 %v596
          %v987 = vunpack.c.h.b16 %v596
          %v988 = vunpack.c.l.b16 %v597
          %v989 = vunpack.c.h.b16 %v597
          %v990 = vunpack.c.l.b16 %v598
          %v991 = vunpack.c.h.b16 %v598
          %v992 = vunpack.c.l.b16 %v599
          %v993 = vunpack.c.h.b16 %v599
          %v994 = vunpack.c.l.b16 %v600
          %v995 = vunpack.c.h.b16 %v600
          %v996 = vunpack.c.l.b16 %v601
          %v997 = vunpack.c.h.b16 %v601
          %v998 = vunpack.c.l.b16 %v602
          %v999 = vunpack.c.h.b16 %v602
          %v1000 = vunpack.c.l.b16 %v603
          %v1001 = vunpack.c.h.b16 %v603
          %v1002 = vunpack.c.l.b16 %v604
          %v1003 = vunpack.c.h.b16 %v604
          %v1004 = vunpack.c.l.b16 %v605
          %v1005 = vunpack.c.h.b16 %v605
          %v1006 = vunpack.c.l.b16 %v606
          %v1007 = vunpack.c.h.b16 %v606
          %v1008 = vunpack.c.l.b16 %v607
          %v1009 = vunpack.c.h.b16 %v607
          %v1010 = vunpack.c.l.b16 %v608
          %v1011 = vunpack.c.h.b16 %v608
          %v1012 = vunpack.c.l.b16 %v609
          %v1013 = vunpack.c.h.b16 %v609
          %v1014 = vunpack.c.l.b16 %v610
          %v1015 = vunpack.c.h.b16 %v610
          %v1016 = vunpack.c.l.b16 %v611
          %v1017 = vunpack.c.h.b16 %v611
          %v1018 = vunpack.c.l.b16 %v612
          %v1019 = vunpack.c.h.b16 %v612
          %v1020 = vunpack.c.l.b16 %v613
          %v1021 = vunpack.c.h.b16 %v613
          %v1022 = vunpack.c.l.b16 %v614
          %v1023 = vunpack.c.h.b16 %v614
          %v1024 = vunpack.c.l.b16 %v615
          %v1025 = vunpack.c.h.b16 %v615
          %v1026 = vunpack.c.l.b16 %v616
          %v1027 = vunpack.c.h.b16 %v616
          %v1028 = vunpack.c.l.b16 %v617
          %v1029 = vunpack.c.h.b16 %v617
          %v1030 = vunpack.c.l.b16 %v618
          %v1031 = vunpack.c.h.b16 %v618
          %v1032 = vunpack.c.l.b16 %v619
          %v1033 = vunpack.c.h.b16 %v619
          %v1034 = vunpack.c.l.b16 %v620
          %v1035 = vunpack.c.h.b16 %v620
          %v1036 = vunpack.c.l.b16 %v621
          %v1037 = vunpack.c.h.b16 %v621
          %v1038 = vunpack.c.l.b16 %v622
          %v1039 = vunpack.c.h.b16 %v622
          %v1040 = vunpack.c.l.b16 %v623
          %v1041 = vunpack.c.h.b16 %v623
          %v1042 = vunpack.c.l.b16 %v624
          %v1043 = vunpack.c.h.b16 %v624
          %v1044 = vunpack.c.l.b16 %v625
          %v1045 = vunpack.c.h.b16 %v625
          %v1046 = vpack.c.b16 %v806, %v790
          %v1047 = vpack.c.b16 %v807, %v791
          %v1048 = vpack.c.b16 %v808, %v792
          %v1049 = vpack.c.b16 %v809, %v793
          %v1050 = vpack.c.b16 %v810, %v794
          %v1051 = vpack.c.b16 %v811, %v795
          %v1052 = vpack.c.b16 %v812, %v796
          %v1053 = vpack.c.b16 %v813, %v797
          %v1054 = vpack.c.b16 %v814, %v798
          %v1055 = vpack.c.b16 %v815, %v799
          %v1056 = vpack.c.b16 %v816, %v800
          %v1057 = vpack.c.b16 %v817, %v801
          %v1058 = vpack.c.b16 %v818, %v802
          %v1059 = vpack.c.b16 %v819, %v803
          %v1060 = vpack.c.b16 %v820, %v804
          %v1061 = vpack.c.b16 %v821, %v805
          %v1062 = vpack.c.b16 %v838, %v822
          %v1063 = vpack.c.b16 %v839, %v823
          %v1064 = vpack.c.b16 %v840, %v824
          %v1065 = vpack.c.b16 %v841, %v825
          %v1066 = vpack.c.b16 %v842, %v826
          %v1067 = vpack.c.b16 %v843, %v827
          %v1068 = vpack.c.b16 %v844, %v828
          %v1069 = vpack.c.b16 %v845, %v829
          %v1070 = vpack.c.b16 %v846, %v830
          %v1071 = vpack.c.b16 %v847, %v831
          %v1072 = vpack.c.b16 %v848, %v832
          %v1073 = vpack.c.b16 %v849, %v833
          %v1074 = vpack.c.b16 %v850, %v834
          %v1075 = vpack.c.b16 %v851, %v835
          %v1076 = vpack.c.b16 %v852, %v836
          %v1077 = vpack.c.b16 %v853, %v837
          %v1078 = vpack.c.b16 %v870, %v854
          %v1079 = vpack.c.b16 %v871, %v855
          %v1080 = vpack.c.b16 %v872, %v856
          %v1081 = vpack.c.b16 %v873, %v857
          %v1082 = vpack.c.b16 %v874, %v858
          %v1083 = vpack.c.b16 %v875, %v859
          %v1084 = vpack.c.b16 %v876, %v860
          %v1085 = vpack.c.b16 %v877, %v861
          %v1086 = vpack.c.b16 %v878, %v862
          %v1087 = vpack.c.b16 %v879, %v863
          %v1088 = vpack.c.b16 %v880, %v864
          %v1089 = vpack.c.b16 %v881, %v865
          %v1090 = vpack.c.b16 %v882, %v866
          %v1091 = vpack.c.b16 %v883, %v867
          %v1092 = vpack.c.b16 %v884, %v868
          %v1093 = vpack.c.b16 %v885, %v869
          %v1094 = vpack.c.b16 %v902, %v886
          %v1095 = vpack.c.b16 %v903, %v887
          %v1096 = vpack.c.b16 %v904, %v888
          %v1097 = vpack.c.b16 %v905, %v889
          %v1098 = vpack.c.b16 %v906, %v890
          %v1099 = vpack.c.b16 %v907, %v891
          %v1100 = vpack.c.b16 %v908, %v892
          %v1101 = vpack.c.b16 %v909, %v893
          %v1102 = vpack.c.b16 %v910, %v894
          %v1103 = vpack.c.b16 %v911, %v895
          %v1104 = vpack.c.b16 %v912, %v896
          %v1105 = vpack.c.b16 %v913, %v897
          %v1106 = vpack.c.b16 %v914, %v898
          %v1107 = vpack.c.b16 %v915, %v899
          %v1108 = vpack.c.b16 %v916, %v900
          %v1109 = vpack.c.b16 %v917, %v901
          %v1110 = vpack.c.b16 %v934, %v918
          %v1111 = vpack.c.b16 %v935, %v919
          %v1112 = vpack.c.b16 %v936, %v920
          %v1113 = vpack.c.b16 %v937, %v921
          %v1114 = vpack.c.b16 %v938, %v922
          %v1115 = vpack.c.b16 %v939, %v923
          %v1116 = vpack.c.b16 %v940, %v924
          %v1117 = vpack.c.b16 %v941, %v925
          %v1118 = vpack.c.b16 %v942, %v926
          %v1119 = vpack.c.b16 %v943, %v927
          %v1120 = vpack.c.b16 %v944, %v928
          %v1121 = vpack.c.b16 %v945, %v929
          %v1122 = vpack.c.b16 %v946, %v930
          %v1123 = vpack.c.b16 %v947, %v931
          %v1124 = vpack.c.b16 %v948, %v932
          %v1125 = vpack.c.b16 %v949, %v933
          %v1126 = vpack.c.b16 %v966, %v950
          %v1127 = vpack.c.b16 %v967, %v951
          %v1128 = vpack.c.b16 %v968, %v952
          %v1129 = vpack.c.b16 %v969, %v953
          %v1130 = vpack.c.b16 %v970, %v954
          %v1131 = vpack.c.b16 %v971, %v955
          %v1132 = vpack.c.b16 %v972, %v956
          %v1133 = vpack.c.b16 %v973, %v957
          %v1134 = vpack.c.b16 %v974, %v958
          %v1135 = vpack.c.b16 %v975, %v959
          %v1136 = vpack.c.b16 %v976, %v960
          %v1137 = vpack.c.b16 %v977, %v961
          %v1138 = vpack.c.b16 %v978, %v962
          %v1139 = vpack.c.b16 %v979, %v963
          %v1140 = vpack.c.b16 %v980, %v964
          %v1141 = vpack.c.b16 %v981, %v965
          %v1142 = vpack.c.b16 %v998, %v982
          %v1143 = vpack.c.b16 %v999, %v983
          %v1144 = vpack.c.b16 %v1000, %v984
          %v1145 = vpack.c.b16 %v1001, %v985
          %v1146 = vpack.c.b16 %v1002, %v986
          %v1147 = vpack.c.b16 %v1003, %v987
          %v1148 = vpack.c.b16 %v1004, %v988
          %v1149 = vpack.c.b16 %v1005, %v989
          %v1150 = vpack.c.b16 %v1006, %v990
          %v1151 = vpack.c.b16 %v1007, %v991
          %v1152 = vpack.c.b16 %v1008, %v992
          %v1153 = vpack.c.b16 %v1009, %v993
          %v1154 = vpack.c.b16 %v1010, %v994
          %v1155 = vpack.c.b16 %v1011, %v995
          %v1156 = vpack.c.b16 %v1012, %v996
          %v1157 = vpack.c.b16 %v1013, %v997
          %v1158 = vpack.c.b16 %v1030, %v1014
          %v1159 = vpack.c.b16 %v1031, %v1015
          %v1160 = vpack.c.b16 %v1032, %v1016
          %v1161 = vpack.c.b16 %v1033, %v1017
          %v1162 = vpack.c.b16 %v1034, %v1018
          %v1163 = vpack.c.b16 %v1035, %v1019
          %v1164 = vpack.c.b16 %v1036, %v1020
          %v1165 = vpack.c.b16 %v1037, %v1021
          %v1166 = vpack.c.b16 %v1038, %v1022
          %v1167 = vpack.c.b16 %v1039, %v1023
          %v1168 = vpack.c.b16 %v1040, %v1024
          %v1169 = vpack.c.b16 %v1041, %v1025
          %v1170 = vpack.c.b16 %v1042, %v1026
          %v1171 = vpack.c.b16 %v1043, %v1027
          %v1172 = vpack.c.b16 %v1044, %v1028
          %v1173 = vpack.c.b16 %v1045, %v1029
          %1302 = vmatpush.bf16.msra.mxu0 %v1158
          %1303 = vmatpush.bf16.msra.mxu0 %v1142
          %1304 = vmatpush.bf16.msra.mxu0 %v1126
          %1305 = vmatpush.bf16.msra.mxu0 %v1110
          %1306 = vmatpush.bf16.msra.mxu0 %v1094
          %1307 = vmatpush.bf16.msra.mxu0 %v1078
          %1308 = vmatpush.bf16.msra.mxu0 %v1062
          %1309 = vmatpush.bf16.msra.mxu0 %v1046
          %1310 = vmatmul.bf16.gmra.mxu0 %v497
          %v1311 = vpop.f32.mrf.mxu0
          %v1312 = vadd.f32 %v630, %v1311
          %v1313 = vpop.f32.mrf.mxu0
          %1314 = vdwg.mxu0
          %1315 = vmatpush.bf16.msra.mxu0 %v1159
          %1316 = vmatpush.bf16.msra.mxu0 %v1143
          %1317 = vmatpush.bf16.msra.mxu0 %v1127
          %1318 = vmatpush.bf16.msra.mxu0 %v1111
          %1319 = vmatpush.bf16.msra.mxu0 %v1095
          %1320 = vmatpush.bf16.msra.mxu0 %v1079
          %1321 = vmatpush.bf16.msra.mxu0 %v1063
          %1322 = vmatpush.bf16.msra.mxu0 %v1047
          %1323 = vmatmul.bf16.gmra.mxu0 %v497
          %v1324 = vpop.f32.mrf.mxu0
          %v1325 = vadd.f32 %v631, %v1324
          %v1326 = vpop.f32.mrf.mxu0
          %1327 = vdwg.mxu0
          %1328 = vmatpush.bf16.msra.mxu0 %v1160
          %1329 = vmatpush.bf16.msra.mxu0 %v1144
          %1330 = vmatpush.bf16.msra.mxu0 %v1128
          %1331 = vmatpush.bf16.msra.mxu0 %v1112
          %1332 = vmatpush.bf16.msra.mxu0 %v1096
          %1333 = vmatpush.bf16.msra.mxu0 %v1080
          %1334 = vmatpush.bf16.msra.mxu0 %v1064
          %1335 = vmatpush.bf16.msra.mxu0 %v1048
          %1336 = vmatmul.bf16.gmra.mxu0 %v497
          %v1337 = vpop.f32.mrf.mxu0
          %v1338 = vadd.f32 %v632, %v1337
          %v1339 = vpop.f32.mrf.mxu0
          %1340 = vdwg.mxu0
          %1341 = vmatpush.bf16.msra.mxu0 %v1161
          %1342 = vmatpush.bf16.msra.mxu0 %v1145
          %1343 = vmatpush.bf16.msra.mxu0 %v1129
          %1344 = vmatpush.bf16.msra.mxu0 %v1113
          %1345 = vmatpush.bf16.msra.mxu0 %v1097
          %1346 = vmatpush.bf16.msra.mxu0 %v1081
          %1347 = vmatpush.bf16.msra.mxu0 %v1065
          %1348 = vmatpush.bf16.msra.mxu0 %v1049
          %1349 = vmatmul.bf16.gmra.mxu0 %v497
          %v1350 = vpop.f32.mrf.mxu0
          %v1351 = vadd.f32 %v633, %v1350
          %v1352 = vpop.f32.mrf.mxu0
          %1353 = vdwg.mxu0
          %1354 = vmatpush.bf16.msra.mxu0 %v1162
          %1355 = vmatpush.bf16.msra.mxu0 %v1146
          %1356 = vmatpush.bf16.msra.mxu0 %v1130
          %1357 = vmatpush.bf16.msra.mxu0 %v1114
          %1358 = vmatpush.bf16.msra.mxu0 %v1098
          %1359 = vmatpush.bf16.msra.mxu0 %v1082
          %1360 = vmatpush.bf16.msra.mxu0 %v1066
          %1361 = vmatpush.bf16.msra.mxu0 %v1050
          %1362 = vmatmul.bf16.gmra.mxu0 %v497
          %v1363 = vpop.f32.mrf.mxu0
          %v1364 = vadd.f32 %v634, %v1363
          %v1365 = vpop.f32.mrf.mxu0
          %1366 = vdwg.mxu0
          %1367 = vmatpush.bf16.msra.mxu0 %v1163
          %1368 = vmatpush.bf16.msra.mxu0 %v1147
          %1369 = vmatpush.bf16.msra.mxu0 %v1131
          %1370 = vmatpush.bf16.msra.mxu0 %v1115
          %1371 = vmatpush.bf16.msra.mxu0 %v1099
          %1372 = vmatpush.bf16.msra.mxu0 %v1083
          %1373 = vmatpush.bf16.msra.mxu0 %v1067
          %1374 = vmatpush.bf16.msra.mxu0 %v1051
          %1375 = vmatmul.bf16.gmra.mxu0 %v497
          %v1376 = vpop.f32.mrf.mxu0
          %v1377 = vadd.f32 %v635, %v1376
          %v1378 = vpop.f32.mrf.mxu0
          %1379 = vdwg.mxu0
          %1380 = vmatpush.bf16.msra.mxu0 %v1164
          %1381 = vmatpush.bf16.msra.mxu0 %v1148
          %1382 = vmatpush.bf16.msra.mxu0 %v1132
          %1383 = vmatpush.bf16.msra.mxu0 %v1116
          %1384 = vmatpush.bf16.msra.mxu0 %v1100
          %1385 = vmatpush.bf16.msra.mxu0 %v1084
          %1386 = vmatpush.bf16.msra.mxu0 %v1068
          %1387 = vmatpush.bf16.msra.mxu0 %v1052
          %1388 = vmatmul.bf16.gmra.mxu0 %v497
          %v1389 = vpop.f32.mrf.mxu0
          %v1390 = vadd.f32 %v636, %v1389
          %v1391 = vpop.f32.mrf.mxu0
          %1392 = vdwg.mxu0
          %1393 = vmatpush.bf16.msra.mxu0 %v1165
          %1394 = vmatpush.bf16.msra.mxu0 %v1149
          %1395 = vmatpush.bf16.msra.mxu0 %v1133
          %1396 = vmatpush.bf16.msra.mxu0 %v1117
          %1397 = vmatpush.bf16.msra.mxu0 %v1101
          %1398 = vmatpush.bf16.msra.mxu0 %v1085
          %1399 = vmatpush.bf16.msra.mxu0 %v1069
          %1400 = vmatpush.bf16.msra.mxu0 %v1053
          %1401 = vmatmul.bf16.gmra.mxu0 %v497
          %v1402 = vpop.f32.mrf.mxu0
          %v1403 = vadd.f32 %v637, %v1402
          %v1404 = vpop.f32.mrf.mxu0
          %1405 = vdwg.mxu0
          %1406 = vmatpush.bf16.msra.mxu0 %v1166
          %1407 = vmatpush.bf16.msra.mxu0 %v1150
          %1408 = vmatpush.bf16.msra.mxu0 %v1134
          %1409 = vmatpush.bf16.msra.mxu0 %v1118
          %1410 = vmatpush.bf16.msra.mxu0 %v1102
          %1411 = vmatpush.bf16.msra.mxu0 %v1086
          %1412 = vmatpush.bf16.msra.mxu0 %v1070
          %1413 = vmatpush.bf16.msra.mxu0 %v1054
          %1414 = vmatmul.bf16.gmra.mxu0 %v497
          %v1415 = vpop.f32.mrf.mxu0
          %v1416 = vadd.f32 %v638, %v1415
          %v1417 = vpop.f32.mrf.mxu0
          %1418 = vdwg.mxu0
          %1419 = vmatpush.bf16.msra.mxu0 %v1167
          %1420 = vmatpush.bf16.msra.mxu0 %v1151
          %1421 = vmatpush.bf16.msra.mxu0 %v1135
          %1422 = vmatpush.bf16.msra.mxu0 %v1119
          %1423 = vmatpush.bf16.msra.mxu0 %v1103
          %1424 = vmatpush.bf16.msra.mxu0 %v1087
          %1425 = vmatpush.bf16.msra.mxu0 %v1071
          %1426 = vmatpush.bf16.msra.mxu0 %v1055
          %1427 = vmatmul.bf16.gmra.mxu0 %v497
          %v1428 = vpop.f32.mrf.mxu0
          %v1429 = vadd.f32 %v639, %v1428
          %v1430 = vpop.f32.mrf.mxu0
          %1431 = vdwg.mxu0
          %1432 = vmatpush.bf16.msra.mxu0 %v1168
          %1433 = vmatpush.bf16.msra.mxu0 %v1152
          %1434 = vmatpush.bf16.msra.mxu0 %v1136
          %1435 = vmatpush.bf16.msra.mxu0 %v1120
          %1436 = vmatpush.bf16.msra.mxu0 %v1104
          %1437 = vmatpush.bf16.msra.mxu0 %v1088
          %1438 = vmatpush.bf16.msra.mxu0 %v1072
          %1439 = vmatpush.bf16.msra.mxu0 %v1056
          %1440 = vmatmul.bf16.gmra.mxu0 %v497
          %v1441 = vpop.f32.mrf.mxu0
          %v1442 = vadd.f32 %v640, %v1441
          %v1443 = vpop.f32.mrf.mxu0
          %1444 = vdwg.mxu0
          %1445 = vmatpush.bf16.msra.mxu0 %v1169
          %1446 = vmatpush.bf16.msra.mxu0 %v1153
          %1447 = vmatpush.bf16.msra.mxu0 %v1137
          %1448 = vmatpush.bf16.msra.mxu0 %v1121
          %1449 = vmatpush.bf16.msra.mxu0 %v1105
          %1450 = vmatpush.bf16.msra.mxu0 %v1089
          %1451 = vmatpush.bf16.msra.mxu0 %v1073
          %1452 = vmatpush.bf16.msra.mxu0 %v1057
          %1453 = vmatmul.bf16.gmra.mxu0 %v497
          %v1454 = vpop.f32.mrf.mxu0
          %v1455 = vadd.f32 %v641, %v1454
          %v1456 = vpop.f32.mrf.mxu0
          %1457 = vdwg.mxu0
          %1458 = vmatpush.bf16.msra.mxu0 %v1170
          %1459 = vmatpush.bf16.msra.mxu0 %v1154
          %1460 = vmatpush.bf16.msra.mxu0 %v1138
          %1461 = vmatpush.bf16.msra.mxu0 %v1122
          %1462 = vmatpush.bf16.msra.mxu0 %v1106
          %1463 = vmatpush.bf16.msra.mxu0 %v1090
          %1464 = vmatpush.bf16.msra.mxu0 %v1074
          %1465 = vmatpush.bf16.msra.mxu0 %v1058
          %1466 = vmatmul.bf16.gmra.mxu0 %v497
          %v1467 = vpop.f32.mrf.mxu0
          %v1468 = vadd.f32 %v642, %v1467
          %v1469 = vpop.f32.mrf.mxu0
          %1470 = vdwg.mxu0
          %1471 = vmatpush.bf16.msra.mxu0 %v1171
          %1472 = vmatpush.bf16.msra.mxu0 %v1155
          %1473 = vmatpush.bf16.msra.mxu0 %v1139
          %1474 = vmatpush.bf16.msra.mxu0 %v1123
          %1475 = vmatpush.bf16.msra.mxu0 %v1107
          %1476 = vmatpush.bf16.msra.mxu0 %v1091
          %1477 = vmatpush.bf16.msra.mxu0 %v1075
          %1478 = vmatpush.bf16.msra.mxu0 %v1059
          %1479 = vmatmul.bf16.gmra.mxu0 %v497
          %v1480 = vpop.f32.mrf.mxu0
          %v1481 = vadd.f32 %v643, %v1480
          %v1482 = vpop.f32.mrf.mxu0
          %1483 = vdwg.mxu0
          %1484 = vmatpush.bf16.msra.mxu0 %v1172
          %1485 = vmatpush.bf16.msra.mxu0 %v1156
          %1486 = vmatpush.bf16.msra.mxu0 %v1140
          %1487 = vmatpush.bf16.msra.mxu0 %v1124
          %1488 = vmatpush.bf16.msra.mxu0 %v1108
          %1489 = vmatpush.bf16.msra.mxu0 %v1092
          %1490 = vmatpush.bf16.msra.mxu0 %v1076
          %1491 = vmatpush.bf16.msra.mxu0 %v1060
          %1492 = vmatmul.bf16.gmra.mxu0 %v497
          %v1493 = vpop.f32.mrf.mxu0
          %v1494 = vadd.f32 %v644, %v1493
          %v1495 = vpop.f32.mrf.mxu0
          %1496 = vdwg.mxu0
          %1497 = vmatpush.bf16.msra.mxu0 %v1173
          %1498 = vmatpush.bf16.msra.mxu0 %v1157
          %1499 = vmatpush.bf16.msra.mxu0 %v1141
          %1500 = vmatpush.bf16.msra.mxu0 %v1125
          %1501 = vmatpush.bf16.msra.mxu0 %v1109
          %1502 = vmatpush.bf16.msra.mxu0 %v1093
          %1503 = vmatpush.bf16.msra.mxu0 %v1077
          %1504 = vmatpush.bf16.msra.mxu0 %v1061
          %1505 = vmatmul.bf16.gmra.mxu0 %v497
          %v1506 = vpop.f32.mrf.mxu0
          %v1507 = vadd.f32 %v645, %v1506
          %v1508 = vpop.f32.mrf.mxu0
          %1509 = vdwg.mxu0
          %v1510 = vrot.slane %v1338, 4
          %vm1511 = vcmask 1047556
          %v1512 = vsel %vm1511, %v1510, %v1312
          %v1514 = vunpack.c.l.s4 1983009808
          %v1515 = vunpack.c.0.s8 %v1514
          %v1516 = vperm.slane %v1512, %v1515
          %v1517 = vrot.slane %v1351, 4
          %v1518 = vsel %vm1511, %v1517, %v1325
          %v1520 = vunpack.c.l.s4 1983009808
          %v1521 = vunpack.c.0.s8 %v1520
          %v1522 = vperm.slane %v1518, %v1521
          %v1523 = vrot.slane %v1390, 4
          %v1524 = vsel %vm1511, %v1523, %v1364
          %v1526 = vunpack.c.l.s4 1983009808
          %v1527 = vunpack.c.0.s8 %v1526
          %v1528 = vperm.slane %v1524, %v1527
          %v1529 = vrot.slane %v1403, 4
          %v1530 = vsel %vm1511, %v1529, %v1377
          %v1532 = vunpack.c.l.s4 1983009808
          %v1533 = vunpack.c.0.s8 %v1532
          %v1534 = vperm.slane %v1530, %v1533
          %v1535 = vrot.slane %v1522, 4
          %v1536 = vsel %vm1511, %v1535, %v1516
          %v1538 = vunpack.c.l.s4 1934713408
          %v1539 = vunpack.c.0.s8 %v1538
          %v1540 = vperm.slane %v1536, %v1539
          %v1541 = vrot.slane %v1534, 4
          %v1542 = vsel %vm1511, %v1541, %v1528
          %v1544 = vunpack.c.l.s4 1934713408
          %v1545 = vunpack.c.0.s8 %v1544
          %v1546 = vperm.slane %v1542, %v1545
          %v1547 = vrot.slane %v1546, 4
          %v1548 = vsel %vm1511, %v1547, %v1540
          %v1549 = vrot.slane %v1540, 4
          %v1550 = vsel %vm1511, %v1546, %v1549
          %v1551 = vrot.slane %v1442, 4
          %v1552 = vsel %vm1511, %v1551, %v1416
          %v1554 = vunpack.c.l.s4 1983009808
          %v1555 = vunpack.c.0.s8 %v1554
          %v1556 = vperm.slane %v1552, %v1555
          %v1557 = vrot.slane %v1455, 4
          %v1558 = vsel %vm1511, %v1557, %v1429
          %v1560 = vunpack.c.l.s4 1983009808
          %v1561 = vunpack.c.0.s8 %v1560
          %v1562 = vperm.slane %v1558, %v1561
          %v1563 = vrot.slane %v1494, 4
          %v1564 = vsel %vm1511, %v1563, %v1468
          %v1566 = vunpack.c.l.s4 1983009808
          %v1567 = vunpack.c.0.s8 %v1566
          %v1568 = vperm.slane %v1564, %v1567
          %v1569 = vrot.slane %v1507, 4
          %v1570 = vsel %vm1511, %v1569, %v1481
          %v1572 = vunpack.c.l.s4 1983009808
          %v1573 = vunpack.c.0.s8 %v1572
          %v1574 = vperm.slane %v1570, %v1573
          %v1575 = vrot.slane %v1562, 4
          %v1576 = vsel %vm1511, %v1575, %v1556
          %v1578 = vunpack.c.l.s4 1934713408
          %v1579 = vunpack.c.0.s8 %v1578
          %v1580 = vperm.slane %v1576, %v1579
          %v1581 = vrot.slane %v1574, 4
          %v1582 = vsel %vm1511, %v1581, %v1568
          %v1584 = vunpack.c.l.s4 1934713408
          %v1585 = vunpack.c.0.s8 %v1584
          %v1586 = vperm.slane %v1582, %v1585
          %v1587 = vrot.slane %v1586, 4
          %v1588 = vsel %vm1511, %v1587, %v1580
          %v1589 = vrot.slane %v1580, 4
          %v1590 = vsel %vm1511, %v1586, %v1589
          %s1591 = smul.u32 %s495, 16
          %s1592 = scalar_lea.vmem [#allocation3], %s1591
          %1593 = vst [vmem:[%s1592] sm:$0xff] %v1548
          %1594 = vst [vmem:[%s1592 + $0x8] sm:$0xff] %v1588
          %1595 = vst [vmem:[%s1592 + $0x20] sm:$0xff] %v1550
          %1596 = vst [vmem:[%s1592 + $0x28] sm:$0xff] %v1590
        $region72: #{tpu_custom_call.1} parent=39 // pred_fallthru
          _
        %p1597 = scmp.eq.s32.totalorder %s26, 3
        // Predicated region
        $region73: #{tpu_custom_call.1} parent=39 // pred_check
          %p1598 = pneg %p1597
        $region74: #{tpu_custom_call.1} parent=39 // pred_check_branch
          %1600 = sbr.rel (%p1598) target = $region76
        $region75: #{tpu_custom_call.1} parent=39 // pred_region
          %v1601 = vld [vmem:[#allocation3] sm:$0xff]
          %v1602 = vld [vmem:[#allocation3 + $0x8] sm:$0xff]
          %v1603 = vld [vmem:[#allocation3 + $0x10] sm:$0xff]
          %v1604 = vld [vmem:[#allocation3 + $0x18] sm:$0xff]
          %1605 = vxpose.xlu0.b32.start [1/16] %v1601, 128
          %1606 = vxpose.xlu0.b32.cont [2/16] %v1602, 128
          %1607 = vxpose.xlu0.b32.cont [3/16] 0.0, 128
          %1608 = vxpose.xlu0.b32.cont [4/16] 0.0, 128
          %1609 = vxpose.xlu0.b32.cont [5/16] 0.0, 128
          %1610 = vxpose.xlu0.b32.cont [6/16] 0.0, 128
          %1611 = vxpose.xlu0.b32.cont [7/16] 0.0, 128
          %1612 = vxpose.xlu0.b32.cont [8/16] 0.0, 128
          %1613 = vxpose.xlu0.b32.cont [9/16] 0.0, 128
          %1614 = vxpose.xlu0.b32.cont [10/16] 0.0, 128
          %1615 = vxpose.xlu0.b32.cont [11/16] 0.0, 128
          %1616 = vxpose.xlu0.b32.cont [12/16] 0.0, 128
          %1617 = vxpose.xlu0.b32.cont [13/16] 0.0, 128
          %1618 = vxpose.xlu0.b32.cont [14/16] 0.0, 128
          %1619 = vxpose.xlu0.b32.cont [15/16] 0.0, 128
          %1620 = vxpose.xlu0.b32.end [16/16] 0.0, 128
          %v1621 = vpop.trf.xlu0
          %v1622 = vpop.trf.xlu0
          %v1623 = vpop.trf.xlu0
          %v1624 = vpop.trf.xlu0
          %v1625 = vpop.trf.xlu0
          %v1626 = vpop.trf.xlu0
          %v1627 = vpop.trf.xlu0
          %v1628 = vpop.trf.xlu0
          %v1629 = vpop.trf.xlu0
          %v1630 = vpop.trf.xlu0
          %v1631 = vpop.trf.xlu0
          %v1632 = vpop.trf.xlu0
          %v1633 = vpop.trf.xlu0
          %v1634 = vpop.trf.xlu0
          %v1635 = vpop.trf.xlu0
          %v1636 = vpop.trf.xlu0
          %vm1637 = vcmask 130048
          %v1639 = vsel %vm1637, %v1621, 0
          %v1642 = vsel %vm1637, %v1622, 0
          %v1645 = vsel %vm1637, %v1623, 0
          %v1648 = vsel %vm1637, %v1624, 0
          %v1651 = vsel %vm1637, %v1625, 0
          %v1654 = vsel %vm1637, %v1626, 0
          %v1657 = vsel %vm1637, %v1627, 0
          %v1660 = vsel %vm1637, %v1628, 0
          %v1663 = vsel %vm1637, %v1629, 0
          %v1666 = vsel %vm1637, %v1630, 0
          %v1669 = vsel %vm1637, %v1631, 0
          %v1672 = vsel %vm1637, %v1632, 0
          %v1675 = vsel %vm1637, %v1633, 0
          %v1678 = vsel %vm1637, %v1634, 0
          %v1681 = vsel %vm1637, %v1635, 0
          %v1684 = vsel %vm1637, %v1636, 0
          %1686 = vmatpush.msra.mxu0 0.0
          %1687 = vmatpush.msra.mxu0 0.0
          %1688 = vmatpush.msra.mxu0 0.0
          %1689 = vmatpush.msra.mxu0 0.0
          %1690 = vmatpush.msra.mxu0 0.0
          %1691 = vmatpush.msra.mxu0 0.0
          %1692 = vmatpush.msra.mxu0 0.0
          %1693 = vmatpush.msra.mxu0 0.0
          %1694 = vmatpush.msra.mxu0 0.0
          %1695 = vmatpush.msra.mxu0 0.0
          %1696 = vmatpush.msra.mxu0 0.0
          %1697 = vmatpush.msra.mxu0 0.0
          %1698 = vmatpush.msra.mxu0 0.0
          %1699 = vmatpush.msra.mxu0 0.0
          %1700 = vmatpush.msra.mxu0 %v1604
          %1701 = vmatpush.msra.mxu0 %v1603
          %1702 = vmatmul.f32.gmra.mxu0 %v1639
          %v1703 = vpop.f32.mrf.mxu0
          %v1704 = vadd.f32 0.0, %v1703
          %1705 = vmatmul.f32.gmra.mxu0 %v1642
          %v1706 = vpop.f32.mrf.mxu0
          %v1707 = vadd.f32 0.0, %v1706
          %1708 = vmatmul.f32.gmra.mxu0 %v1645
          %v1709 = vpop.f32.mrf.mxu0
          %v1710 = vadd.f32 0.0, %v1709
          %1711 = vmatmul.f32.gmra.mxu0 %v1648
          %v1712 = vpop.f32.mrf.mxu0
          %v1713 = vadd.f32 0.0, %v1712
          %1714 = vmatmul.f32.gmra.mxu0 %v1651
          %v1715 = vpop.f32.mrf.mxu0
          %v1716 = vadd.f32 0.0, %v1715
          %1717 = vmatmul.f32.gmra.mxu0 %v1654
          %v1718 = vpop.f32.mrf.mxu0
          %v1719 = vadd.f32 0.0, %v1718
          %1720 = vmatmul.f32.gmra.mxu0 %v1657
          %v1721 = vpop.f32.mrf.mxu0
          %v1722 = vadd.f32 0.0, %v1721
          %1723 = vmatmul.f32.gmra.mxu0 %v1660
          %v1724 = vpop.f32.mrf.mxu0
          %v1725 = vadd.f32 0.0, %v1724
          %1726 = vmatmul.f32.gmra.mxu0 %v1663
          %v1727 = vpop.f32.mrf.mxu0
          %v1728 = vadd.f32 0.0, %v1727
          %1729 = vmatmul.f32.gmra.mxu0 %v1666
          %v1730 = vpop.f32.mrf.mxu0
          %v1731 = vadd.f32 0.0, %v1730
          %1732 = vmatmul.f32.gmra.mxu0 %v1669
          %v1733 = vpop.f32.mrf.mxu0
          %v1734 = vadd.f32 0.0, %v1733
          %1735 = vmatmul.f32.gmra.mxu0 %v1672
          %v1736 = vpop.f32.mrf.mxu0
          %v1737 = vadd.f32 0.0, %v1736
          %1738 = vmatmul.f32.gmra.mxu0 %v1675
          %v1739 = vpop.f32.mrf.mxu0
          %v1740 = vadd.f32 0.0, %v1739
          %1741 = vmatmul.f32.gmra.mxu0 %v1678
          %v1742 = vpop.f32.mrf.mxu0
          %v1743 = vadd.f32 0.0, %v1742
          %1744 = vmatmul.f32.gmra.mxu0 %v1681
          %v1745 = vpop.f32.mrf.mxu0
          %v1746 = vadd.f32 0.0, %v1745
          %1747 = vmatmul.f32.gmra.mxu0 %v1684
          %v1748 = vpop.f32.mrf.mxu0
          %v1749 = vadd.f32 0.0, %v1748
          %1750 = vdwg.mxu0
          %1751 = vst [vmem:[#allocation12] sm:$0xff] %v1704
          %1752 = vst [vmem:[#allocation12 + $0x8] sm:$0xff] %v1707
          %1753 = vst [vmem:[#allocation12 + $0x10] sm:$0xff] %v1710
          %1754 = vst [vmem:[#allocation12 + $0x18] sm:$0xff] %v1713
          %1755 = vst [vmem:[#allocation12 + $0x20] sm:$0xff] %v1716
          %1756 = vst [vmem:[#allocation12 + $0x28] sm:$0xff] %v1719
          %1757 = vst [vmem:[#allocation12 + $0x30] sm:$0xff] %v1722
          %1758 = vst [vmem:[#allocation12 + $0x38] sm:$0xff] %v1725
          %1759 = vst [vmem:[#allocation12 + $0x40] sm:$0xff] %v1728
          %1760 = vst [vmem:[#allocation12 + $0x48] sm:$0xff] %v1731
          %1761 = vst [vmem:[#allocation12 + $0x50] sm:$0xff] %v1734
          %1762 = vst [vmem:[#allocation12 + $0x58] sm:$0xff] %v1737
          %1763 = vst [vmem:[#allocation12 + $0x60] sm:$0xff] %v1740
          %1764 = vst [vmem:[#allocation12 + $0x68] sm:$0xff] %v1743
          %1765 = vst [vmem:[#allocation12 + $0x70] sm:$0xff] %v1746
          %1766 = vst [vmem:[#allocation12 + $0x78] sm:$0xff] %v1749
          %s1767 = scalar_lea.vmem [#allocation3], 32
          %v1768 = vld [vmem:[%s1767] sm:$0xff]
          %v1769 = vld [vmem:[%s1767 + $0x8] sm:$0xff]
          %v1770 = vld [vmem:[%s1767 + $0x10] sm:$0xff]
          %v1771 = vld [vmem:[%s1767 + $0x18] sm:$0xff]
          %1772 = vxpose.xlu0.b32.start [1/16] %v1768, 128
          %1773 = vxpose.xlu0.b32.cont [2/16] %v1769, 128
          %1774 = vxpose.xlu0.b32.cont [3/16] 0.0, 128
          %1775 = vxpose.xlu0.b32.cont [4/16] 0.0, 128
          %1776 = vxpose.xlu0.b32.cont [5/16] 0.0, 128
          %1777 = vxpose.xlu0.b32.cont [6/16] 0.0, 128
          %1778 = vxpose.xlu0.b32.cont [7/16] 0.0, 128
          %1779 = vxpose.xlu0.b32.cont [8/16] 0.0, 128
          %1780 = vxpose.xlu0.b32.cont [9/16] 0.0, 128
          %1781 = vxpose.xlu0.b32.cont [10/16] 0.0, 128
          %1782 = vxpose.xlu0.b32.cont [11/16] 0.0, 128
          %1783 = vxpose.xlu0.b32.cont [12/16] 0.0, 128
          %1784 = vxpose.xlu0.b32.cont [13/16] 0.0, 128
          %1785 = vxpose.xlu0.b32.cont [14/16] 0.0, 128
          %1786 = vxpose.xlu0.b32.cont [15/16] 0.0, 128
          %1787 = vxpose.xlu0.b32.end [16/16] 0.0, 128
          %v1788 = vpop.trf.xlu0
          %v1789 = vpop.trf.xlu0
          %v1790 = vpop.trf.xlu0
          %v1791 = vpop.trf.xlu0
          %v1792 = vpop.trf.xlu0
          %v1793 = vpop.trf.xlu0
          %v1794 = vpop.trf.xlu0
          %v1795 = vpop.trf.xlu0
          %v1796 = vpop.trf.xlu0
          %v1797 = vpop.trf.xlu0
          %v1798 = vpop.trf.xlu0
          %v1799 = vpop.trf.xlu0
          %v1800 = vpop.trf.xlu0
          %v1801 = vpop.trf.xlu0
          %v1802 = vpop.trf.xlu0
          %v1803 = vpop.trf.xlu0
          %v1805 = vsel %vm1637, %v1788, 0
          %v1808 = vsel %vm1637, %v1789, 0
          %v1811 = vsel %vm1637, %v1790, 0
          %v1814 = vsel %vm1637, %v1791, 0
          %v1817 = vsel %vm1637, %v1792, 0
          %v1820 = vsel %vm1637, %v1793, 0
          %v1823 = vsel %vm1637, %v1794, 0
          %v1826 = vsel %vm1637, %v1795, 0
          %v1829 = vsel %vm1637, %v1796, 0
          %v1832 = vsel %vm1637, %v1797, 0
          %v1835 = vsel %vm1637, %v1798, 0
          %v1838 = vsel %vm1637, %v1799, 0
          %v1841 = vsel %vm1637, %v1800, 0
          %v1844 = vsel %vm1637, %v1801, 0
          %v1847 = vsel %vm1637, %v1802, 0
          %v1850 = vsel %vm1637, %v1803, 0
          %1852 = vmatpush.msra.mxu0 0.0
          %1853 = vmatpush.msra.mxu0 0.0
          %1854 = vmatpush.msra.mxu0 0.0
          %1855 = vmatpush.msra.mxu0 0.0
          %1856 = vmatpush.msra.mxu0 0.0
          %1857 = vmatpush.msra.mxu0 0.0
          %1858 = vmatpush.msra.mxu0 0.0
          %1859 = vmatpush.msra.mxu0 0.0
          %1860 = vmatpush.msra.mxu0 0.0
          %1861 = vmatpush.msra.mxu0 0.0
          %1862 = vmatpush.msra.mxu0 0.0
          %1863 = vmatpush.msra.mxu0 0.0
          %1864 = vmatpush.msra.mxu0 0.0
          %1865 = vmatpush.msra.mxu0 0.0
          %1866 = vmatpush.msra.mxu0 %v1771
          %1867 = vmatpush.msra.mxu0 %v1770
          %1868 = vmatmul.f32.gmra.mxu0 %v1805
          %v1869 = vpop.f32.mrf.mxu0
          %v1870 = vadd.f32 0.0, %v1869
          %1871 = vmatmul.f32.gmra.mxu0 %v1808
          %v1872 = vpop.f32.mrf.mxu0
          %v1873 = vadd.f32 0.0, %v1872
          %1874 = vmatmul.f32.gmra.mxu0 %v1811
          %v1875 = vpop.f32.mrf.mxu0
          %v1876 = vadd.f32 0.0, %v1875
          %1877 = vmatmul.f32.gmra.mxu0 %v1814
          %v1878 = vpop.f32.mrf.mxu0
          %v1879 = vadd.f32 0.0, %v1878
          %1880 = vmatmul.f32.gmra.mxu0 %v1817
          %v1881 = vpop.f32.mrf.mxu0
          %v1882 = vadd.f32 0.0, %v1881
          %1883 = vmatmul.f32.gmra.mxu0 %v1820
          %v1884 = vpop.f32.mrf.mxu0
          %v1885 = vadd.f32 0.0, %v1884
          %1886 = vmatmul.f32.gmra.mxu0 %v1823
          %v1887 = vpop.f32.mrf.mxu0
          %v1888 = vadd.f32 0.0, %v1887
          %1889 = vmatmul.f32.gmra.mxu0 %v1826
          %v1890 = vpop.f32.mrf.mxu0
          %v1891 = vadd.f32 0.0, %v1890
          %1892 = vmatmul.f32.gmra.mxu0 %v1829
          %v1893 = vpop.f32.mrf.mxu0
          %v1894 = vadd.f32 0.0, %v1893
          %1895 = vmatmul.f32.gmra.mxu0 %v1832
          %v1896 = vpop.f32.mrf.mxu0
          %v1897 = vadd.f32 0.0, %v1896
          %1898 = vmatmul.f32.gmra.mxu0 %v1835
          %v1899 = vpop.f32.mrf.mxu0
          %v1900 = vadd.f32 0.0, %v1899
          %1901 = vmatmul.f32.gmra.mxu0 %v1838
          %v1902 = vpop.f32.mrf.mxu0
          %v1903 = vadd.f32 0.0, %v1902
          %1904 = vmatmul.f32.gmra.mxu0 %v1841
          %v1905 = vpop.f32.mrf.mxu0
          %v1906 = vadd.f32 0.0, %v1905
          %1907 = vmatmul.f32.gmra.mxu0 %v1844
          %v1908 = vpop.f32.mrf.mxu0
          %v1909 = vadd.f32 0.0, %v1908
          %1910 = vmatmul.f32.gmra.mxu0 %v1847
          %v1911 = vpop.f32.mrf.mxu0
          %v1912 = vadd.f32 0.0, %v1911
          %1913 = vmatmul.f32.gmra.mxu0 %v1850
          %v1914 = vpop.f32.mrf.mxu0
          %v1915 = vadd.f32 0.0, %v1914
          %1916 = vdwg.mxu0
          %s1917 = scalar_lea.vmem [#allocation12], 128
          %1918 = vst [vmem:[%s1917] sm:$0xff] %v1870
          %1919 = vst [vmem:[%s1917 + $0x8] sm:$0xff] %v1873
          %1920 = vst [vmem:[%s1917 + $0x10] sm:$0xff] %v1876
          %1921 = vst [vmem:[%s1917 + $0x18] sm:$0xff] %v1879
          %1922 = vst [vmem:[%s1917 + $0x20] sm:$0xff] %v1882
          %1923 = vst [vmem:[%s1917 + $0x28] sm:$0xff] %v1885
          %1924 = vst [vmem:[%s1917 + $0x30] sm:$0xff] %v1888
          %1925 = vst [vmem:[%s1917 + $0x38] sm:$0xff] %v1891
          %1926 = vst [vmem:[%s1917 + $0x40] sm:$0xff] %v1894
          %1927 = vst [vmem:[%s1917 + $0x48] sm:$0xff] %v1897
          %1928 = vst [vmem:[%s1917 + $0x50] sm:$0xff] %v1900
          %1929 = vst [vmem:[%s1917 + $0x58] sm:$0xff] %v1903
          %1930 = vst [vmem:[%s1917 + $0x60] sm:$0xff] %v1906
          %1931 = vst [vmem:[%s1917 + $0x68] sm:$0xff] %v1909
          %1932 = vst [vmem:[%s1917 + $0x70] sm:$0xff] %v1912
          %1933 = vst [vmem:[%s1917 + $0x78] sm:$0xff] %v1915
        $region76: #{tpu_custom_call.1} parent=39 // pred_fallthru
          _
        // Predicated region
        $region77: #{tpu_custom_call.1} parent=39 // pred_check
          %p1934 = pneg %p184
        $region78: #{tpu_custom_call.1} parent=39 // pred_check_branch
          %1936 = sbr.rel (%p1934) target = $region80
        $region79: #{tpu_custom_call.1} parent=39 // pred_region
          %1938 = vsyncadd [#allocation6], 0
          %s1939 = sshll.u32 [#allocation12], 4
          %s1940 = int_to_ptr.vmem [resolvable:$true] %s1939
          %s1941 = sshll.u32 %s5, 4
          %s1942 = int_to_ptr.hbm [resolvable:$true] %s1941
          %1947 = dma.vmem_to_hbm [thread:$0]  %s1940, 4096, %s1942, [#allocation6], 128, 128, 8
        $region80: #{tpu_custom_call.1} parent=39 // pred_fallthru
          _
        // Predicated region
        $region81: #{tpu_custom_call.1} parent=39 // pred_check
          %p1948 = pneg %p184
        $region82: #{tpu_custom_call.1} parent=39 // pred_check_branch
          %1950 = sbr.rel (%p1948) target = $region84
        $region83: #{tpu_custom_call.1} parent=39 // pred_region
          %1952 = dma.done [#allocation6], 4096
        $region84: #{tpu_custom_call.1} parent=39 // pred_fallthru
          _
      $region40: #{tpu_custom_call.1} parent=5 // pred_fallthru
        _
      %p1953 = scmp.le.s32.totalorder 2, %s21
      // Predicated region
      $region85: #{tpu_custom_call.1} parent=5 // pred_check
        %p1954 = pneg %p1953
      $region86: #{tpu_custom_call.1} parent=5 // pred_check_branch
        %1956 = sbr.rel (%p1954) target = $region88
      $region87: #{tpu_custom_call.1} parent=5 // pred_region
        %s1957 = ssub.s32 %s21, 2
      $region88: #{tpu_custom_call.1} parent=5 // pred_fallthru
        _
    $region6: #{tpu_custom_call.1} parent=1 // loop_footer
      %s25 = sadd.s32 1, %s21
    $region7: #{tpu_custom_call.1} parent=1 // loop_footer_branch
      %20 = sbr.rel target = $region3
    $region8: #{tpu_custom_call.1} parent=1 // loop_exit
      _
    %1958 = vsyncpa [#allocation5], 1
    %s1959 = scalar_lea.sflag [#allocation5], 1
    %1960 = vsyncpa %s1959, 1
    %1961 = vsyncpa [#allocation8], 1
    %s1962 = scalar_lea.sflag [#allocation8], 1
    %1963 = vsyncpa %s1962, 1
    %1964 = vsyncpa [#allocation11], 1
    %s1965 = scalar_lea.sflag [#allocation11], 1
    %1966 = vsyncpa %s1965, 1
    %1967 = vsyncpa [#allocation6], 1
    %s1968 = scalar_lea.sflag [#allocation6], 1
    %1969 = vsyncpa %s1968, 1

</llo_original>
